<compile_context>
chip_gen: v6e
topology: v6e:2x2x1
jax: 0.10.0
libtpu: 0.0.40
codegen_flags: <defaults>
</compile_context>

<pallas_src>
import functools

import jax
import jax.numpy as jnp
from jax.experimental import pallas as pl
from jax.experimental.pallas import tpu as pltpu

CONV_K = 5      # Conv2d kernel_size
POOL_K = 3      # MaxPool2d kernel_size (stride == kernel_size, no padding)
CONV_OUT = 5    # Conv2d out_channels


def _shapes(height, width):
    ho, wo = height - CONV_K + 1, width - CONV_K + 1
    ph = (ho - POOL_K) // POOL_K + 1
    pw = (wo - POOL_K) // POOL_K + 1
    return ho, wo, ph, pw


# ----------------------------------------------------------------------------
# Fused kernel: conv5x5 + ReLU + maxpool3 + linear + softmax, one invocation.
# ----------------------------------------------------------------------------
def _fused_forward_kernel(x_ref, wconv_ref, bconv_ref, wlin_ref, blin_ref,
                          o_ref, *, cout, ho, wo, ph, pw, num_actions):
    """
    x_ref:     (H, W)                   f32 VMEM  input image
    wconv_ref: (CONV_K*CONV_K*cout,)    f32 SMEM  conv weight, idx (kh*K+kw)*cout+co
    bconv_ref: (cout,)                  f32 SMEM  conv bias
    wlin_ref:  (A*cout, ph*pw)          f32 VMEM  linear weight, row a*cout+co,
                                                  col i*pw+j (torch flatten order)
    blin_ref:  (1, A)                   f32 VMEM  linear bias
    o_ref:     (1, A)                   f32 VMEM  softmax probabilities
    """
    x = x_ref[...]

    # ---- Conv2d(1 -> cout, k=5, VALID) + ReLU -------------------------------
    # 25 shifted (ho, wo) views of the input, shared across output channels.
    taps = [x[kh:kh + ho, kw:kw + wo]
            for kh in range(CONV_K) for kw in range(CONV_K)]
    chans = []
    for co in range(cout):
        acc = jnp.zeros((ho, wo), jnp.float32) + bconv_ref[co]
        for k in range(CONV_K * CONV_K):
            acc = acc + wconv_ref[k * cout + co] * taps[k]
        chans.append(jnp.maximum(acc, 0.0))

    # ---- MaxPool2d(k=3, stride=3) -> pooled (cout, ph*pw) -------------------
    # Built directly in the flattened (channel-row, i*pw+j column) layout the
    # linear expects, so no in-kernel flatten/reshape is needed.
    pooled_rows = []
    for co in range(cout):
        c = chans[co]
        cols = []
        for i in range(ph):
            rmax = jnp.max(c[POOL_K * i:POOL_K * i + POOL_K, :],
                           axis=0, keepdims=True)                      # (1, wo)
            for j in range(pw):
                cols.append(jnp.max(rmax[:, POOL_K * j:POOL_K * j + POOL_K],
                                    axis=1, keepdims=True))             # (1, 1)
        pooled_rows.append(jnp.concatenate(cols, axis=1))                # (1, ph*pw)
    pooled = jnp.concatenate(pooled_rows, axis=0)                        # (cout, ph*pw)

    # ---- Linear(F -> A): reduction against the resident activation ----------
    wl = wlin_ref[...]                                                   # (A*cout, ph*pw)
    logit_cols = []
    for a in range(num_actions):
        wa = wl[a * cout:(a + 1) * cout, :]                              # (cout, ph*pw)
        s = jnp.sum(pooled * wa, axis=1, keepdims=True)                  # (cout, 1)
        logit_cols.append(jnp.sum(s, axis=0, keepdims=True))             # (1, 1)
    logits = jnp.concatenate(logit_cols, axis=1) + blin_ref[...]         # (1, A)

    # ---- softmax(dim=1) ------------------------------------------------------
    m = jnp.max(logits, axis=1, keepdims=True)
    e = jnp.exp(logits - m)
    o_ref[...] = e / jnp.sum(e, axis=1, keepdims=True)


_VMEM = pl.BlockSpec(memory_space=pltpu.MemorySpace.VMEM)
_SMEM = pl.BlockSpec(memory_space=pltpu.MemorySpace.SMEM)


def build_forward(height, width, num_actions):
    ho, wo, ph, pw = _shapes(height, width)
    kern = functools.partial(
        _fused_forward_kernel, cout=CONV_OUT, ho=ho, wo=wo, ph=ph, pw=pw,
        num_actions=num_actions)
    call = pl.pallas_call(
        kern,
        out_shape=jax.ShapeDtypeStruct((1, num_actions), jnp.float32),
        in_specs=[_VMEM, _SMEM, _SMEM, _VMEM, _VMEM],
        out_specs=_VMEM,
    )

    @jax.jit
    def forward(xb, packed):
        x = xb.reshape(height, width).astype(jnp.float32)
        return call(x, packed["w_conv"], packed["b_conv"],
                    packed["w_lin"], packed["b_lin"])

    return forward


# ----------------------------------------------------------------------------
# Parameters: torch-style init + one-time packing into kernel layout.
# ----------------------------------------------------------------------------
def init_params(key, height, width, num_actions):
    ho, wo, ph, pw = _shapes(height, width)
    features = ph * pw * CONV_OUT
    k1, k2, k3, k4 = jax.random.split(key, 4)
    # torch.nn.init.uniform_(weight, -0.05, 0.05); biases use torch defaults.
    w_conv = jax.random.uniform(k1, (CONV_OUT, 1, CONV_K, CONV_K), jnp.float32,
                                -0.05, 0.05)
    b_bound = 1.0 / (1 * CONV_K * CONV_K) ** 0.5
    b_conv = jax.random.uniform(k2, (CONV_OUT,), jnp.float32, -b_bound, b_bound)
    w_lin = jax.random.uniform(k3, (num_actions, features), jnp.float32,
                               -0.05, 0.05)
    l_bound = 1.0 / features ** 0.5
    b_lin = jax.random.uniform(k4, (num_actions,), jnp.float32, -l_bound, l_bound)
    return {"w_conv": w_conv, "b_conv": b_conv, "w_lin": w_lin, "b_lin": b_lin}


def pack_params(params, height, width, num_actions):
    """One-time weight re-layout for the fused kernel (hoisted out of forward)."""
    ho, wo, ph, pw = _shapes(height, width)
    # (cout, 1, K, K) -> tap-major flat vector: idx = (kh*K + kw)*cout + co
    w_conv = params["w_conv"].reshape(CONV_OUT, CONV_K * CONV_K).T.reshape(-1)
    # (A, cout*ph*pw) -> (A*cout, ph*pw): row a*cout+co, col i*pw+j
    w_lin = params["w_lin"].reshape(num_actions * CONV_OUT, ph * pw)
    return {
        "w_conv": jnp.asarray(w_conv, jnp.float32),
        "b_conv": jnp.asarray(params["b_conv"], jnp.float32),
        "w_lin": jnp.asarray(w_lin, jnp.float32),
        "b_lin": jnp.asarray(params["b_lin"].reshape(1, num_actions), jnp.float32),
    }


# ----------------------------------------------------------------------------
# Pure-JAX reference (correctness check only)
# ----------------------------------------------------------------------------
def reference_forward(xb, params, *, height, width):
    x = xb.reshape(1, 1, height, width).astype(jnp.float32)
    y = jax.lax.conv_general_dilated(
        x, params["w_conv"], window_strides=(1, 1), padding="VALID",
        dimension_numbers=("NCHW", "OIHW", "NCHW"))
    y = jax.nn.relu(y + params["b_conv"][None, :, None, None])
    y = jax.lax.reduce_window(
        y, -jnp.inf, jax.lax.max,
        window_dimensions=(1, 1, POOL_K, POOL_K),
        window_strides=(1, 1, POOL_K, POOL_K), padding="VALID")
    flat = y.reshape(1, -1)
    logits = flat @ params["w_lin"].T + params["b_lin"][None, :]
    return jax.nn.softmax(logits, axis=1)


if __name__ == "__main__":
    HEIGHT, WIDTH = 16, 16
    NUM_ACTIONS = 4
    NUM_FRAMES = 1   # AdviceModel asserts num_frames == 1

    key = jax.random.PRNGKey(0)
    kx, kp = jax.random.split(key)
    xb = jax.random.uniform(kx, (HEIGHT, WIDTH), jnp.float32)

    params = init_params(kp, HEIGHT, WIDTH, NUM_ACTIONS)
    packed = pack_params(params, HEIGHT, WIDTH, NUM_ACTIONS)

    forward = build_forward(HEIGHT, WIDTH, NUM_ACTIONS)
    out = jax.block_until_ready(forward(xb, packed))

    ref = reference_forward(xb, params, height=HEIGHT, width=WIDTH)
    assert out.shape == (1, NUM_ACTIONS), out.shape
    assert jnp.allclose(out, ref, rtol=1e-5, atol=1e-5), (out, ref)
    assert jnp.allclose(jnp.sum(out), 1.0, atol=1e-5)

    print("KERNEL_OK")
</pallas_src>

<mosaic_0001>
module attributes {stable_mosaic.version = 11 : i64} {
  func.func @_fused_forward_kernel(%arg0: memref<16x16xf32, #tpu.memory_space<vmem>>, %arg1: memref<125xf32, #tpu.memory_space<smem>>, %arg2: memref<5xf32, #tpu.memory_space<smem>>, %arg3: memref<20x16xf32, #tpu.memory_space<vmem>>, %arg4: memref<1x4xf32, #tpu.memory_space<vmem>>, %arg5: memref<1x4xf32, #tpu.memory_space<vmem>>) attributes {dimension_semantics = [], scalar_prefetch = 0 : i64, scratch_operands = 0 : i64, tpu.core_type = #tpu.core_type<tc>} {
    %c0 = arith.constant 0 : index
    %c0_0 = arith.constant 0 : index
    %0 = vector.load %arg0[%c0, %c0_0] : memref<16x16xf32, #tpu.memory_space<vmem>>, vector<16x16xf32>
    %1 = vector.extract_strided_slice %0 {offsets = [0, 0], sizes = [12, 12], strides = [1, 1]} : vector<16x16xf32> to vector<12x12xf32>
    %2 = vector.extract_strided_slice %0 {offsets = [0, 1], sizes = [12, 12], strides = [1, 1]} : vector<16x16xf32> to vector<12x12xf32>
    %3 = vector.extract_strided_slice %0 {offsets = [0, 2], sizes = [12, 12], strides = [1, 1]} : vector<16x16xf32> to vector<12x12xf32>
    %4 = vector.extract_strided_slice %0 {offsets = [0, 3], sizes = [12, 12], strides = [1, 1]} : vector<16x16xf32> to vector<12x12xf32>
    %5 = vector.extract_strided_slice %0 {offsets = [0, 4], sizes = [12, 12], strides = [1, 1]} : vector<16x16xf32> to vector<12x12xf32>
    %6 = vector.extract_strided_slice %0 {offsets = [1, 0], sizes = [12, 12], strides = [1, 1]} : vector<16x16xf32> to vector<12x12xf32>
    %7 = vector.extract_strided_slice %0 {offsets = [1, 1], sizes = [12, 12], strides = [1, 1]} : vector<16x16xf32> to vector<12x12xf32>
    %8 = vector.extract_strided_slice %0 {offsets = [1, 2], sizes = [12, 12], strides = [1, 1]} : vector<16x16xf32> to vector<12x12xf32>
    %9 = vector.extract_strided_slice %0 {offsets = [1, 3], sizes = [12, 12], strides = [1, 1]} : vector<16x16xf32> to vector<12x12xf32>
    %10 = vector.extract_strided_slice %0 {offsets = [1, 4], sizes = [12, 12], strides = [1, 1]} : vector<16x16xf32> to vector<12x12xf32>
    %11 = vector.extract_strided_slice %0 {offsets = [2, 0], sizes = [12, 12], strides = [1, 1]} : vector<16x16xf32> to vector<12x12xf32>
    %12 = vector.extract_strided_slice %0 {offsets = [2, 1], sizes = [12, 12], strides = [1, 1]} : vector<16x16xf32> to vector<12x12xf32>
    %13 = vector.extract_strided_slice %0 {offsets = [2, 2], sizes = [12, 12], strides = [1, 1]} : vector<16x16xf32> to vector<12x12xf32>
    %14 = vector.extract_strided_slice %0 {offsets = [2, 3], sizes = [12, 12], strides = [1, 1]} : vector<16x16xf32> to vector<12x12xf32>
    %15 = vector.extract_strided_slice %0 {offsets = [2, 4], sizes = [12, 12], strides = [1, 1]} : vector<16x16xf32> to vector<12x12xf32>
    %16 = vector.extract_strided_slice %0 {offsets = [3, 0], sizes = [12, 12], strides = [1, 1]} : vector<16x16xf32> to vector<12x12xf32>
    %17 = vector.extract_strided_slice %0 {offsets = [3, 1], sizes = [12, 12], strides = [1, 1]} : vector<16x16xf32> to vector<12x12xf32>
    %18 = vector.extract_strided_slice %0 {offsets = [3, 2], sizes = [12, 12], strides = [1, 1]} : vector<16x16xf32> to vector<12x12xf32>
    %19 = vector.extract_strided_slice %0 {offsets = [3, 3], sizes = [12, 12], strides = [1, 1]} : vector<16x16xf32> to vector<12x12xf32>
    %20 = vector.extract_strided_slice %0 {offsets = [3, 4], sizes = [12, 12], strides = [1, 1]} : vector<16x16xf32> to vector<12x12xf32>
    %21 = vector.extract_strided_slice %0 {offsets = [4, 0], sizes = [12, 12], strides = [1, 1]} : vector<16x16xf32> to vector<12x12xf32>
    %22 = vector.extract_strided_slice %0 {offsets = [4, 1], sizes = [12, 12], strides = [1, 1]} : vector<16x16xf32> to vector<12x12xf32>
    %23 = vector.extract_strided_slice %0 {offsets = [4, 2], sizes = [12, 12], strides = [1, 1]} : vector<16x16xf32> to vector<12x12xf32>
    %24 = vector.extract_strided_slice %0 {offsets = [4, 3], sizes = [12, 12], strides = [1, 1]} : vector<16x16xf32> to vector<12x12xf32>
    %25 = vector.extract_strided_slice %0 {offsets = [4, 4], sizes = [12, 12], strides = [1, 1]} : vector<16x16xf32> to vector<12x12xf32>
    %cst = arith.constant 0.000000e+00 : f32
    %26 = vector.broadcast %cst : f32 to vector<12x12xf32>
    %c0_1 = arith.constant 0 : index
    %27 = memref.load %arg2[%c0_1] : memref<5xf32, #tpu.memory_space<smem>>
    %28 = vector.broadcast %27 : f32 to vector<12x12xf32>
    %29 = arith.addf %26, %28 : vector<12x12xf32>
    %c0_2 = arith.constant 0 : index
    %30 = memref.load %arg1[%c0_2] : memref<125xf32, #tpu.memory_space<smem>>
    %31 = vector.broadcast %30 : f32 to vector<12x12xf32>
    %32 = arith.mulf %31, %1 : vector<12x12xf32>
    %33 = arith.addf %29, %32 : vector<12x12xf32>
    %c5 = arith.constant 5 : index
    %34 = memref.load %arg1[%c5] : memref<125xf32, #tpu.memory_space<smem>>
    %35 = vector.broadcast %34 : f32 to vector<12x12xf32>
    %36 = arith.mulf %35, %2 : vector<12x12xf32>
    %37 = arith.addf %33, %36 : vector<12x12xf32>
    %c10 = arith.constant 10 : index
    %38 = memref.load %arg1[%c10] : memref<125xf32, #tpu.memory_space<smem>>
    %39 = vector.broadcast %38 : f32 to vector<12x12xf32>
    %40 = arith.mulf %39, %3 : vector<12x12xf32>
    %41 = arith.addf %37, %40 : vector<12x12xf32>
    %c15 = arith.constant 15 : index
    %42 = memref.load %arg1[%c15] : memref<125xf32, #tpu.memory_space<smem>>
    %43 = vector.broadcast %42 : f32 to vector<12x12xf32>
    %44 = arith.mulf %43, %4 : vector<12x12xf32>
    %45 = arith.addf %41, %44 : vector<12x12xf32>
    %c20 = arith.constant 20 : index
    %46 = memref.load %arg1[%c20] : memref<125xf32, #tpu.memory_space<smem>>
    %47 = vector.broadcast %46 : f32 to vector<12x12xf32>
    %48 = arith.mulf %47, %5 : vector<12x12xf32>
    %49 = arith.addf %45, %48 : vector<12x12xf32>
    %c25 = arith.constant 25 : index
    %50 = memref.load %arg1[%c25] : memref<125xf32, #tpu.memory_space<smem>>
    %51 = vector.broadcast %50 : f32 to vector<12x12xf32>
    %52 = arith.mulf %51, %6 : vector<12x12xf32>
    %53 = arith.addf %49, %52 : vector<12x12xf32>
    %c30 = arith.constant 30 : index
    %54 = memref.load %arg1[%c30] : memref<125xf32, #tpu.memory_space<smem>>
    %55 = vector.broadcast %54 : f32 to vector<12x12xf32>
    %56 = arith.mulf %55, %7 : vector<12x12xf32>
    %57 = arith.addf %53, %56 : vector<12x12xf32>
    %c35 = arith.constant 35 : index
    %58 = memref.load %arg1[%c35] : memref<125xf32, #tpu.memory_space<smem>>
    %59 = vector.broadcast %58 : f32 to vector<12x12xf32>
    %60 = arith.mulf %59, %8 : vector<12x12xf32>
    %61 = arith.addf %57, %60 : vector<12x12xf32>
    %c40 = arith.constant 40 : index
    %62 = memref.load %arg1[%c40] : memref<125xf32, #tpu.memory_space<smem>>
    %63 = vector.broadcast %62 : f32 to vector<12x12xf32>
    %64 = arith.mulf %63, %9 : vector<12x12xf32>
    %65 = arith.addf %61, %64 : vector<12x12xf32>
    %c45 = arith.constant 45 : index
    %66 = memref.load %arg1[%c45] : memref<125xf32, #tpu.memory_space<smem>>
    %67 = vector.broadcast %66 : f32 to vector<12x12xf32>
    %68 = arith.mulf %67, %10 : vector<12x12xf32>
    %69 = arith.addf %65, %68 : vector<12x12xf32>
    %c50 = arith.constant 50 : index
    %70 = memref.load %arg1[%c50] : memref<125xf32, #tpu.memory_space<smem>>
    %71 = vector.broadcast %70 : f32 to vector<12x12xf32>
    %72 = arith.mulf %71, %11 : vector<12x12xf32>
    %73 = arith.addf %69, %72 : vector<12x12xf32>
    %c55 = arith.constant 55 : index
    %74 = memref.load %arg1[%c55] : memref<125xf32, #tpu.memory_space<smem>>
    %75 = vector.broadcast %74 : f32 to vector<12x12xf32>
    %76 = arith.mulf %75, %12 : vector<12x12xf32>
    %77 = arith.addf %73, %76 : vector<12x12xf32>
    %c60 = arith.constant 60 : index
    %78 = memref.load %arg1[%c60] : memref<125xf32, #tpu.memory_space<smem>>
    %79 = vector.broadcast %78 : f32 to vector<12x12xf32>
    %80 = arith.mulf %79, %13 : vector<12x12xf32>
    %81 = arith.addf %77, %80 : vector<12x12xf32>
    %c65 = arith.constant 65 : index
    %82 = memref.load %arg1[%c65] : memref<125xf32, #tpu.memory_space<smem>>
    %83 = vector.broadcast %82 : f32 to vector<12x12xf32>
    %84 = arith.mulf %83, %14 : vector<12x12xf32>
    %85 = arith.addf %81, %84 : vector<12x12xf32>
    %c70 = arith.constant 70 : index
    %86 = memref.load %arg1[%c70] : memref<125xf32, #tpu.memory_space<smem>>
    %87 = vector.broadcast %86 : f32 to vector<12x12xf32>
    %88 = arith.mulf %87, %15 : vector<12x12xf32>
    %89 = arith.addf %85, %88 : vector<12x12xf32>
    %c75 = arith.constant 75 : index
    %90 = memref.load %arg1[%c75] : memref<125xf32, #tpu.memory_space<smem>>
    %91 = vector.broadcast %90 : f32 to vector<12x12xf32>
    %92 = arith.mulf %91, %16 : vector<12x12xf32>
    %93 = arith.addf %89, %92 : vector<12x12xf32>
    %c80 = arith.constant 80 : index
    %94 = memref.load %arg1[%c80] : memref<125xf32, #tpu.memory_space<smem>>
    %95 = vector.broadcast %94 : f32 to vector<12x12xf32>
    %96 = arith.mulf %95, %17 : vector<12x12xf32>
    %97 = arith.addf %93, %96 : vector<12x12xf32>
    %c85 = arith.constant 85 : index
    %98 = memref.load %arg1[%c85] : memref<125xf32, #tpu.memory_space<smem>>
    %99 = vector.broadcast %98 : f32 to vector<12x12xf32>
    %100 = arith.mulf %99, %18 : vector<12x12xf32>
    %101 = arith.addf %97, %100 : vector<12x12xf32>
    %c90 = arith.constant 90 : index
    %102 = memref.load %arg1[%c90] : memref<125xf32, #tpu.memory_space<smem>>
    %103 = vector.broadcast %102 : f32 to vector<12x12xf32>
    %104 = arith.mulf %103, %19 : vector<12x12xf32>
    %105 = arith.addf %101, %104 : vector<12x12xf32>
    %c95 = arith.constant 95 : index
    %106 = memref.load %arg1[%c95] : memref<125xf32, #tpu.memory_space<smem>>
    %107 = vector.broadcast %106 : f32 to vector<12x12xf32>
    %108 = arith.mulf %107, %20 : vector<12x12xf32>
    %109 = arith.addf %105, %108 : vector<12x12xf32>
    %c100 = arith.constant 100 : index
    %110 = memref.load %arg1[%c100] : memref<125xf32, #tpu.memory_space<smem>>
    %111 = vector.broadcast %110 : f32 to vector<12x12xf32>
    %112 = arith.mulf %111, %21 : vector<12x12xf32>
    %113 = arith.addf %109, %112 : vector<12x12xf32>
    %c105 = arith.constant 105 : index
    %114 = memref.load %arg1[%c105] : memref<125xf32, #tpu.memory_space<smem>>
    %115 = vector.broadcast %114 : f32 to vector<12x12xf32>
    %116 = arith.mulf %115, %22 : vector<12x12xf32>
    %117 = arith.addf %113, %116 : vector<12x12xf32>
    %c110 = arith.constant 110 : index
    %118 = memref.load %arg1[%c110] : memref<125xf32, #tpu.memory_space<smem>>
    %119 = vector.broadcast %118 : f32 to vector<12x12xf32>
    %120 = arith.mulf %119, %23 : vector<12x12xf32>
    %121 = arith.addf %117, %120 : vector<12x12xf32>
    %c115 = arith.constant 115 : index
    %122 = memref.load %arg1[%c115] : memref<125xf32, #tpu.memory_space<smem>>
    %123 = vector.broadcast %122 : f32 to vector<12x12xf32>
    %124 = arith.mulf %123, %24 : vector<12x12xf32>
    %125 = arith.addf %121, %124 : vector<12x12xf32>
    %c120 = arith.constant 120 : index
    %126 = memref.load %arg1[%c120] : memref<125xf32, #tpu.memory_space<smem>>
    %127 = vector.broadcast %126 : f32 to vector<12x12xf32>
    %128 = arith.mulf %127, %25 : vector<12x12xf32>
    %129 = arith.addf %125, %128 : vector<12x12xf32>
    %cst_3 = arith.constant 0.000000e+00 : f32
    %130 = vector.broadcast %cst_3 : f32 to vector<12x12xf32>
    %131 = arith.maximumf %129, %130 : vector<12x12xf32>
    %cst_4 = arith.constant 0.000000e+00 : f32
    %132 = vector.broadcast %cst_4 : f32 to vector<12x12xf32>
    %c1 = arith.constant 1 : index
    %133 = memref.load %arg2[%c1] : memref<5xf32, #tpu.memory_space<smem>>
    %134 = vector.broadcast %133 : f32 to vector<12x12xf32>
    %135 = arith.addf %132, %134 : vector<12x12xf32>
    %c1_5 = arith.constant 1 : index
    %136 = memref.load %arg1[%c1_5] : memref<125xf32, #tpu.memory_space<smem>>
    %137 = vector.broadcast %136 : f32 to vector<12x12xf32>
    %138 = arith.mulf %137, %1 : vector<12x12xf32>
    %139 = arith.addf %135, %138 : vector<12x12xf32>
    %c6 = arith.constant 6 : index
    %140 = memref.load %arg1[%c6] : memref<125xf32, #tpu.memory_space<smem>>
    %141 = vector.broadcast %140 : f32 to vector<12x12xf32>
    %142 = arith.mulf %141, %2 : vector<12x12xf32>
    %143 = arith.addf %139, %142 : vector<12x12xf32>
    %c11 = arith.constant 11 : index
    %144 = memref.load %arg1[%c11] : memref<125xf32, #tpu.memory_space<smem>>
    %145 = vector.broadcast %144 : f32 to vector<12x12xf32>
    %146 = arith.mulf %145, %3 : vector<12x12xf32>
    %147 = arith.addf %143, %146 : vector<12x12xf32>
    %c16 = arith.constant 16 : index
    %148 = memref.load %arg1[%c16] : memref<125xf32, #tpu.memory_space<smem>>
    %149 = vector.broadcast %148 : f32 to vector<12x12xf32>
    %150 = arith.mulf %149, %4 : vector<12x12xf32>
    %151 = arith.addf %147, %150 : vector<12x12xf32>
    %c21 = arith.constant 21 : index
    %152 = memref.load %arg1[%c21] : memref<125xf32, #tpu.memory_space<smem>>
    %153 = vector.broadcast %152 : f32 to vector<12x12xf32>
    %154 = arith.mulf %153, %5 : vector<12x12xf32>
    %155 = arith.addf %151, %154 : vector<12x12xf32>
    %c26 = arith.constant 26 : index
    %156 = memref.load %arg1[%c26] : memref<125xf32, #tpu.memory_space<smem>>
    %157 = vector.broadcast %156 : f32 to vector<12x12xf32>
    %158 = arith.mulf %157, %6 : vector<12x12xf32>
    %159 = arith.addf %155, %158 : vector<12x12xf32>
    %c31 = arith.constant 31 : index
    %160 = memref.load %arg1[%c31] : memref<125xf32, #tpu.memory_space<smem>>
    %161 = vector.broadcast %160 : f32 to vector<12x12xf32>
    %162 = arith.mulf %161, %7 : vector<12x12xf32>
    %163 = arith.addf %159, %162 : vector<12x12xf32>
    %c36 = arith.constant 36 : index
    %164 = memref.load %arg1[%c36] : memref<125xf32, #tpu.memory_space<smem>>
    %165 = vector.broadcast %164 : f32 to vector<12x12xf32>
    %166 = arith.mulf %165, %8 : vector<12x12xf32>
    %167 = arith.addf %163, %166 : vector<12x12xf32>
    %c41 = arith.constant 41 : index
    %168 = memref.load %arg1[%c41] : memref<125xf32, #tpu.memory_space<smem>>
    %169 = vector.broadcast %168 : f32 to vector<12x12xf32>
    %170 = arith.mulf %169, %9 : vector<12x12xf32>
    %171 = arith.addf %167, %170 : vector<12x12xf32>
    %c46 = arith.constant 46 : index
    %172 = memref.load %arg1[%c46] : memref<125xf32, #tpu.memory_space<smem>>
    %173 = vector.broadcast %172 : f32 to vector<12x12xf32>
    %174 = arith.mulf %173, %10 : vector<12x12xf32>
    %175 = arith.addf %171, %174 : vector<12x12xf32>
    %c51 = arith.constant 51 : index
    %176 = memref.load %arg1[%c51] : memref<125xf32, #tpu.memory_space<smem>>
    %177 = vector.broadcast %176 : f32 to vector<12x12xf32>
    %178 = arith.mulf %177, %11 : vector<12x12xf32>
    %179 = arith.addf %175, %178 : vector<12x12xf32>
    %c56 = arith.constant 56 : index
    %180 = memref.load %arg1[%c56] : memref<125xf32, #tpu.memory_space<smem>>
    %181 = vector.broadcast %180 : f32 to vector<12x12xf32>
    %182 = arith.mulf %181, %12 : vector<12x12xf32>
    %183 = arith.addf %179, %182 : vector<12x12xf32>
    %c61 = arith.constant 61 : index
    %184 = memref.load %arg1[%c61] : memref<125xf32, #tpu.memory_space<smem>>
    %185 = vector.broadcast %184 : f32 to vector<12x12xf32>
    %186 = arith.mulf %185, %13 : vector<12x12xf32>
    %187 = arith.addf %183, %186 : vector<12x12xf32>
    %c66 = arith.constant 66 : index
    %188 = memref.load %arg1[%c66] : memref<125xf32, #tpu.memory_space<smem>>
    %189 = vector.broadcast %188 : f32 to vector<12x12xf32>
    %190 = arith.mulf %189, %14 : vector<12x12xf32>
    %191 = arith.addf %187, %190 : vector<12x12xf32>
    %c71 = arith.constant 71 : index
    %192 = memref.load %arg1[%c71] : memref<125xf32, #tpu.memory_space<smem>>
    %193 = vector.broadcast %192 : f32 to vector<12x12xf32>
    %194 = arith.mulf %193, %15 : vector<12x12xf32>
    %195 = arith.addf %191, %194 : vector<12x12xf32>
    %c76 = arith.constant 76 : index
    %196 = memref.load %arg1[%c76] : memref<125xf32, #tpu.memory_space<smem>>
    %197 = vector.broadcast %196 : f32 to vector<12x12xf32>
    %198 = arith.mulf %197, %16 : vector<12x12xf32>
    %199 = arith.addf %195, %198 : vector<12x12xf32>
    %c81 = arith.constant 81 : index
    %200 = memref.load %arg1[%c81] : memref<125xf32, #tpu.memory_space<smem>>
    %201 = vector.broadcast %200 : f32 to vector<12x12xf32>
    %202 = arith.mulf %201, %17 : vector<12x12xf32>
    %203 = arith.addf %199, %202 : vector<12x12xf32>
    %c86 = arith.constant 86 : index
    %204 = memref.load %arg1[%c86] : memref<125xf32, #tpu.memory_space<smem>>
    %205 = vector.broadcast %204 : f32 to vector<12x12xf32>
    %206 = arith.mulf %205, %18 : vector<12x12xf32>
    %207 = arith.addf %203, %206 : vector<12x12xf32>
    %c91 = arith.constant 91 : index
    %208 = memref.load %arg1[%c91] : memref<125xf32, #tpu.memory_space<smem>>
    %209 = vector.broadcast %208 : f32 to vector<12x12xf32>
    %210 = arith.mulf %209, %19 : vector<12x12xf32>
    %211 = arith.addf %207, %210 : vector<12x12xf32>
    %c96 = arith.constant 96 : index
    %212 = memref.load %arg1[%c96] : memref<125xf32, #tpu.memory_space<smem>>
    %213 = vector.broadcast %212 : f32 to vector<12x12xf32>
    %214 = arith.mulf %213, %20 : vector<12x12xf32>
    %215 = arith.addf %211, %214 : vector<12x12xf32>
    %c101 = arith.constant 101 : index
    %216 = memref.load %arg1[%c101] : memref<125xf32, #tpu.memory_space<smem>>
    %217 = vector.broadcast %216 : f32 to vector<12x12xf32>
    %218 = arith.mulf %217, %21 : vector<12x12xf32>
    %219 = arith.addf %215, %218 : vector<12x12xf32>
    %c106 = arith.constant 106 : index
    %220 = memref.load %arg1[%c106] : memref<125xf32, #tpu.memory_space<smem>>
    %221 = vector.broadcast %220 : f32 to vector<12x12xf32>
    %222 = arith.mulf %221, %22 : vector<12x12xf32>
    %223 = arith.addf %219, %222 : vector<12x12xf32>
    %c111 = arith.constant 111 : index
    %224 = memref.load %arg1[%c111] : memref<125xf32, #tpu.memory_space<smem>>
    %225 = vector.broadcast %224 : f32 to vector<12x12xf32>
    %226 = arith.mulf %225, %23 : vector<12x12xf32>
    %227 = arith.addf %223, %226 : vector<12x12xf32>
    %c116 = arith.constant 116 : index
    %228 = memref.load %arg1[%c116] : memref<125xf32, #tpu.memory_space<smem>>
    %229 = vector.broadcast %228 : f32 to vector<12x12xf32>
    %230 = arith.mulf %229, %24 : vector<12x12xf32>
    %231 = arith.addf %227, %230 : vector<12x12xf32>
    %c121 = arith.constant 121 : index
    %232 = memref.load %arg1[%c121] : memref<125xf32, #tpu.memory_space<smem>>
    %233 = vector.broadcast %232 : f32 to vector<12x12xf32>
    %234 = arith.mulf %233, %25 : vector<12x12xf32>
    %235 = arith.addf %231, %234 : vector<12x12xf32>
    %cst_6 = arith.constant 0.000000e+00 : f32
    %236 = vector.broadcast %cst_6 : f32 to vector<12x12xf32>
    %237 = arith.maximumf %235, %236 : vector<12x12xf32>
    %cst_7 = arith.constant 0.000000e+00 : f32
    %238 = vector.broadcast %cst_7 : f32 to vector<12x12xf32>
    %c2 = arith.constant 2 : index
    %239 = memref.load %arg2[%c2] : memref<5xf32, #tpu.memory_space<smem>>
    %240 = vector.broadcast %239 : f32 to vector<12x12xf32>
    %241 = arith.addf %238, %240 : vector<12x12xf32>
    %c2_8 = arith.constant 2 : index
    %242 = memref.load %arg1[%c2_8] : memref<125xf32, #tpu.memory_space<smem>>
    %243 = vector.broadcast %242 : f32 to vector<12x12xf32>
    %244 = arith.mulf %243, %1 : vector<12x12xf32>
    %245 = arith.addf %241, %244 : vector<12x12xf32>
    %c7 = arith.constant 7 : index
    %246 = memref.load %arg1[%c7] : memref<125xf32, #tpu.memory_space<smem>>
    %247 = vector.broadcast %246 : f32 to vector<12x12xf32>
    %248 = arith.mulf %247, %2 : vector<12x12xf32>
    %249 = arith.addf %245, %248 : vector<12x12xf32>
    %c12 = arith.constant 12 : index
    %250 = memref.load %arg1[%c12] : memref<125xf32, #tpu.memory_space<smem>>
    %251 = vector.broadcast %250 : f32 to vector<12x12xf32>
    %252 = arith.mulf %251, %3 : vector<12x12xf32>
    %253 = arith.addf %249, %252 : vector<12x12xf32>
    %c17 = arith.constant 17 : index
    %254 = memref.load %arg1[%c17] : memref<125xf32, #tpu.memory_space<smem>>
    %255 = vector.broadcast %254 : f32 to vector<12x12xf32>
    %256 = arith.mulf %255, %4 : vector<12x12xf32>
    %257 = arith.addf %253, %256 : vector<12x12xf32>
    %c22 = arith.constant 22 : index
    %258 = memref.load %arg1[%c22] : memref<125xf32, #tpu.memory_space<smem>>
    %259 = vector.broadcast %258 : f32 to vector<12x12xf32>
    %260 = arith.mulf %259, %5 : vector<12x12xf32>
    %261 = arith.addf %257, %260 : vector<12x12xf32>
    %c27 = arith.constant 27 : index
    %262 = memref.load %arg1[%c27] : memref<125xf32, #tpu.memory_space<smem>>
    %263 = vector.broadcast %262 : f32 to vector<12x12xf32>
    %264 = arith.mulf %263, %6 : vector<12x12xf32>
    %265 = arith.addf %261, %264 : vector<12x12xf32>
    %c32 = arith.constant 32 : index
    %266 = memref.load %arg1[%c32] : memref<125xf32, #tpu.memory_space<smem>>
    %267 = vector.broadcast %266 : f32 to vector<12x12xf32>
    %268 = arith.mulf %267, %7 : vector<12x12xf32>
    %269 = arith.addf %265, %268 : vector<12x12xf32>
    %c37 = arith.constant 37 : index
    %270 = memref.load %arg1[%c37] : memref<125xf32, #tpu.memory_space<smem>>
    %271 = vector.broadcast %270 : f32 to vector<12x12xf32>
    %272 = arith.mulf %271, %8 : vector<12x12xf32>
    %273 = arith.addf %269, %272 : vector<12x12xf32>
    %c42 = arith.constant 42 : index
    %274 = memref.load %arg1[%c42] : memref<125xf32, #tpu.memory_space<smem>>
    %275 = vector.broadcast %274 : f32 to vector<12x12xf32>
    %276 = arith.mulf %275, %9 : vector<12x12xf32>
    %277 = arith.addf %273, %276 : vector<12x12xf32>
    %c47 = arith.constant 47 : index
    %278 = memref.load %arg1[%c47] : memref<125xf32, #tpu.memory_space<smem>>
    %279 = vector.broadcast %278 : f32 to vector<12x12xf32>
    %280 = arith.mulf %279, %10 : vector<12x12xf32>
    %281 = arith.addf %277, %280 : vector<12x12xf32>
    %c52 = arith.constant 52 : index
    %282 = memref.load %arg1[%c52] : memref<125xf32, #tpu.memory_space<smem>>
    %283 = vector.broadcast %282 : f32 to vector<12x12xf32>
    %284 = arith.mulf %283, %11 : vector<12x12xf32>
    %285 = arith.addf %281, %284 : vector<12x12xf32>
    %c57 = arith.constant 57 : index
    %286 = memref.load %arg1[%c57] : memref<125xf32, #tpu.memory_space<smem>>
    %287 = vector.broadcast %286 : f32 to vector<12x12xf32>
    %288 = arith.mulf %287, %12 : vector<12x12xf32>
    %289 = arith.addf %285, %288 : vector<12x12xf32>
    %c62 = arith.constant 62 : index
    %290 = memref.load %arg1[%c62] : memref<125xf32, #tpu.memory_space<smem>>
    %291 = vector.broadcast %290 : f32 to vector<12x12xf32>
    %292 = arith.mulf %291, %13 : vector<12x12xf32>
    %293 = arith.addf %289, %292 : vector<12x12xf32>
    %c67 = arith.constant 67 : index
    %294 = memref.load %arg1[%c67] : memref<125xf32, #tpu.memory_space<smem>>
    %295 = vector.broadcast %294 : f32 to vector<12x12xf32>
    %296 = arith.mulf %295, %14 : vector<12x12xf32>
    %297 = arith.addf %293, %296 : vector<12x12xf32>
    %c72 = arith.constant 72 : index
    %298 = memref.load %arg1[%c72] : memref<125xf32, #tpu.memory_space<smem>>
    %299 = vector.broadcast %298 : f32 to vector<12x12xf32>
    %300 = arith.mulf %299, %15 : vector<12x12xf32>
    %301 = arith.addf %297, %300 : vector<12x12xf32>
    %c77 = arith.constant 77 : index
    %302 = memref.load %arg1[%c77] : memref<125xf32, #tpu.memory_space<smem>>
    %303 = vector.broadcast %302 : f32 to vector<12x12xf32>
    %304 = arith.mulf %303, %16 : vector<12x12xf32>
    %305 = arith.addf %301, %304 : vector<12x12xf32>
    %c82 = arith.constant 82 : index
    %306 = memref.load %arg1[%c82] : memref<125xf32, #tpu.memory_space<smem>>
    %307 = vector.broadcast %306 : f32 to vector<12x12xf32>
    %308 = arith.mulf %307, %17 : vector<12x12xf32>
    %309 = arith.addf %305, %308 : vector<12x12xf32>
    %c87 = arith.constant 87 : index
    %310 = memref.load %arg1[%c87] : memref<125xf32, #tpu.memory_space<smem>>
    %311 = vector.broadcast %310 : f32 to vector<12x12xf32>
    %312 = arith.mulf %311, %18 : vector<12x12xf32>
    %313 = arith.addf %309, %312 : vector<12x12xf32>
    %c92 = arith.constant 92 : index
    %314 = memref.load %arg1[%c92] : memref<125xf32, #tpu.memory_space<smem>>
    %315 = vector.broadcast %314 : f32 to vector<12x12xf32>
    %316 = arith.mulf %315, %19 : vector<12x12xf32>
    %317 = arith.addf %313, %316 : vector<12x12xf32>
    %c97 = arith.constant 97 : index
    %318 = memref.load %arg1[%c97] : memref<125xf32, #tpu.memory_space<smem>>
    %319 = vector.broadcast %318 : f32 to vector<12x12xf32>
    %320 = arith.mulf %319, %20 : vector<12x12xf32>
    %321 = arith.addf %317, %320 : vector<12x12xf32>
    %c102 = arith.constant 102 : index
    %322 = memref.load %arg1[%c102] : memref<125xf32, #tpu.memory_space<smem>>
    %323 = vector.broadcast %322 : f32 to vector<12x12xf32>
    %324 = arith.mulf %323, %21 : vector<12x12xf32>
    %325 = arith.addf %321, %324 : vector<12x12xf32>
    %c107 = arith.constant 107 : index
    %326 = memref.load %arg1[%c107] : memref<125xf32, #tpu.memory_space<smem>>
    %327 = vector.broadcast %326 : f32 to vector<12x12xf32>
    %328 = arith.mulf %327, %22 : vector<12x12xf32>
    %329 = arith.addf %325, %328 : vector<12x12xf32>
    %c112 = arith.constant 112 : index
    %330 = memref.load %arg1[%c112] : memref<125xf32, #tpu.memory_space<smem>>
    %331 = vector.broadcast %330 : f32 to vector<12x12xf32>
    %332 = arith.mulf %331, %23 : vector<12x12xf32>
    %333 = arith.addf %329, %332 : vector<12x12xf32>
    %c117 = arith.constant 117 : index
    %334 = memref.load %arg1[%c117] : memref<125xf32, #tpu.memory_space<smem>>
    %335 = vector.broadcast %334 : f32 to vector<12x12xf32>
    %336 = arith.mulf %335, %24 : vector<12x12xf32>
    %337 = arith.addf %333, %336 : vector<12x12xf32>
    %c122 = arith.constant 122 : index
    %338 = memref.load %arg1[%c122] : memref<125xf32, #tpu.memory_space<smem>>
    %339 = vector.broadcast %338 : f32 to vector<12x12xf32>
    %340 = arith.mulf %339, %25 : vector<12x12xf32>
    %341 = arith.addf %337, %340 : vector<12x12xf32>
    %cst_9 = arith.constant 0.000000e+00 : f32
    %342 = vector.broadcast %cst_9 : f32 to vector<12x12xf32>
    %343 = arith.maximumf %341, %342 : vector<12x12xf32>
    %cst_10 = arith.constant 0.000000e+00 : f32
    %344 = vector.broadcast %cst_10 : f32 to vector<12x12xf32>
    %c3 = arith.constant 3 : index
    %345 = memref.load %arg2[%c3] : memref<5xf32, #tpu.memory_space<smem>>
    %346 = vector.broadcast %345 : f32 to vector<12x12xf32>
    %347 = arith.addf %344, %346 : vector<12x12xf32>
    %c3_11 = arith.constant 3 : index
    %348 = memref.load %arg1[%c3_11] : memref<125xf32, #tpu.memory_space<smem>>
    %349 = vector.broadcast %348 : f32 to vector<12x12xf32>
    %350 = arith.mulf %349, %1 : vector<12x12xf32>
    %351 = arith.addf %347, %350 : vector<12x12xf32>
    %c8 = arith.constant 8 : index
    %352 = memref.load %arg1[%c8] : memref<125xf32, #tpu.memory_space<smem>>
    %353 = vector.broadcast %352 : f32 to vector<12x12xf32>
    %354 = arith.mulf %353, %2 : vector<12x12xf32>
    %355 = arith.addf %351, %354 : vector<12x12xf32>
    %c13 = arith.constant 13 : index
    %356 = memref.load %arg1[%c13] : memref<125xf32, #tpu.memory_space<smem>>
    %357 = vector.broadcast %356 : f32 to vector<12x12xf32>
    %358 = arith.mulf %357, %3 : vector<12x12xf32>
    %359 = arith.addf %355, %358 : vector<12x12xf32>
    %c18 = arith.constant 18 : index
    %360 = memref.load %arg1[%c18] : memref<125xf32, #tpu.memory_space<smem>>
    %361 = vector.broadcast %360 : f32 to vector<12x12xf32>
    %362 = arith.mulf %361, %4 : vector<12x12xf32>
    %363 = arith.addf %359, %362 : vector<12x12xf32>
    %c23 = arith.constant 23 : index
    %364 = memref.load %arg1[%c23] : memref<125xf32, #tpu.memory_space<smem>>
    %365 = vector.broadcast %364 : f32 to vector<12x12xf32>
    %366 = arith.mulf %365, %5 : vector<12x12xf32>
    %367 = arith.addf %363, %366 : vector<12x12xf32>
    %c28 = arith.constant 28 : index
    %368 = memref.load %arg1[%c28] : memref<125xf32, #tpu.memory_space<smem>>
    %369 = vector.broadcast %368 : f32 to vector<12x12xf32>
    %370 = arith.mulf %369, %6 : vector<12x12xf32>
    %371 = arith.addf %367, %370 : vector<12x12xf32>
    %c33 = arith.constant 33 : index
    %372 = memref.load %arg1[%c33] : memref<125xf32, #tpu.memory_space<smem>>
    %373 = vector.broadcast %372 : f32 to vector<12x12xf32>
    %374 = arith.mulf %373, %7 : vector<12x12xf32>
    %375 = arith.addf %371, %374 : vector<12x12xf32>
    %c38 = arith.constant 38 : index
    %376 = memref.load %arg1[%c38] : memref<125xf32, #tpu.memory_space<smem>>
    %377 = vector.broadcast %376 : f32 to vector<12x12xf32>
    %378 = arith.mulf %377, %8 : vector<12x12xf32>
    %379 = arith.addf %375, %378 : vector<12x12xf32>
    %c43 = arith.constant 43 : index
    %380 = memref.load %arg1[%c43] : memref<125xf32, #tpu.memory_space<smem>>
    %381 = vector.broadcast %380 : f32 to vector<12x12xf32>
    %382 = arith.mulf %381, %9 : vector<12x12xf32>
    %383 = arith.addf %379, %382 : vector<12x12xf32>
    %c48 = arith.constant 48 : index
    %384 = memref.load %arg1[%c48] : memref<125xf32, #tpu.memory_space<smem>>
    %385 = vector.broadcast %384 : f32 to vector<12x12xf32>
    %386 = arith.mulf %385, %10 : vector<12x12xf32>
    %387 = arith.addf %383, %386 : vector<12x12xf32>
    %c53 = arith.constant 53 : index
    %388 = memref.load %arg1[%c53] : memref<125xf32, #tpu.memory_space<smem>>
    %389 = vector.broadcast %388 : f32 to vector<12x12xf32>
    %390 = arith.mulf %389, %11 : vector<12x12xf32>
    %391 = arith.addf %387, %390 : vector<12x12xf32>
    %c58 = arith.constant 58 : index
    %392 = memref.load %arg1[%c58] : memref<125xf32, #tpu.memory_space<smem>>
    %393 = vector.broadcast %392 : f32 to vector<12x12xf32>
    %394 = arith.mulf %393, %12 : vector<12x12xf32>
    %395 = arith.addf %391, %394 : vector<12x12xf32>
    %c63 = arith.constant 63 : index
    %396 = memref.load %arg1[%c63] : memref<125xf32, #tpu.memory_space<smem>>
    %397 = vector.broadcast %396 : f32 to vector<12x12xf32>
    %398 = arith.mulf %397, %13 : vector<12x12xf32>
    %399 = arith.addf %395, %398 : vector<12x12xf32>
    %c68 = arith.constant 68 : index
    %400 = memref.load %arg1[%c68] : memref<125xf32, #tpu.memory_space<smem>>
    %401 = vector.broadcast %400 : f32 to vector<12x12xf32>
    %402 = arith.mulf %401, %14 : vector<12x12xf32>
    %403 = arith.addf %399, %402 : vector<12x12xf32>
    %c73 = arith.constant 73 : index
    %404 = memref.load %arg1[%c73] : memref<125xf32, #tpu.memory_space<smem>>
    %405 = vector.broadcast %404 : f32 to vector<12x12xf32>
    %406 = arith.mulf %405, %15 : vector<12x12xf32>
    %407 = arith.addf %403, %406 : vector<12x12xf32>
    %c78 = arith.constant 78 : index
    %408 = memref.load %arg1[%c78] : memref<125xf32, #tpu.memory_space<smem>>
    %409 = vector.broadcast %408 : f32 to vector<12x12xf32>
    %410 = arith.mulf %409, %16 : vector<12x12xf32>
    %411 = arith.addf %407, %410 : vector<12x12xf32>
    %c83 = arith.constant 83 : index
    %412 = memref.load %arg1[%c83] : memref<125xf32, #tpu.memory_space<smem>>
    %413 = vector.broadcast %412 : f32 to vector<12x12xf32>
    %414 = arith.mulf %413, %17 : vector<12x12xf32>
    %415 = arith.addf %411, %414 : vector<12x12xf32>
    %c88 = arith.constant 88 : index
    %416 = memref.load %arg1[%c88] : memref<125xf32, #tpu.memory_space<smem>>
    %417 = vector.broadcast %416 : f32 to vector<12x12xf32>
    %418 = arith.mulf %417, %18 : vector<12x12xf32>
    %419 = arith.addf %415, %418 : vector<12x12xf32>
    %c93 = arith.constant 93 : index
    %420 = memref.load %arg1[%c93] : memref<125xf32, #tpu.memory_space<smem>>
    %421 = vector.broadcast %420 : f32 to vector<12x12xf32>
    %422 = arith.mulf %421, %19 : vector<12x12xf32>
    %423 = arith.addf %419, %422 : vector<12x12xf32>
    %c98 = arith.constant 98 : index
    %424 = memref.load %arg1[%c98] : memref<125xf32, #tpu.memory_space<smem>>
    %425 = vector.broadcast %424 : f32 to vector<12x12xf32>
    %426 = arith.mulf %425, %20 : vector<12x12xf32>
    %427 = arith.addf %423, %426 : vector<12x12xf32>
    %c103 = arith.constant 103 : index
    %428 = memref.load %arg1[%c103] : memref<125xf32, #tpu.memory_space<smem>>
    %429 = vector.broadcast %428 : f32 to vector<12x12xf32>
    %430 = arith.mulf %429, %21 : vector<12x12xf32>
    %431 = arith.addf %427, %430 : vector<12x12xf32>
    %c108 = arith.constant 108 : index
    %432 = memref.load %arg1[%c108] : memref<125xf32, #tpu.memory_space<smem>>
    %433 = vector.broadcast %432 : f32 to vector<12x12xf32>
    %434 = arith.mulf %433, %22 : vector<12x12xf32>
    %435 = arith.addf %431, %434 : vector<12x12xf32>
    %c113 = arith.constant 113 : index
    %436 = memref.load %arg1[%c113] : memref<125xf32, #tpu.memory_space<smem>>
    %437 = vector.broadcast %436 : f32 to vector<12x12xf32>
    %438 = arith.mulf %437, %23 : vector<12x12xf32>
    %439 = arith.addf %435, %438 : vector<12x12xf32>
    %c118 = arith.constant 118 : index
    %440 = memref.load %arg1[%c118] : memref<125xf32, #tpu.memory_space<smem>>
    %441 = vector.broadcast %440 : f32 to vector<12x12xf32>
    %442 = arith.mulf %441, %24 : vector<12x12xf32>
    %443 = arith.addf %439, %442 : vector<12x12xf32>
    %c123 = arith.constant 123 : index
    %444 = memref.load %arg1[%c123] : memref<125xf32, #tpu.memory_space<smem>>
    %445 = vector.broadcast %444 : f32 to vector<12x12xf32>
    %446 = arith.mulf %445, %25 : vector<12x12xf32>
    %447 = arith.addf %443, %446 : vector<12x12xf32>
    %cst_12 = arith.constant 0.000000e+00 : f32
    %448 = vector.broadcast %cst_12 : f32 to vector<12x12xf32>
    %449 = arith.maximumf %447, %448 : vector<12x12xf32>
    %cst_13 = arith.constant 0.000000e+00 : f32
    %450 = vector.broadcast %cst_13 : f32 to vector<12x12xf32>
    %c4 = arith.constant 4 : index
    %451 = memref.load %arg2[%c4] : memref<5xf32, #tpu.memory_space<smem>>
    %452 = vector.broadcast %451 : f32 to vector<12x12xf32>
    %453 = arith.addf %450, %452 : vector<12x12xf32>
    %c4_14 = arith.constant 4 : index
    %454 = memref.load %arg1[%c4_14] : memref<125xf32, #tpu.memory_space<smem>>
    %455 = vector.broadcast %454 : f32 to vector<12x12xf32>
    %456 = arith.mulf %455, %1 : vector<12x12xf32>
    %457 = arith.addf %453, %456 : vector<12x12xf32>
    %c9 = arith.constant 9 : index
    %458 = memref.load %arg1[%c9] : memref<125xf32, #tpu.memory_space<smem>>
    %459 = vector.broadcast %458 : f32 to vector<12x12xf32>
    %460 = arith.mulf %459, %2 : vector<12x12xf32>
    %461 = arith.addf %457, %460 : vector<12x12xf32>
    %c14 = arith.constant 14 : index
    %462 = memref.load %arg1[%c14] : memref<125xf32, #tpu.memory_space<smem>>
    %463 = vector.broadcast %462 : f32 to vector<12x12xf32>
    %464 = arith.mulf %463, %3 : vector<12x12xf32>
    %465 = arith.addf %461, %464 : vector<12x12xf32>
    %c19 = arith.constant 19 : index
    %466 = memref.load %arg1[%c19] : memref<125xf32, #tpu.memory_space<smem>>
    %467 = vector.broadcast %466 : f32 to vector<12x12xf32>
    %468 = arith.mulf %467, %4 : vector<12x12xf32>
    %469 = arith.addf %465, %468 : vector<12x12xf32>
    %c24 = arith.constant 24 : index
    %470 = memref.load %arg1[%c24] : memref<125xf32, #tpu.memory_space<smem>>
    %471 = vector.broadcast %470 : f32 to vector<12x12xf32>
    %472 = arith.mulf %471, %5 : vector<12x12xf32>
    %473 = arith.addf %469, %472 : vector<12x12xf32>
    %c29 = arith.constant 29 : index
    %474 = memref.load %arg1[%c29] : memref<125xf32, #tpu.memory_space<smem>>
    %475 = vector.broadcast %474 : f32 to vector<12x12xf32>
    %476 = arith.mulf %475, %6 : vector<12x12xf32>
    %477 = arith.addf %473, %476 : vector<12x12xf32>
    %c34 = arith.constant 34 : index
    %478 = memref.load %arg1[%c34] : memref<125xf32, #tpu.memory_space<smem>>
    %479 = vector.broadcast %478 : f32 to vector<12x12xf32>
    %480 = arith.mulf %479, %7 : vector<12x12xf32>
    %481 = arith.addf %477, %480 : vector<12x12xf32>
    %c39 = arith.constant 39 : index
    %482 = memref.load %arg1[%c39] : memref<125xf32, #tpu.memory_space<smem>>
    %483 = vector.broadcast %482 : f32 to vector<12x12xf32>
    %484 = arith.mulf %483, %8 : vector<12x12xf32>
    %485 = arith.addf %481, %484 : vector<12x12xf32>
    %c44 = arith.constant 44 : index
    %486 = memref.load %arg1[%c44] : memref<125xf32, #tpu.memory_space<smem>>
    %487 = vector.broadcast %486 : f32 to vector<12x12xf32>
    %488 = arith.mulf %487, %9 : vector<12x12xf32>
    %489 = arith.addf %485, %488 : vector<12x12xf32>
    %c49 = arith.constant 49 : index
    %490 = memref.load %arg1[%c49] : memref<125xf32, #tpu.memory_space<smem>>
    %491 = vector.broadcast %490 : f32 to vector<12x12xf32>
    %492 = arith.mulf %491, %10 : vector<12x12xf32>
    %493 = arith.addf %489, %492 : vector<12x12xf32>
    %c54 = arith.constant 54 : index
    %494 = memref.load %arg1[%c54] : memref<125xf32, #tpu.memory_space<smem>>
    %495 = vector.broadcast %494 : f32 to vector<12x12xf32>
    %496 = arith.mulf %495, %11 : vector<12x12xf32>
    %497 = arith.addf %493, %496 : vector<12x12xf32>
    %c59 = arith.constant 59 : index
    %498 = memref.load %arg1[%c59] : memref<125xf32, #tpu.memory_space<smem>>
    %499 = vector.broadcast %498 : f32 to vector<12x12xf32>
    %500 = arith.mulf %499, %12 : vector<12x12xf32>
    %501 = arith.addf %497, %500 : vector<12x12xf32>
    %c64 = arith.constant 64 : index
    %502 = memref.load %arg1[%c64] : memref<125xf32, #tpu.memory_space<smem>>
    %503 = vector.broadcast %502 : f32 to vector<12x12xf32>
    %504 = arith.mulf %503, %13 : vector<12x12xf32>
    %505 = arith.addf %501, %504 : vector<12x12xf32>
    %c69 = arith.constant 69 : index
    %506 = memref.load %arg1[%c69] : memref<125xf32, #tpu.memory_space<smem>>
    %507 = vector.broadcast %506 : f32 to vector<12x12xf32>
    %508 = arith.mulf %507, %14 : vector<12x12xf32>
    %509 = arith.addf %505, %508 : vector<12x12xf32>
    %c74 = arith.constant 74 : index
    %510 = memref.load %arg1[%c74] : memref<125xf32, #tpu.memory_space<smem>>
    %511 = vector.broadcast %510 : f32 to vector<12x12xf32>
    %512 = arith.mulf %511, %15 : vector<12x12xf32>
    %513 = arith.addf %509, %512 : vector<12x12xf32>
    %c79 = arith.constant 79 : index
    %514 = memref.load %arg1[%c79] : memref<125xf32, #tpu.memory_space<smem>>
    %515 = vector.broadcast %514 : f32 to vector<12x12xf32>
    %516 = arith.mulf %515, %16 : vector<12x12xf32>
    %517 = arith.addf %513, %516 : vector<12x12xf32>
    %c84 = arith.constant 84 : index
    %518 = memref.load %arg1[%c84] : memref<125xf32, #tpu.memory_space<smem>>
    %519 = vector.broadcast %518 : f32 to vector<12x12xf32>
    %520 = arith.mulf %519, %17 : vector<12x12xf32>
    %521 = arith.addf %517, %520 : vector<12x12xf32>
    %c89 = arith.constant 89 : index
    %522 = memref.load %arg1[%c89] : memref<125xf32, #tpu.memory_space<smem>>
    %523 = vector.broadcast %522 : f32 to vector<12x12xf32>
    %524 = arith.mulf %523, %18 : vector<12x12xf32>
    %525 = arith.addf %521, %524 : vector<12x12xf32>
    %c94 = arith.constant 94 : index
    %526 = memref.load %arg1[%c94] : memref<125xf32, #tpu.memory_space<smem>>
    %527 = vector.broadcast %526 : f32 to vector<12x12xf32>
    %528 = arith.mulf %527, %19 : vector<12x12xf32>
    %529 = arith.addf %525, %528 : vector<12x12xf32>
    %c99 = arith.constant 99 : index
    %530 = memref.load %arg1[%c99] : memref<125xf32, #tpu.memory_space<smem>>
    %531 = vector.broadcast %530 : f32 to vector<12x12xf32>
    %532 = arith.mulf %531, %20 : vector<12x12xf32>
    %533 = arith.addf %529, %532 : vector<12x12xf32>
    %c104 = arith.constant 104 : index
    %534 = memref.load %arg1[%c104] : memref<125xf32, #tpu.memory_space<smem>>
    %535 = vector.broadcast %534 : f32 to vector<12x12xf32>
    %536 = arith.mulf %535, %21 : vector<12x12xf32>
    %537 = arith.addf %533, %536 : vector<12x12xf32>
    %c109 = arith.constant 109 : index
    %538 = memref.load %arg1[%c109] : memref<125xf32, #tpu.memory_space<smem>>
    %539 = vector.broadcast %538 : f32 to vector<12x12xf32>
    %540 = arith.mulf %539, %22 : vector<12x12xf32>
    %541 = arith.addf %537, %540 : vector<12x12xf32>
    %c114 = arith.constant 114 : index
    %542 = memref.load %arg1[%c114] : memref<125xf32, #tpu.memory_space<smem>>
    %543 = vector.broadcast %542 : f32 to vector<12x12xf32>
    %544 = arith.mulf %543, %23 : vector<12x12xf32>
    %545 = arith.addf %541, %544 : vector<12x12xf32>
    %c119 = arith.constant 119 : index
    %546 = memref.load %arg1[%c119] : memref<125xf32, #tpu.memory_space<smem>>
    %547 = vector.broadcast %546 : f32 to vector<12x12xf32>
    %548 = arith.mulf %547, %24 : vector<12x12xf32>
    %549 = arith.addf %545, %548 : vector<12x12xf32>
    %c124 = arith.constant 124 : index
    %550 = memref.load %arg1[%c124] : memref<125xf32, #tpu.memory_space<smem>>
    %551 = vector.broadcast %550 : f32 to vector<12x12xf32>
    %552 = arith.mulf %551, %25 : vector<12x12xf32>
    %553 = arith.addf %549, %552 : vector<12x12xf32>
    %cst_15 = arith.constant 0.000000e+00 : f32
    %554 = vector.broadcast %cst_15 : f32 to vector<12x12xf32>
    %555 = arith.maximumf %553, %554 : vector<12x12xf32>
    %556 = vector.extract_strided_slice %131 {offsets = [0, 0], sizes = [3, 12], strides = [1, 1]} : vector<12x12xf32> to vector<3x12xf32>
    %cst_16 = arith.constant dense<0xFF800000> : vector<12xf32>
    %557 = vector.multi_reduction <maximumf>, %556, %cst_16 [0] : vector<3x12xf32> to vector<12xf32>
    %558 = vector.shape_cast %557 : vector<12xf32> to vector<1x12xf32>
    %559 = vector.extract_strided_slice %558 {offsets = [0, 0], sizes = [1, 3], strides = [1, 1]} : vector<1x12xf32> to vector<1x3xf32>
    %cst_17 = arith.constant dense<0xFF800000> : vector<1xf32>
    %560 = vector.multi_reduction <maximumf>, %559, %cst_17 [1] : vector<1x3xf32> to vector<1xf32>
    %561 = vector.shape_cast %560 : vector<1xf32> to vector<1x1xf32>
    %562 = vector.extract_strided_slice %558 {offsets = [0, 3], sizes = [1, 3], strides = [1, 1]} : vector<1x12xf32> to vector<1x3xf32>
    %cst_18 = arith.constant dense<0xFF800000> : vector<1xf32>
    %563 = vector.multi_reduction <maximumf>, %562, %cst_18 [1] : vector<1x3xf32> to vector<1xf32>
    %564 = vector.shape_cast %563 : vector<1xf32> to vector<1x1xf32>
    %565 = vector.extract_strided_slice %558 {offsets = [0, 6], sizes = [1, 3], strides = [1, 1]} : vector<1x12xf32> to vector<1x3xf32>
    %cst_19 = arith.constant dense<0xFF800000> : vector<1xf32>
    %566 = vector.multi_reduction <maximumf>, %565, %cst_19 [1] : vector<1x3xf32> to vector<1xf32>
    %567 = vector.shape_cast %566 : vector<1xf32> to vector<1x1xf32>
    %568 = vector.extract_strided_slice %558 {offsets = [0, 9], sizes = [1, 3], strides = [1, 1]} : vector<1x12xf32> to vector<1x3xf32>
    %cst_20 = arith.constant dense<0xFF800000> : vector<1xf32>
    %569 = vector.multi_reduction <maximumf>, %568, %cst_20 [1] : vector<1x3xf32> to vector<1xf32>
    %570 = vector.shape_cast %569 : vector<1xf32> to vector<1x1xf32>
    %571 = vector.extract_strided_slice %131 {offsets = [3, 0], sizes = [3, 12], strides = [1, 1]} : vector<12x12xf32> to vector<3x12xf32>
    %cst_21 = arith.constant dense<0xFF800000> : vector<12xf32>
    %572 = vector.multi_reduction <maximumf>, %571, %cst_21 [0] : vector<3x12xf32> to vector<12xf32>
    %573 = vector.shape_cast %572 : vector<12xf32> to vector<1x12xf32>
    %574 = vector.extract_strided_slice %573 {offsets = [0, 0], sizes = [1, 3], strides = [1, 1]} : vector<1x12xf32> to vector<1x3xf32>
    %cst_22 = arith.constant dense<0xFF800000> : vector<1xf32>
    %575 = vector.multi_reduction <maximumf>, %574, %cst_22 [1] : vector<1x3xf32> to vector<1xf32>
    %576 = vector.shape_cast %575 : vector<1xf32> to vector<1x1xf32>
    %577 = vector.extract_strided_slice %573 {offsets = [0, 3], sizes = [1, 3], strides = [1, 1]} : vector<1x12xf32> to vector<1x3xf32>
    %cst_23 = arith.constant dense<0xFF800000> : vector<1xf32>
    %578 = vector.multi_reduction <maximumf>, %577, %cst_23 [1] : vector<1x3xf32> to vector<1xf32>
    %579 = vector.shape_cast %578 : vector<1xf32> to vector<1x1xf32>
    %580 = vector.extract_strided_slice %573 {offsets = [0, 6], sizes = [1, 3], strides = [1, 1]} : vector<1x12xf32> to vector<1x3xf32>
    %cst_24 = arith.constant dense<0xFF800000> : vector<1xf32>
    %581 = vector.multi_reduction <maximumf>, %580, %cst_24 [1] : vector<1x3xf32> to vector<1xf32>
    %582 = vector.shape_cast %581 : vector<1xf32> to vector<1x1xf32>
    %583 = vector.extract_strided_slice %573 {offsets = [0, 9], sizes = [1, 3], strides = [1, 1]} : vector<1x12xf32> to vector<1x3xf32>
    %cst_25 = arith.constant dense<0xFF800000> : vector<1xf32>
    %584 = vector.multi_reduction <maximumf>, %583, %cst_25 [1] : vector<1x3xf32> to vector<1xf32>
    %585 = vector.shape_cast %584 : vector<1xf32> to vector<1x1xf32>
    %586 = vector.extract_strided_slice %131 {offsets = [6, 0], sizes = [3, 12], strides = [1, 1]} : vector<12x12xf32> to vector<3x12xf32>
    %cst_26 = arith.constant dense<0xFF800000> : vector<12xf32>
    %587 = vector.multi_reduction <maximumf>, %586, %cst_26 [0] : vector<3x12xf32> to vector<12xf32>
    %588 = vector.shape_cast %587 : vector<12xf32> to vector<1x12xf32>
    %589 = vector.extract_strided_slice %588 {offsets = [0, 0], sizes = [1, 3], strides = [1, 1]} : vector<1x12xf32> to vector<1x3xf32>
    %cst_27 = arith.constant dense<0xFF800000> : vector<1xf32>
    %590 = vector.multi_reduction <maximumf>, %589, %cst_27 [1] : vector<1x3xf32> to vector<1xf32>
    %591 = vector.shape_cast %590 : vector<1xf32> to vector<1x1xf32>
    %592 = vector.extract_strided_slice %588 {offsets = [0, 3], sizes = [1, 3], strides = [1, 1]} : vector<1x12xf32> to vector<1x3xf32>
    %cst_28 = arith.constant dense<0xFF800000> : vector<1xf32>
    %593 = vector.multi_reduction <maximumf>, %592, %cst_28 [1] : vector<1x3xf32> to vector<1xf32>
    %594 = vector.shape_cast %593 : vector<1xf32> to vector<1x1xf32>
    %595 = vector.extract_strided_slice %588 {offsets = [0, 6], sizes = [1, 3], strides = [1, 1]} : vector<1x12xf32> to vector<1x3xf32>
    %cst_29 = arith.constant dense<0xFF800000> : vector<1xf32>
    %596 = vector.multi_reduction <maximumf>, %595, %cst_29 [1] : vector<1x3xf32> to vector<1xf32>
    %597 = vector.shape_cast %596 : vector<1xf32> to vector<1x1xf32>
    %598 = vector.extract_strided_slice %588 {offsets = [0, 9], sizes = [1, 3], strides = [1, 1]} : vector<1x12xf32> to vector<1x3xf32>
    %cst_30 = arith.constant dense<0xFF800000> : vector<1xf32>
    %599 = vector.multi_reduction <maximumf>, %598, %cst_30 [1] : vector<1x3xf32> to vector<1xf32>
    %600 = vector.shape_cast %599 : vector<1xf32> to vector<1x1xf32>
    %601 = vector.extract_strided_slice %131 {offsets = [9, 0], sizes = [3, 12], strides = [1, 1]} : vector<12x12xf32> to vector<3x12xf32>
    %cst_31 = arith.constant dense<0xFF800000> : vector<12xf32>
    %602 = vector.multi_reduction <maximumf>, %601, %cst_31 [0] : vector<3x12xf32> to vector<12xf32>
    %603 = vector.shape_cast %602 : vector<12xf32> to vector<1x12xf32>
    %604 = vector.extract_strided_slice %603 {offsets = [0, 0], sizes = [1, 3], strides = [1, 1]} : vector<1x12xf32> to vector<1x3xf32>
    %cst_32 = arith.constant dense<0xFF800000> : vector<1xf32>
    %605 = vector.multi_reduction <maximumf>, %604, %cst_32 [1] : vector<1x3xf32> to vector<1xf32>
    %606 = vector.shape_cast %605 : vector<1xf32> to vector<1x1xf32>
    %607 = vector.extract_strided_slice %603 {offsets = [0, 3], sizes = [1, 3], strides = [1, 1]} : vector<1x12xf32> to vector<1x3xf32>
    %cst_33 = arith.constant dense<0xFF800000> : vector<1xf32>
    %608 = vector.multi_reduction <maximumf>, %607, %cst_33 [1] : vector<1x3xf32> to vector<1xf32>
    %609 = vector.shape_cast %608 : vector<1xf32> to vector<1x1xf32>
    %610 = vector.extract_strided_slice %603 {offsets = [0, 6], sizes = [1, 3], strides = [1, 1]} : vector<1x12xf32> to vector<1x3xf32>
    %cst_34 = arith.constant dense<0xFF800000> : vector<1xf32>
    %611 = vector.multi_reduction <maximumf>, %610, %cst_34 [1] : vector<1x3xf32> to vector<1xf32>
    %612 = vector.shape_cast %611 : vector<1xf32> to vector<1x1xf32>
    %613 = vector.extract_strided_slice %603 {offsets = [0, 9], sizes = [1, 3], strides = [1, 1]} : vector<1x12xf32> to vector<1x3xf32>
    %cst_35 = arith.constant dense<0xFF800000> : vector<1xf32>
    %614 = vector.multi_reduction <maximumf>, %613, %cst_35 [1] : vector<1x3xf32> to vector<1xf32>
    %615 = vector.shape_cast %614 : vector<1xf32> to vector<1x1xf32>
    %616 = tpu.concatenate %561, %564, %567, %570, %576, %579, %582, %585, %591, %594, %597, %600, %606, %609, %612, %615 in 1 : vector<1x1xf32>, vector<1x1xf32>, vector<1x1xf32>, vector<1x1xf32>, vector<1x1xf32>, vector<1x1xf32>, vector<1x1xf32>, vector<1x1xf32>, vector<1x1xf32>, vector<1x1xf32>, vector<1x1xf32>, vector<1x1xf32>, vector<1x1xf32>, vector<1x1xf32>, vector<1x1xf32>, vector<1x1xf32> -> vector<1x16xf32>
    %617 = vector.extract_strided_slice %237 {offsets = [0, 0], sizes = [3, 12], strides = [1, 1]} : vector<12x12xf32> to vector<3x12xf32>
    %cst_36 = arith.constant dense<0xFF800000> : vector<12xf32>
    %618 = vector.multi_reduction <maximumf>, %617, %cst_36 [0] : vector<3x12xf32> to vector<12xf32>
    %619 = vector.shape_cast %618 : vector<12xf32> to vector<1x12xf32>
    %620 = vector.extract_strided_slice %619 {offsets = [0, 0], sizes = [1, 3], strides = [1, 1]} : vector<1x12xf32> to vector<1x3xf32>
    %cst_37 = arith.constant dense<0xFF800000> : vector<1xf32>
    %621 = vector.multi_reduction <maximumf>, %620, %cst_37 [1] : vector<1x3xf32> to vector<1xf32>
    %622 = vector.shape_cast %621 : vector<1xf32> to vector<1x1xf32>
    %623 = vector.extract_strided_slice %619 {offsets = [0, 3], sizes = [1, 3], strides = [1, 1]} : vector<1x12xf32> to vector<1x3xf32>
    %cst_38 = arith.constant dense<0xFF800000> : vector<1xf32>
    %624 = vector.multi_reduction <maximumf>, %623, %cst_38 [1] : vector<1x3xf32> to vector<1xf32>
    %625 = vector.shape_cast %624 : vector<1xf32> to vector<1x1xf32>
    %626 = vector.extract_strided_slice %619 {offsets = [0, 6], sizes = [1, 3], strides = [1, 1]} : vector<1x12xf32> to vector<1x3xf32>
    %cst_39 = arith.constant dense<0xFF800000> : vector<1xf32>
    %627 = vector.multi_reduction <maximumf>, %626, %cst_39 [1] : vector<1x3xf32> to vector<1xf32>
    %628 = vector.shape_cast %627 : vector<1xf32> to vector<1x1xf32>
    %629 = vector.extract_strided_slice %619 {offsets = [0, 9], sizes = [1, 3], strides = [1, 1]} : vector<1x12xf32> to vector<1x3xf32>
    %cst_40 = arith.constant dense<0xFF800000> : vector<1xf32>
    %630 = vector.multi_reduction <maximumf>, %629, %cst_40 [1] : vector<1x3xf32> to vector<1xf32>
    %631 = vector.shape_cast %630 : vector<1xf32> to vector<1x1xf32>
    %632 = vector.extract_strided_slice %237 {offsets = [3, 0], sizes = [3, 12], strides = [1, 1]} : vector<12x12xf32> to vector<3x12xf32>
    %cst_41 = arith.constant dense<0xFF800000> : vector<12xf32>
    %633 = vector.multi_reduction <maximumf>, %632, %cst_41 [0] : vector<3x12xf32> to vector<12xf32>
    %634 = vector.shape_cast %633 : vector<12xf32> to vector<1x12xf32>
    %635 = vector.extract_strided_slice %634 {offsets = [0, 0], sizes = [1, 3], strides = [1, 1]} : vector<1x12xf32> to vector<1x3xf32>
    %cst_42 = arith.constant dense<0xFF800000> : vector<1xf32>
    %636 = vector.multi_reduction <maximumf>, %635, %cst_42 [1] : vector<1x3xf32> to vector<1xf32>
    %637 = vector.shape_cast %636 : vector<1xf32> to vector<1x1xf32>
    %638 = vector.extract_strided_slice %634 {offsets = [0, 3], sizes = [1, 3], strides = [1, 1]} : vector<1x12xf32> to vector<1x3xf32>
    %cst_43 = arith.constant dense<0xFF800000> : vector<1xf32>
    %639 = vector.multi_reduction <maximumf>, %638, %cst_43 [1] : vector<1x3xf32> to vector<1xf32>
    %640 = vector.shape_cast %639 : vector<1xf32> to vector<1x1xf32>
    %641 = vector.extract_strided_slice %634 {offsets = [0, 6], sizes = [1, 3], strides = [1, 1]} : vector<1x12xf32> to vector<1x3xf32>
    %cst_44 = arith.constant dense<0xFF800000> : vector<1xf32>
    %642 = vector.multi_reduction <maximumf>, %641, %cst_44 [1] : vector<1x3xf32> to vector<1xf32>
    %643 = vector.shape_cast %642 : vector<1xf32> to vector<1x1xf32>
    %644 = vector.extract_strided_slice %634 {offsets = [0, 9], sizes = [1, 3], strides = [1, 1]} : vector<1x12xf32> to vector<1x3xf32>
    %cst_45 = arith.constant dense<0xFF800000> : vector<1xf32>
    %645 = vector.multi_reduction <maximumf>, %644, %cst_45 [1] : vector<1x3xf32> to vector<1xf32>
    %646 = vector.shape_cast %645 : vector<1xf32> to vector<1x1xf32>
    %647 = vector.extract_strided_slice %237 {offsets = [6, 0], sizes = [3, 12], strides = [1, 1]} : vector<12x12xf32> to vector<3x12xf32>
    %cst_46 = arith.constant dense<0xFF800000> : vector<12xf32>
    %648 = vector.multi_reduction <maximumf>, %647, %cst_46 [0] : vector<3x12xf32> to vector<12xf32>
    %649 = vector.shape_cast %648 : vector<12xf32> to vector<1x12xf32>
    %650 = vector.extract_strided_slice %649 {offsets = [0, 0], sizes = [1, 3], strides = [1, 1]} : vector<1x12xf32> to vector<1x3xf32>
    %cst_47 = arith.constant dense<0xFF800000> : vector<1xf32>
    %651 = vector.multi_reduction <maximumf>, %650, %cst_47 [1] : vector<1x3xf32> to vector<1xf32>
    %652 = vector.shape_cast %651 : vector<1xf32> to vector<1x1xf32>
    %653 = vector.extract_strided_slice %649 {offsets = [0, 3], sizes = [1, 3], strides = [1, 1]} : vector<1x12xf32> to vector<1x3xf32>
    %cst_48 = arith.constant dense<0xFF800000> : vector<1xf32>
    %654 = vector.multi_reduction <maximumf>, %653, %cst_48 [1] : vector<1x3xf32> to vector<1xf32>
    %655 = vector.shape_cast %654 : vector<1xf32> to vector<1x1xf32>
    %656 = vector.extract_strided_slice %649 {offsets = [0, 6], sizes = [1, 3], strides = [1, 1]} : vector<1x12xf32> to vector<1x3xf32>
    %cst_49 = arith.constant dense<0xFF800000> : vector<1xf32>
    %657 = vector.multi_reduction <maximumf>, %656, %cst_49 [1] : vector<1x3xf32> to vector<1xf32>
    %658 = vector.shape_cast %657 : vector<1xf32> to vector<1x1xf32>
    %659 = vector.extract_strided_slice %649 {offsets = [0, 9], sizes = [1, 3], strides = [1, 1]} : vector<1x12xf32> to vector<1x3xf32>
    %cst_50 = arith.constant dense<0xFF800000> : vector<1xf32>
    %660 = vector.multi_reduction <maximumf>, %659, %cst_50 [1] : vector<1x3xf32> to vector<1xf32>
    %661 = vector.shape_cast %660 : vector<1xf32> to vector<1x1xf32>
    %662 = vector.extract_strided_slice %237 {offsets = [9, 0], sizes = [3, 12], strides = [1, 1]} : vector<12x12xf32> to vector<3x12xf32>
    %cst_51 = arith.constant dense<0xFF800000> : vector<12xf32>
    %663 = vector.multi_reduction <maximumf>, %662, %cst_51 [0] : vector<3x12xf32> to vector<12xf32>
    %664 = vector.shape_cast %663 : vector<12xf32> to vector<1x12xf32>
    %665 = vector.extract_strided_slice %664 {offsets = [0, 0], sizes = [1, 3], strides = [1, 1]} : vector<1x12xf32> to vector<1x3xf32>
    %cst_52 = arith.constant dense<0xFF800000> : vector<1xf32>
    %666 = vector.multi_reduction <maximumf>, %665, %cst_52 [1] : vector<1x3xf32> to vector<1xf32>
    %667 = vector.shape_cast %666 : vector<1xf32> to vector<1x1xf32>
    %668 = vector.extract_strided_slice %664 {offsets = [0, 3], sizes = [1, 3], strides = [1, 1]} : vector<1x12xf32> to vector<1x3xf32>
    %cst_53 = arith.constant dense<0xFF800000> : vector<1xf32>
    %669 = vector.multi_reduction <maximumf>, %668, %cst_53 [1] : vector<1x3xf32> to vector<1xf32>
    %670 = vector.shape_cast %669 : vector<1xf32> to vector<1x1xf32>
    %671 = vector.extract_strided_slice %664 {offsets = [0, 6], sizes = [1, 3], strides = [1, 1]} : vector<1x12xf32> to vector<1x3xf32>
    %cst_54 = arith.constant dense<0xFF800000> : vector<1xf32>
    %672 = vector.multi_reduction <maximumf>, %671, %cst_54 [1] : vector<1x3xf32> to vector<1xf32>
    %673 = vector.shape_cast %672 : vector<1xf32> to vector<1x1xf32>
    %674 = vector.extract_strided_slice %664 {offsets = [0, 9], sizes = [1, 3], strides = [1, 1]} : vector<1x12xf32> to vector<1x3xf32>
    %cst_55 = arith.constant dense<0xFF800000> : vector<1xf32>
    %675 = vector.multi_reduction <maximumf>, %674, %cst_55 [1] : vector<1x3xf32> to vector<1xf32>
    %676 = vector.shape_cast %675 : vector<1xf32> to vector<1x1xf32>
    %677 = tpu.concatenate %622, %625, %628, %631, %637, %640, %643, %646, %652, %655, %658, %661, %667, %670, %673, %676 in 1 : vector<1x1xf32>, vector<1x1xf32>, vector<1x1xf32>, vector<1x1xf32>, vector<1x1xf32>, vector<1x1xf32>, vector<1x1xf32>, vector<1x1xf32>, vector<1x1xf32>, vector<1x1xf32>, vector<1x1xf32>, vector<1x1xf32>, vector<1x1xf32>, vector<1x1xf32>, vector<1x1xf32>, vector<1x1xf32> -> vector<1x16xf32>
    %678 = vector.extract_strided_slice %343 {offsets = [0, 0], sizes = [3, 12], strides = [1, 1]} : vector<12x12xf32> to vector<3x12xf32>
    %cst_56 = arith.constant dense<0xFF800000> : vector<12xf32>
    %679 = vector.multi_reduction <maximumf>, %678, %cst_56 [0] : vector<3x12xf32> to vector<12xf32>
    %680 = vector.shape_cast %679 : vector<12xf32> to vector<1x12xf32>
    %681 = vector.extract_strided_slice %680 {offsets = [0, 0], sizes = [1, 3], strides = [1, 1]} : vector<1x12xf32> to vector<1x3xf32>
    %cst_57 = arith.constant dense<0xFF800000> : vector<1xf32>
    %682 = vector.multi_reduction <maximumf>, %681, %cst_57 [1] : vector<1x3xf32> to vector<1xf32>
    %683 = vector.shape_cast %682 : vector<1xf32> to vector<1x1xf32>
    %684 = vector.extract_strided_slice %680 {offsets = [0, 3], sizes = [1, 3], strides = [1, 1]} : vector<1x12xf32> to vector<1x3xf32>
    %cst_58 = arith.constant dense<0xFF800000> : vector<1xf32>
    %685 = vector.multi_reduction <maximumf>, %684, %cst_58 [1] : vector<1x3xf32> to vector<1xf32>
    %686 = vector.shape_cast %685 : vector<1xf32> to vector<1x1xf32>
    %687 = vector.extract_strided_slice %680 {offsets = [0, 6], sizes = [1, 3], strides = [1, 1]} : vector<1x12xf32> to vector<1x3xf32>
    %cst_59 = arith.constant dense<0xFF800000> : vector<1xf32>
    %688 = vector.multi_reduction <maximumf>, %687, %cst_59 [1] : vector<1x3xf32> to vector<1xf32>
    %689 = vector.shape_cast %688 : vector<1xf32> to vector<1x1xf32>
    %690 = vector.extract_strided_slice %680 {offsets = [0, 9], sizes = [1, 3], strides = [1, 1]} : vector<1x12xf32> to vector<1x3xf32>
    %cst_60 = arith.constant dense<0xFF800000> : vector<1xf32>
    %691 = vector.multi_reduction <maximumf>, %690, %cst_60 [1] : vector<1x3xf32> to vector<1xf32>
    %692 = vector.shape_cast %691 : vector<1xf32> to vector<1x1xf32>
    %693 = vector.extract_strided_slice %343 {offsets = [3, 0], sizes = [3, 12], strides = [1, 1]} : vector<12x12xf32> to vector<3x12xf32>
    %cst_61 = arith.constant dense<0xFF800000> : vector<12xf32>
    %694 = vector.multi_reduction <maximumf>, %693, %cst_61 [0] : vector<3x12xf32> to vector<12xf32>
    %695 = vector.shape_cast %694 : vector<12xf32> to vector<1x12xf32>
    %696 = vector.extract_strided_slice %695 {offsets = [0, 0], sizes = [1, 3], strides = [1, 1]} : vector<1x12xf32> to vector<1x3xf32>
    %cst_62 = arith.constant dense<0xFF800000> : vector<1xf32>
    %697 = vector.multi_reduction <maximumf>, %696, %cst_62 [1] : vector<1x3xf32> to vector<1xf32>
    %698 = vector.shape_cast %697 : vector<1xf32> to vector<1x1xf32>
    %699 = vector.extract_strided_slice %695 {offsets = [0, 3], sizes = [1, 3], strides = [1, 1]} : vector<1x12xf32> to vector<1x3xf32>
    %cst_63 = arith.constant dense<0xFF800000> : vector<1xf32>
    %700 = vector.multi_reduction <maximumf>, %699, %cst_63 [1] : vector<1x3xf32> to vector<1xf32>
    %701 = vector.shape_cast %700 : vector<1xf32> to vector<1x1xf32>
    %702 = vector.extract_strided_slice %695 {offsets = [0, 6], sizes = [1, 3], strides = [1, 1]} : vector<1x12xf32> to vector<1x3xf32>
    %cst_64 = arith.constant dense<0xFF800000> : vector<1xf32>
    %703 = vector.multi_reduction <maximumf>, %702, %cst_64 [1] : vector<1x3xf32> to vector<1xf32>
    %704 = vector.shape_cast %703 : vector<1xf32> to vector<1x1xf32>
    %705 = vector.extract_strided_slice %695 {offsets = [0, 9], sizes = [1, 3], strides = [1, 1]} : vector<1x12xf32> to vector<1x3xf32>
    %cst_65 = arith.constant dense<0xFF800000> : vector<1xf32>
    %706 = vector.multi_reduction <maximumf>, %705, %cst_65 [1] : vector<1x3xf32> to vector<1xf32>
    %707 = vector.shape_cast %706 : vector<1xf32> to vector<1x1xf32>
    %708 = vector.extract_strided_slice %343 {offsets = [6, 0], sizes = [3, 12], strides = [1, 1]} : vector<12x12xf32> to vector<3x12xf32>
    %cst_66 = arith.constant dense<0xFF800000> : vector<12xf32>
    %709 = vector.multi_reduction <maximumf>, %708, %cst_66 [0] : vector<3x12xf32> to vector<12xf32>
    %710 = vector.shape_cast %709 : vector<12xf32> to vector<1x12xf32>
    %711 = vector.extract_strided_slice %710 {offsets = [0, 0], sizes = [1, 3], strides = [1, 1]} : vector<1x12xf32> to vector<1x3xf32>
    %cst_67 = arith.constant dense<0xFF800000> : vector<1xf32>
    %712 = vector.multi_reduction <maximumf>, %711, %cst_67 [1] : vector<1x3xf32> to vector<1xf32>
    %713 = vector.shape_cast %712 : vector<1xf32> to vector<1x1xf32>
    %714 = vector.extract_strided_slice %710 {offsets = [0, 3], sizes = [1, 3], strides = [1, 1]} : vector<1x12xf32> to vector<1x3xf32>
    %cst_68 = arith.constant dense<0xFF800000> : vector<1xf32>
    %715 = vector.multi_reduction <maximumf>, %714, %cst_68 [1] : vector<1x3xf32> to vector<1xf32>
    %716 = vector.shape_cast %715 : vector<1xf32> to vector<1x1xf32>
    %717 = vector.extract_strided_slice %710 {offsets = [0, 6], sizes = [1, 3], strides = [1, 1]} : vector<1x12xf32> to vector<1x3xf32>
    %cst_69 = arith.constant dense<0xFF800000> : vector<1xf32>
    %718 = vector.multi_reduction <maximumf>, %717, %cst_69 [1] : vector<1x3xf32> to vector<1xf32>
    %719 = vector.shape_cast %718 : vector<1xf32> to vector<1x1xf32>
    %720 = vector.extract_strided_slice %710 {offsets = [0, 9], sizes = [1, 3], strides = [1, 1]} : vector<1x12xf32> to vector<1x3xf32>
    %cst_70 = arith.constant dense<0xFF800000> : vector<1xf32>
    %721 = vector.multi_reduction <maximumf>, %720, %cst_70 [1] : vector<1x3xf32> to vector<1xf32>
    %722 = vector.shape_cast %721 : vector<1xf32> to vector<1x1xf32>
    %723 = vector.extract_strided_slice %343 {offsets = [9, 0], sizes = [3, 12], strides = [1, 1]} : vector<12x12xf32> to vector<3x12xf32>
    %cst_71 = arith.constant dense<0xFF800000> : vector<12xf32>
    %724 = vector.multi_reduction <maximumf>, %723, %cst_71 [0] : vector<3x12xf32> to vector<12xf32>
    %725 = vector.shape_cast %724 : vector<12xf32> to vector<1x12xf32>
    %726 = vector.extract_strided_slice %725 {offsets = [0, 0], sizes = [1, 3], strides = [1, 1]} : vector<1x12xf32> to vector<1x3xf32>
    %cst_72 = arith.constant dense<0xFF800000> : vector<1xf32>
    %727 = vector.multi_reduction <maximumf>, %726, %cst_72 [1] : vector<1x3xf32> to vector<1xf32>
    %728 = vector.shape_cast %727 : vector<1xf32> to vector<1x1xf32>
    %729 = vector.extract_strided_slice %725 {offsets = [0, 3], sizes = [1, 3], strides = [1, 1]} : vector<1x12xf32> to vector<1x3xf32>
    %cst_73 = arith.constant dense<0xFF800000> : vector<1xf32>
    %730 = vector.multi_reduction <maximumf>, %729, %cst_73 [1] : vector<1x3xf32> to vector<1xf32>
    %731 = vector.shape_cast %730 : vector<1xf32> to vector<1x1xf32>
    %732 = vector.extract_strided_slice %725 {offsets = [0, 6], sizes = [1, 3], strides = [1, 1]} : vector<1x12xf32> to vector<1x3xf32>
    %cst_74 = arith.constant dense<0xFF800000> : vector<1xf32>
    %733 = vector.multi_reduction <maximumf>, %732, %cst_74 [1] : vector<1x3xf32> to vector<1xf32>
    %734 = vector.shape_cast %733 : vector<1xf32> to vector<1x1xf32>
    %735 = vector.extract_strided_slice %725 {offsets = [0, 9], sizes = [1, 3], strides = [1, 1]} : vector<1x12xf32> to vector<1x3xf32>
    %cst_75 = arith.constant dense<0xFF800000> : vector<1xf32>
    %736 = vector.multi_reduction <maximumf>, %735, %cst_75 [1] : vector<1x3xf32> to vector<1xf32>
    %737 = vector.shape_cast %736 : vector<1xf32> to vector<1x1xf32>
    %738 = tpu.concatenate %683, %686, %689, %692, %698, %701, %704, %707, %713, %716, %719, %722, %728, %731, %734, %737 in 1 : vector<1x1xf32>, vector<1x1xf32>, vector<1x1xf32>, vector<1x1xf32>, vector<1x1xf32>, vector<1x1xf32>, vector<1x1xf32>, vector<1x1xf32>, vector<1x1xf32>, vector<1x1xf32>, vector<1x1xf32>, vector<1x1xf32>, vector<1x1xf32>, vector<1x1xf32>, vector<1x1xf32>, vector<1x1xf32> -> vector<1x16xf32>
    %739 = vector.extract_strided_slice %449 {offsets = [0, 0], sizes = [3, 12], strides = [1, 1]} : vector<12x12xf32> to vector<3x12xf32>
    %cst_76 = arith.constant dense<0xFF800000> : vector<12xf32>
    %740 = vector.multi_reduction <maximumf>, %739, %cst_76 [0] : vector<3x12xf32> to vector<12xf32>
    %741 = vector.shape_cast %740 : vector<12xf32> to vector<1x12xf32>
    %742 = vector.extract_strided_slice %741 {offsets = [0, 0], sizes = [1, 3], strides = [1, 1]} : vector<1x12xf32> to vector<1x3xf32>
    %cst_77 = arith.constant dense<0xFF800000> : vector<1xf32>
    %743 = vector.multi_reduction <maximumf>, %742, %cst_77 [1] : vector<1x3xf32> to vector<1xf32>
    %744 = vector.shape_cast %743 : vector<1xf32> to vector<1x1xf32>
    %745 = vector.extract_strided_slice %741 {offsets = [0, 3], sizes = [1, 3], strides = [1, 1]} : vector<1x12xf32> to vector<1x3xf32>
    %cst_78 = arith.constant dense<0xFF800000> : vector<1xf32>
    %746 = vector.multi_reduction <maximumf>, %745, %cst_78 [1] : vector<1x3xf32> to vector<1xf32>
    %747 = vector.shape_cast %746 : vector<1xf32> to vector<1x1xf32>
    %748 = vector.extract_strided_slice %741 {offsets = [0, 6], sizes = [1, 3], strides = [1, 1]} : vector<1x12xf32> to vector<1x3xf32>
    %cst_79 = arith.constant dense<0xFF800000> : vector<1xf32>
    %749 = vector.multi_reduction <maximumf>, %748, %cst_79 [1] : vector<1x3xf32> to vector<1xf32>
    %750 = vector.shape_cast %749 : vector<1xf32> to vector<1x1xf32>
    %751 = vector.extract_strided_slice %741 {offsets = [0, 9], sizes = [1, 3], strides = [1, 1]} : vector<1x12xf32> to vector<1x3xf32>
    %cst_80 = arith.constant dense<0xFF800000> : vector<1xf32>
    %752 = vector.multi_reduction <maximumf>, %751, %cst_80 [1] : vector<1x3xf32> to vector<1xf32>
    %753 = vector.shape_cast %752 : vector<1xf32> to vector<1x1xf32>
    %754 = vector.extract_strided_slice %449 {offsets = [3, 0], sizes = [3, 12], strides = [1, 1]} : vector<12x12xf32> to vector<3x12xf32>
    %cst_81 = arith.constant dense<0xFF800000> : vector<12xf32>
    %755 = vector.multi_reduction <maximumf>, %754, %cst_81 [0] : vector<3x12xf32> to vector<12xf32>
    %756 = vector.shape_cast %755 : vector<12xf32> to vector<1x12xf32>
    %757 = vector.extract_strided_slice %756 {offsets = [0, 0], sizes = [1, 3], strides = [1, 1]} : vector<1x12xf32> to vector<1x3xf32>
    %cst_82 = arith.constant dense<0xFF800000> : vector<1xf32>
    %758 = vector.multi_reduction <maximumf>, %757, %cst_82 [1] : vector<1x3xf32> to vector<1xf32>
    %759 = vector.shape_cast %758 : vector<1xf32> to vector<1x1xf32>
    %760 = vector.extract_strided_slice %756 {offsets = [0, 3], sizes = [1, 3], strides = [1, 1]} : vector<1x12xf32> to vector<1x3xf32>
    %cst_83 = arith.constant dense<0xFF800000> : vector<1xf32>
    %761 = vector.multi_reduction <maximumf>, %760, %cst_83 [1] : vector<1x3xf32> to vector<1xf32>
    %762 = vector.shape_cast %761 : vector<1xf32> to vector<1x1xf32>
    %763 = vector.extract_strided_slice %756 {offsets = [0, 6], sizes = [1, 3], strides = [1, 1]} : vector<1x12xf32> to vector<1x3xf32>
    %cst_84 = arith.constant dense<0xFF800000> : vector<1xf32>
    %764 = vector.multi_reduction <maximumf>, %763, %cst_84 [1] : vector<1x3xf32> to vector<1xf32>
    %765 = vector.shape_cast %764 : vector<1xf32> to vector<1x1xf32>
    %766 = vector.extract_strided_slice %756 {offsets = [0, 9], sizes = [1, 3], strides = [1, 1]} : vector<1x12xf32> to vector<1x3xf32>
    %cst_85 = arith.constant dense<0xFF800000> : vector<1xf32>
    %767 = vector.multi_reduction <maximumf>, %766, %cst_85 [1] : vector<1x3xf32> to vector<1xf32>
    %768 = vector.shape_cast %767 : vector<1xf32> to vector<1x1xf32>
    %769 = vector.extract_strided_slice %449 {offsets = [6, 0], sizes = [3, 12], strides = [1, 1]} : vector<12x12xf32> to vector<3x12xf32>
    %cst_86 = arith.constant dense<0xFF800000> : vector<12xf32>
    %770 = vector.multi_reduction <maximumf>, %769, %cst_86 [0] : vector<3x12xf32> to vector<12xf32>
    %771 = vector.shape_cast %770 : vector<12xf32> to vector<1x12xf32>
    %772 = vector.extract_strided_slice %771 {offsets = [0, 0], sizes = [1, 3], strides = [1, 1]} : vector<1x12xf32> to vector<1x3xf32>
    %cst_87 = arith.constant dense<0xFF800000> : vector<1xf32>
    %773 = vector.multi_reduction <maximumf>, %772, %cst_87 [1] : vector<1x3xf32> to vector<1xf32>
    %774 = vector.shape_cast %773 : vector<1xf32> to vector<1x1xf32>
    %775 = vector.extract_strided_slice %771 {offsets = [0, 3], sizes = [1, 3], strides = [1, 1]} : vector<1x12xf32> to vector<1x3xf32>
    %cst_88 = arith.constant dense<0xFF800000> : vector<1xf32>
    %776 = vector.multi_reduction <maximumf>, %775, %cst_88 [1] : vector<1x3xf32> to vector<1xf32>
    %777 = vector.shape_cast %776 : vector<1xf32> to vector<1x1xf32>
    %778 = vector.extract_strided_slice %771 {offsets = [0, 6], sizes = [1, 3], strides = [1, 1]} : vector<1x12xf32> to vector<1x3xf32>
    %cst_89 = arith.constant dense<0xFF800000> : vector<1xf32>
    %779 = vector.multi_reduction <maximumf>, %778, %cst_89 [1] : vector<1x3xf32> to vector<1xf32>
    %780 = vector.shape_cast %779 : vector<1xf32> to vector<1x1xf32>
    %781 = vector.extract_strided_slice %771 {offsets = [0, 9], sizes = [1, 3], strides = [1, 1]} : vector<1x12xf32> to vector<1x3xf32>
    %cst_90 = arith.constant dense<0xFF800000> : vector<1xf32>
    %782 = vector.multi_reduction <maximumf>, %781, %cst_90 [1] : vector<1x3xf32> to vector<1xf32>
    %783 = vector.shape_cast %782 : vector<1xf32> to vector<1x1xf32>
    %784 = vector.extract_strided_slice %449 {offsets = [9, 0], sizes = [3, 12], strides = [1, 1]} : vector<12x12xf32> to vector<3x12xf32>
    %cst_91 = arith.constant dense<0xFF800000> : vector<12xf32>
    %785 = vector.multi_reduction <maximumf>, %784, %cst_91 [0] : vector<3x12xf32> to vector<12xf32>
    %786 = vector.shape_cast %785 : vector<12xf32> to vector<1x12xf32>
    %787 = vector.extract_strided_slice %786 {offsets = [0, 0], sizes = [1, 3], strides = [1, 1]} : vector<1x12xf32> to vector<1x3xf32>
    %cst_92 = arith.constant dense<0xFF800000> : vector<1xf32>
    %788 = vector.multi_reduction <maximumf>, %787, %cst_92 [1] : vector<1x3xf32> to vector<1xf32>
    %789 = vector.shape_cast %788 : vector<1xf32> to vector<1x1xf32>
    %790 = vector.extract_strided_slice %786 {offsets = [0, 3], sizes = [1, 3], strides = [1, 1]} : vector<1x12xf32> to vector<1x3xf32>
    %cst_93 = arith.constant dense<0xFF800000> : vector<1xf32>
    %791 = vector.multi_reduction <maximumf>, %790, %cst_93 [1] : vector<1x3xf32> to vector<1xf32>
    %792 = vector.shape_cast %791 : vector<1xf32> to vector<1x1xf32>
    %793 = vector.extract_strided_slice %786 {offsets = [0, 6], sizes = [1, 3], strides = [1, 1]} : vector<1x12xf32> to vector<1x3xf32>
    %cst_94 = arith.constant dense<0xFF800000> : vector<1xf32>
    %794 = vector.multi_reduction <maximumf>, %793, %cst_94 [1] : vector<1x3xf32> to vector<1xf32>
    %795 = vector.shape_cast %794 : vector<1xf32> to vector<1x1xf32>
    %796 = vector.extract_strided_slice %786 {offsets = [0, 9], sizes = [1, 3], strides = [1, 1]} : vector<1x12xf32> to vector<1x3xf32>
    %cst_95 = arith.constant dense<0xFF800000> : vector<1xf32>
    %797 = vector.multi_reduction <maximumf>, %796, %cst_95 [1] : vector<1x3xf32> to vector<1xf32>
    %798 = vector.shape_cast %797 : vector<1xf32> to vector<1x1xf32>
    %799 = tpu.concatenate %744, %747, %750, %753, %759, %762, %765, %768, %774, %777, %780, %783, %789, %792, %795, %798 in 1 : vector<1x1xf32>, vector<1x1xf32>, vector<1x1xf32>, vector<1x1xf32>, vector<1x1xf32>, vector<1x1xf32>, vector<1x1xf32>, vector<1x1xf32>, vector<1x1xf32>, vector<1x1xf32>, vector<1x1xf32>, vector<1x1xf32>, vector<1x1xf32>, vector<1x1xf32>, vector<1x1xf32>, vector<1x1xf32> -> vector<1x16xf32>
    %800 = vector.extract_strided_slice %555 {offsets = [0, 0], sizes = [3, 12], strides = [1, 1]} : vector<12x12xf32> to vector<3x12xf32>
    %cst_96 = arith.constant dense<0xFF800000> : vector<12xf32>
    %801 = vector.multi_reduction <maximumf>, %800, %cst_96 [0] : vector<3x12xf32> to vector<12xf32>
    %802 = vector.shape_cast %801 : vector<12xf32> to vector<1x12xf32>
    %803 = vector.extract_strided_slice %802 {offsets = [0, 0], sizes = [1, 3], strides = [1, 1]} : vector<1x12xf32> to vector<1x3xf32>
    %cst_97 = arith.constant dense<0xFF800000> : vector<1xf32>
    %804 = vector.multi_reduction <maximumf>, %803, %cst_97 [1] : vector<1x3xf32> to vector<1xf32>
    %805 = vector.shape_cast %804 : vector<1xf32> to vector<1x1xf32>
    %806 = vector.extract_strided_slice %802 {offsets = [0, 3], sizes = [1, 3], strides = [1, 1]} : vector<1x12xf32> to vector<1x3xf32>
    %cst_98 = arith.constant dense<0xFF800000> : vector<1xf32>
    %807 = vector.multi_reduction <maximumf>, %806, %cst_98 [1] : vector<1x3xf32> to vector<1xf32>
    %808 = vector.shape_cast %807 : vector<1xf32> to vector<1x1xf32>
    %809 = vector.extract_strided_slice %802 {offsets = [0, 6], sizes = [1, 3], strides = [1, 1]} : vector<1x12xf32> to vector<1x3xf32>
    %cst_99 = arith.constant dense<0xFF800000> : vector<1xf32>
    %810 = vector.multi_reduction <maximumf>, %809, %cst_99 [1] : vector<1x3xf32> to vector<1xf32>
    %811 = vector.shape_cast %810 : vector<1xf32> to vector<1x1xf32>
    %812 = vector.extract_strided_slice %802 {offsets = [0, 9], sizes = [1, 3], strides = [1, 1]} : vector<1x12xf32> to vector<1x3xf32>
    %cst_100 = arith.constant dense<0xFF800000> : vector<1xf32>
    %813 = vector.multi_reduction <maximumf>, %812, %cst_100 [1] : vector<1x3xf32> to vector<1xf32>
    %814 = vector.shape_cast %813 : vector<1xf32> to vector<1x1xf32>
    %815 = vector.extract_strided_slice %555 {offsets = [3, 0], sizes = [3, 12], strides = [1, 1]} : vector<12x12xf32> to vector<3x12xf32>
    %cst_101 = arith.constant dense<0xFF800000> : vector<12xf32>
    %816 = vector.multi_reduction <maximumf>, %815, %cst_101 [0] : vector<3x12xf32> to vector<12xf32>
    %817 = vector.shape_cast %816 : vector<12xf32> to vector<1x12xf32>
    %818 = vector.extract_strided_slice %817 {offsets = [0, 0], sizes = [1, 3], strides = [1, 1]} : vector<1x12xf32> to vector<1x3xf32>
    %cst_102 = arith.constant dense<0xFF800000> : vector<1xf32>
    %819 = vector.multi_reduction <maximumf>, %818, %cst_102 [1] : vector<1x3xf32> to vector<1xf32>
    %820 = vector.shape_cast %819 : vector<1xf32> to vector<1x1xf32>
    %821 = vector.extract_strided_slice %817 {offsets = [0, 3], sizes = [1, 3], strides = [1, 1]} : vector<1x12xf32> to vector<1x3xf32>
    %cst_103 = arith.constant dense<0xFF800000> : vector<1xf32>
    %822 = vector.multi_reduction <maximumf>, %821, %cst_103 [1] : vector<1x3xf32> to vector<1xf32>
    %823 = vector.shape_cast %822 : vector<1xf32> to vector<1x1xf32>
    %824 = vector.extract_strided_slice %817 {offsets = [0, 6], sizes = [1, 3], strides = [1, 1]} : vector<1x12xf32> to vector<1x3xf32>
    %cst_104 = arith.constant dense<0xFF800000> : vector<1xf32>
    %825 = vector.multi_reduction <maximumf>, %824, %cst_104 [1] : vector<1x3xf32> to vector<1xf32>
    %826 = vector.shape_cast %825 : vector<1xf32> to vector<1x1xf32>
    %827 = vector.extract_strided_slice %817 {offsets = [0, 9], sizes = [1, 3], strides = [1, 1]} : vector<1x12xf32> to vector<1x3xf32>
    %cst_105 = arith.constant dense<0xFF800000> : vector<1xf32>
    %828 = vector.multi_reduction <maximumf>, %827, %cst_105 [1] : vector<1x3xf32> to vector<1xf32>
    %829 = vector.shape_cast %828 : vector<1xf32> to vector<1x1xf32>
    %830 = vector.extract_strided_slice %555 {offsets = [6, 0], sizes = [3, 12], strides = [1, 1]} : vector<12x12xf32> to vector<3x12xf32>
    %cst_106 = arith.constant dense<0xFF800000> : vector<12xf32>
    %831 = vector.multi_reduction <maximumf>, %830, %cst_106 [0] : vector<3x12xf32> to vector<12xf32>
    %832 = vector.shape_cast %831 : vector<12xf32> to vector<1x12xf32>
    %833 = vector.extract_strided_slice %832 {offsets = [0, 0], sizes = [1, 3], strides = [1, 1]} : vector<1x12xf32> to vector<1x3xf32>
    %cst_107 = arith.constant dense<0xFF800000> : vector<1xf32>
    %834 = vector.multi_reduction <maximumf>, %833, %cst_107 [1] : vector<1x3xf32> to vector<1xf32>
    %835 = vector.shape_cast %834 : vector<1xf32> to vector<1x1xf32>
    %836 = vector.extract_strided_slice %832 {offsets = [0, 3], sizes = [1, 3], strides = [1, 1]} : vector<1x12xf32> to vector<1x3xf32>
    %cst_108 = arith.constant dense<0xFF800000> : vector<1xf32>
    %837 = vector.multi_reduction <maximumf>, %836, %cst_108 [1] : vector<1x3xf32> to vector<1xf32>
    %838 = vector.shape_cast %837 : vector<1xf32> to vector<1x1xf32>
    %839 = vector.extract_strided_slice %832 {offsets = [0, 6], sizes = [1, 3], strides = [1, 1]} : vector<1x12xf32> to vector<1x3xf32>
    %cst_109 = arith.constant dense<0xFF800000> : vector<1xf32>
    %840 = vector.multi_reduction <maximumf>, %839, %cst_109 [1] : vector<1x3xf32> to vector<1xf32>
    %841 = vector.shape_cast %840 : vector<1xf32> to vector<1x1xf32>
    %842 = vector.extract_strided_slice %832 {offsets = [0, 9], sizes = [1, 3], strides = [1, 1]} : vector<1x12xf32> to vector<1x3xf32>
    %cst_110 = arith.constant dense<0xFF800000> : vector<1xf32>
    %843 = vector.multi_reduction <maximumf>, %842, %cst_110 [1] : vector<1x3xf32> to vector<1xf32>
    %844 = vector.shape_cast %843 : vector<1xf32> to vector<1x1xf32>
    %845 = vector.extract_strided_slice %555 {offsets = [9, 0], sizes = [3, 12], strides = [1, 1]} : vector<12x12xf32> to vector<3x12xf32>
    %cst_111 = arith.constant dense<0xFF800000> : vector<12xf32>
    %846 = vector.multi_reduction <maximumf>, %845, %cst_111 [0] : vector<3x12xf32> to vector<12xf32>
    %847 = vector.shape_cast %846 : vector<12xf32> to vector<1x12xf32>
    %848 = vector.extract_strided_slice %847 {offsets = [0, 0], sizes = [1, 3], strides = [1, 1]} : vector<1x12xf32> to vector<1x3xf32>
    %cst_112 = arith.constant dense<0xFF800000> : vector<1xf32>
    %849 = vector.multi_reduction <maximumf>, %848, %cst_112 [1] : vector<1x3xf32> to vector<1xf32>
    %850 = vector.shape_cast %849 : vector<1xf32> to vector<1x1xf32>
    %851 = vector.extract_strided_slice %847 {offsets = [0, 3], sizes = [1, 3], strides = [1, 1]} : vector<1x12xf32> to vector<1x3xf32>
    %cst_113 = arith.constant dense<0xFF800000> : vector<1xf32>
    %852 = vector.multi_reduction <maximumf>, %851, %cst_113 [1] : vector<1x3xf32> to vector<1xf32>
    %853 = vector.shape_cast %852 : vector<1xf32> to vector<1x1xf32>
    %854 = vector.extract_strided_slice %847 {offsets = [0, 6], sizes = [1, 3], strides = [1, 1]} : vector<1x12xf32> to vector<1x3xf32>
    %cst_114 = arith.constant dense<0xFF800000> : vector<1xf32>
    %855 = vector.multi_reduction <maximumf>, %854, %cst_114 [1] : vector<1x3xf32> to vector<1xf32>
    %856 = vector.shape_cast %855 : vector<1xf32> to vector<1x1xf32>
    %857 = vector.extract_strided_slice %847 {offsets = [0, 9], sizes = [1, 3], strides = [1, 1]} : vector<1x12xf32> to vector<1x3xf32>
    %cst_115 = arith.constant dense<0xFF800000> : vector<1xf32>
    %858 = vector.multi_reduction <maximumf>, %857, %cst_115 [1] : vector<1x3xf32> to vector<1xf32>
    %859 = vector.shape_cast %858 : vector<1xf32> to vector<1x1xf32>
    %860 = tpu.concatenate %805, %808, %811, %814, %820, %823, %826, %829, %835, %838, %841, %844, %850, %853, %856, %859 in 1 : vector<1x1xf32>, vector<1x1xf32>, vector<1x1xf32>, vector<1x1xf32>, vector<1x1xf32>, vector<1x1xf32>, vector<1x1xf32>, vector<1x1xf32>, vector<1x1xf32>, vector<1x1xf32>, vector<1x1xf32>, vector<1x1xf32>, vector<1x1xf32>, vector<1x1xf32>, vector<1x1xf32>, vector<1x1xf32> -> vector<1x16xf32>
    %861 = tpu.concatenate %616, %677, %738, %799, %860 in 0 : vector<1x16xf32>, vector<1x16xf32>, vector<1x16xf32>, vector<1x16xf32>, vector<1x16xf32> -> vector<5x16xf32>
    %c0_116 = arith.constant 0 : index
    %c0_117 = arith.constant 0 : index
    %862 = vector.load %arg3[%c0_116, %c0_117] : memref<20x16xf32, #tpu.memory_space<vmem>>, vector<20x16xf32>
    %863 = vector.extract_strided_slice %862 {offsets = [0, 0], sizes = [5, 16], strides = [1, 1]} : vector<20x16xf32> to vector<5x16xf32>
    %864 = arith.mulf %861, %863 : vector<5x16xf32>
    %cst_118 = arith.constant dense<0.000000e+00> : vector<5xf32>
    %865 = vector.multi_reduction <add>, %864, %cst_118 [1] : vector<5x16xf32> to vector<5xf32>
    %866 = vector.shape_cast %865 : vector<5xf32> to vector<5x1xf32>
    %cst_119 = arith.constant dense<0.000000e+00> : vector<1xf32>
    %867 = vector.multi_reduction <add>, %866, %cst_119 [0] : vector<5x1xf32> to vector<1xf32>
    %868 = vector.shape_cast %867 : vector<1xf32> to vector<1x1xf32>
    %869 = vector.extract_strided_slice %862 {offsets = [5, 0], sizes = [5, 16], strides = [1, 1]} : vector<20x16xf32> to vector<5x16xf32>
    %870 = arith.mulf %861, %869 : vector<5x16xf32>
    %cst_120 = arith.constant dense<0.000000e+00> : vector<5xf32>
    %871 = vector.multi_reduction <add>, %870, %cst_120 [1] : vector<5x16xf32> to vector<5xf32>
    %872 = vector.shape_cast %871 : vector<5xf32> to vector<5x1xf32>
    %cst_121 = arith.constant dense<0.000000e+00> : vector<1xf32>
    %873 = vector.multi_reduction <add>, %872, %cst_121 [0] : vector<5x1xf32> to vector<1xf32>
    %874 = vector.shape_cast %873 : vector<1xf32> to vector<1x1xf32>
    %875 = vector.extract_strided_slice %862 {offsets = [10, 0], sizes = [5, 16], strides = [1, 1]} : vector<20x16xf32> to vector<5x16xf32>
    %876 = arith.mulf %861, %875 : vector<5x16xf32>
    %cst_122 = arith.constant dense<0.000000e+00> : vector<5xf32>
    %877 = vector.multi_reduction <add>, %876, %cst_122 [1] : vector<5x16xf32> to vector<5xf32>
    %878 = vector.shape_cast %877 : vector<5xf32> to vector<5x1xf32>
    %cst_123 = arith.constant dense<0.000000e+00> : vector<1xf32>
    %879 = vector.multi_reduction <add>, %878, %cst_123 [0] : vector<5x1xf32> to vector<1xf32>
    %880 = vector.shape_cast %879 : vector<1xf32> to vector<1x1xf32>
    %881 = vector.extract_strided_slice %862 {offsets = [15, 0], sizes = [5, 16], strides = [1, 1]} : vector<20x16xf32> to vector<5x16xf32>
    %882 = arith.mulf %861, %881 : vector<5x16xf32>
    %cst_124 = arith.constant dense<0.000000e+00> : vector<5xf32>
    %883 = vector.multi_reduction <add>, %882, %cst_124 [1] : vector<5x16xf32> to vector<5xf32>
    %884 = vector.shape_cast %883 : vector<5xf32> to vector<5x1xf32>
    %cst_125 = arith.constant dense<0.000000e+00> : vector<1xf32>
    %885 = vector.multi_reduction <add>, %884, %cst_125 [0] : vector<5x1xf32> to vector<1xf32>
    %886 = vector.shape_cast %885 : vector<1xf32> to vector<1x1xf32>
    %887 = tpu.concatenate %868, %874, %880, %886 in 1 : vector<1x1xf32>, vector<1x1xf32>, vector<1x1xf32>, vector<1x1xf32> -> vector<1x4xf32>
    %c0_126 = arith.constant 0 : index
    %c0_127 = arith.constant 0 : index
    %888 = vector.load %arg4[%c0_126, %c0_127] : memref<1x4xf32, #tpu.memory_space<vmem>>, vector<1x4xf32>
    %889 = arith.addf %887, %888 : vector<1x4xf32>
    %cst_128 = arith.constant dense<0xFF800000> : vector<1xf32>
    %890 = vector.multi_reduction <maximumf>, %889, %cst_128 [1] : vector<1x4xf32> to vector<1xf32>
    %891 = vector.shape_cast %890 : vector<1xf32> to vector<1x1xf32>
    %892 = vector.broadcast %891 : vector<1x1xf32> to vector<1x4xf32>
    %893 = arith.subf %889, %892 : vector<1x4xf32>
    %894 = math.exp %893 : vector<1x4xf32>
    %cst_129 = arith.constant dense<0.000000e+00> : vector<1xf32>
    %895 = vector.multi_reduction <add>, %894, %cst_129 [1] : vector<1x4xf32> to vector<1xf32>
    %896 = vector.shape_cast %895 : vector<1xf32> to vector<1x1xf32>
    %897 = vector.broadcast %896 : vector<1x1xf32> to vector<1x4xf32>
    %898 = arith.divf %894, %897 : vector<1x4xf32>
    %c0_130 = arith.constant 0 : index
    %c0_131 = arith.constant 0 : index
    %899 = vector.load %arg5[%c0_130, %c0_131] : memref<1x4xf32, #tpu.memory_space<vmem>>, vector<1x4xf32>
    tpu.vector_store %arg5[%c0_130, %c0_131], %898 {strides = array<i32>} : memref<1x4xf32, #tpu.memory_space<vmem>>, vector<1x4xf32>,
    return
  }
}

</mosaic_0001>

<llo_original>
// kernel: forward.1
$region0: #{forward.1}
  #allocation0 [shape = 'u32[]', space=smem, size = 0x4, offset = 0x4, fixed_abs, tag = 'smem constant byte address 0x4 - core index']
  #allocation1 [shape = 'u32[144,128]{1,0:T(1,128)}', space=vmem, size = 0x12000, scoped, tag = 'internal scratch']
  %s0 = inlined_call_operand.vmem [shape: f32[16,16], index: 0, kind: input, shape index: {}]
  %s1 = inlined_call_operand.vmem [shape: f32[125], index: 1, kind: input, shape index: {}]
  %s2 = inlined_call_operand.vmem [shape: f32[5], index: 2, kind: input, shape index: {}]
  %s3 = inlined_call_operand.vmem [shape: f32[20,16], index: 3, kind: input, shape index: {}]
  %s4 = inlined_call_operand.vmem [shape: f32[1,4], index: 4, kind: input, shape index: {}]
  %s5 = inlined_call_operand.hbm [shape: f32[1,4], index: 5, kind: output, shape index: {}]
  %s6 = sld [smem:[#allocation0]]
  $region38: #{forward.1} parent=0
    _
  %s8 = ssub.s32 1, %s6
  %s9 = scalar_select 0, %s8, %s6
  $region1: #{forward.1} parent=0
    #allocation2 [shape = 'u8[512]{0}', space=smem, size = 0x200, scoped, tag = 'input window, operand 1, single buffered']
    #allocation3 [shape = 's32[1]{0}', space=sflag, size = 0x4, scoped, tag = 'scoped memory for forward.1']
    #allocation4 [shape = 's32[1]{0}', space=sflag, size = 0x4, scoped, tag = 'scoped memory for forward.1']
    #allocation5 [shape = 'u8[512]{0}', space=smem, size = 0x200, scoped, tag = 'input window, operand 2, single buffered']
    #allocation6 [shape = 's32[1]{0}', space=sflag, size = 0x4, scoped, tag = 'scoped memory for forward.1']
    #allocation7 [shape = 'u8[512]{0}', space=vmem, size = 0x400, scoped, tag = 'output window, operand 0, single buffered']
    %10 = vsyncpa [#allocation4], 0
    %11 = vsyncpa [#allocation6], 0
    %12 = vsyncpa [#allocation3], 0
    // Predicated region
    $region2: #{forward.1} parent=1 // pred_check
      _
    $region3: #{forward.1} parent=1 // pred_check_branch
      %14 = sbr.rel (0) target = $region5
    $region4: #{forward.1} parent=1 // pred_region
      _
    $region5: #{forward.1} parent=1 // pred_fallthru
      _
    // Predicated region
    $region6: #{forward.1} parent=1 // pred_check
      _
    $region7: #{forward.1} parent=1 // pred_check_branch
      %16 = sbr.rel (0) target = $region9
    $region8: #{forward.1} parent=1 // pred_region
      %s18 = ssub.s32 16, 16
      %19 = vsyncadd [#allocation4], %s18
      %s21 = sshll.u32 %s1, 4
      %s22 = int_to_ptr.vmem [resolvable:$true] %s21
      %24 = dma.vmem_to_smem %s22, 16, [#allocation2], [#allocation4]
    $region9: #{forward.1} parent=1 // pred_fallthru
      _
    // Predicated region
    $region10: #{forward.1} parent=1 // pred_check
      _
    $region11: #{forward.1} parent=1 // pred_check_branch
      %26 = sbr.rel (0) target = $region13
    $region12: #{forward.1} parent=1 // pred_region
      %s28 = ssub.s32 16, 16
      %29 = vsyncadd [#allocation6], %s28
      %s31 = sshll.u32 %s2, 4
      %s32 = int_to_ptr.vmem [resolvable:$true] %s31
      %34 = dma.vmem_to_smem %s32, 16, [#allocation5], [#allocation6]
    $region13: #{forward.1} parent=1 // pred_fallthru
      _
    // Predicated region
    $region14: #{forward.1} parent=1 // pred_check
      _
    $region15: #{forward.1} parent=1 // pred_check_branch
      %36 = sbr.rel (0) target = $region17
    $region16: #{forward.1} parent=1 // pred_region
      _
    $region17: #{forward.1} parent=1 // pred_fallthru
      _
    // Predicated region
    $region18: #{forward.1} parent=1 // pred_check
      _
    $region19: #{forward.1} parent=1 // pred_check_branch
      %38 = sbr.rel (0) target = $region21
    $region20: #{forward.1} parent=1 // pred_region
      _
    $region21: #{forward.1} parent=1 // pred_fallthru
      _
    // Predicated region
    $region22: #{forward.1} parent=1 // pred_check
      _
    $region23: #{forward.1} parent=1 // pred_check_branch
      %40 = sbr.rel (0) target = $region25
    $region24: #{forward.1} parent=1 // pred_region
      %41 = dma.done [#allocation4], 16
    $region25: #{forward.1} parent=1 // pred_fallthru
      _
    // Predicated region
    $region26: #{forward.1} parent=1 // pred_check
      _
    $region27: #{forward.1} parent=1 // pred_check_branch
      %43 = sbr.rel (0) target = $region29
    $region28: #{forward.1} parent=1 // pred_region
      %44 = dma.done [#allocation6], 16
    $region29: #{forward.1} parent=1 // pred_fallthru
      _
    %45 = sfence
    %v46 = vld [vmem:[%s0] sm:$0xff]
    %v47 = vld [vmem:[%s0 + $0x8] sm:$0xff]
    %s48 = sld [smem:[#allocation5]]
    %v49 = vstv %s48
    %v50 = vadd.f32 %v49, 0.0
    %s51 = sld [smem:[#allocation2]]
    %v52 = vstv %s51
    %v53 = vmul.f32 %v52, %v46
    %v54 = vmul.f32 %v52, %v47
    %v55 = vadd.f32 %v50, %v53
    %v56 = vadd.f32 %v50, %v54
    %s57 = sld [smem:[#allocation2 + $0x5]]
    %v58 = vstv %s57
    %v59 = vmul.f32 %v58, %v46
    %v60 = vmul.f32 %v58, %v47
    %63 = vrot.lane.b32.xlu0 %v59, 127
    %v64 = vpop.permute.xlu0 %63
    %65 = vrot.lane.b32.xlu0 %v60, 127
    %v66 = vpop.permute.xlu0 %65
    %v69 = vadd.f32 %v55, %v64
    %v70 = vadd.f32 %v56, %v66
    %s71 = sld [smem:[#allocation2 + $0xa]]
    %v72 = vstv %s71
    %v73 = vmul.f32 %v72, %v46
    %v74 = vmul.f32 %v72, %v47
    %77 = vrot.lane.b32.xlu0 %v73, 126
    %v78 = vpop.permute.xlu0 %77
    %79 = vrot.lane.b32.xlu0 %v74, 126
    %v80 = vpop.permute.xlu0 %79
    %v83 = vadd.f32 %v69, %v78
    %v84 = vadd.f32 %v70, %v80
    %s85 = sld [smem:[#allocation2 + $0xf]]
    %v86 = vstv %s85
    %v87 = vmul.f32 %v86, %v46
    %v88 = vmul.f32 %v86, %v47
    %91 = vrot.lane.b32.xlu0 %v87, 125
    %v92 = vpop.permute.xlu0 %91
    %93 = vrot.lane.b32.xlu0 %v88, 125
    %v94 = vpop.permute.xlu0 %93
    %v97 = vadd.f32 %v83, %v92
    %v98 = vadd.f32 %v84, %v94
    %s99 = sld [smem:[#allocation2 + $0x14]]
    %v100 = vstv %s99
    %v101 = vmul.f32 %v100, %v46
    %v102 = vmul.f32 %v100, %v47
    %105 = vrot.lane.b32.xlu0 %v101, 124
    %v106 = vpop.permute.xlu0 %105
    %107 = vrot.lane.b32.xlu0 %v102, 124
    %v108 = vpop.permute.xlu0 %107
    %v111 = vadd.f32 %v97, %v106
    %v112 = vadd.f32 %v98, %v108
    %s113 = sld [smem:[#allocation2 + $0x19]]
    %v114 = vstv %s113
    %v115 = vmul.f32 %v114, %v46
    %v116 = vmul.f32 %v114, %v47
    %vm119 = vcmask 1046528
    %v120 = vrot.slane %v115, 1
    %v121 = vrot.slane %v116, 1
    %v122 = vsel %vm119, %v120, %v121
    %v125 = vadd.f32 %v111, %v122
    %v126 = vadd.f32 %v112, %v121
    %s127 = sld [smem:[#allocation2 + $0x1e]]
    %v128 = vstv %s127
    %v129 = vmul.f32 %v128, %v46
    %v130 = vmul.f32 %v128, %v47
    %v133 = vrot.slane %v129, 1
    %v134 = vrot.slane %v130, 1
    %v135 = vsel %vm119, %v133, %v134
    %136 = vrot.lane.b32.xlu0 %v135, 127
    %v137 = vpop.permute.xlu0 %136
    %138 = vrot.lane.b32.xlu0 %v134, 127
    %v139 = vpop.permute.xlu0 %138
    %v142 = vadd.f32 %v125, %v137
    %v143 = vadd.f32 %v126, %v139
    %s144 = sld [smem:[#allocation2 + $0x23]]
    %v145 = vstv %s144
    %v146 = vmul.f32 %v145, %v46
    %v147 = vmul.f32 %v145, %v47
    %v150 = vrot.slane %v146, 1
    %v151 = vrot.slane %v147, 1
    %v152 = vsel %vm119, %v150, %v151
    %153 = vrot.lane.b32.xlu0 %v152, 126
    %v154 = vpop.permute.xlu0 %153
    %155 = vrot.lane.b32.xlu0 %v151, 126
    %v156 = vpop.permute.xlu0 %155
    %v159 = vadd.f32 %v142, %v154
    %v160 = vadd.f32 %v143, %v156
    %s161 = sld [smem:[#allocation2 + $0x28]]
    %v162 = vstv %s161
    %v163 = vmul.f32 %v162, %v46
    %v164 = vmul.f32 %v162, %v47
    %v167 = vrot.slane %v163, 1
    %v168 = vrot.slane %v164, 1
    %v169 = vsel %vm119, %v167, %v168
    %170 = vrot.lane.b32.xlu0 %v169, 125
    %v171 = vpop.permute.xlu0 %170
    %172 = vrot.lane.b32.xlu0 %v168, 125
    %v173 = vpop.permute.xlu0 %172
    %v176 = vadd.f32 %v159, %v171
    %v177 = vadd.f32 %v160, %v173
    %s178 = sld [smem:[#allocation2 + $0x2d]]
    %v179 = vstv %s178
    %v180 = vmul.f32 %v179, %v46
    %v181 = vmul.f32 %v179, %v47
    %v184 = vrot.slane %v180, 1
    %v185 = vrot.slane %v181, 1
    %v186 = vsel %vm119, %v184, %v185
    %187 = vrot.lane.b32.xlu0 %v186, 124
    %v188 = vpop.permute.xlu0 %187
    %189 = vrot.lane.b32.xlu0 %v185, 124
    %v190 = vpop.permute.xlu0 %189
    %v193 = vadd.f32 %v176, %v188
    %v194 = vadd.f32 %v177, %v190
    %s195 = sld [smem:[#allocation2 + $0x32]]
    %v196 = vstv %s195
    %v197 = vmul.f32 %v196, %v46
    %v198 = vmul.f32 %v196, %v47
    %vm201 = vcmask 1045504
    %v202 = vrot.slane %v197, 2
    %v203 = vrot.slane %v198, 2
    %v204 = vsel %vm201, %v202, %v203
    %v207 = vadd.f32 %v193, %v204
    %v208 = vadd.f32 %v194, %v203
    %s209 = sld [smem:[#allocation2 + $0x37]]
    %v210 = vstv %s209
    %v211 = vmul.f32 %v210, %v46
    %v212 = vmul.f32 %v210, %v47
    %v215 = vrot.slane %v211, 2
    %v216 = vrot.slane %v212, 2
    %v217 = vsel %vm201, %v215, %v216
    %218 = vrot.lane.b32.xlu0 %v217, 127
    %v219 = vpop.permute.xlu0 %218
    %220 = vrot.lane.b32.xlu0 %v216, 127
    %v221 = vpop.permute.xlu0 %220
    %v224 = vadd.f32 %v207, %v219
    %v225 = vadd.f32 %v208, %v221
    %s226 = sld [smem:[#allocation2 + $0x3c]]
    %v227 = vstv %s226
    %v228 = vmul.f32 %v227, %v46
    %v229 = vmul.f32 %v227, %v47
    %v232 = vrot.slane %v228, 2
    %v233 = vrot.slane %v229, 2
    %v234 = vsel %vm201, %v232, %v233
    %235 = vrot.lane.b32.xlu0 %v234, 126
    %v236 = vpop.permute.xlu0 %235
    %237 = vrot.lane.b32.xlu0 %v233, 126
    %v238 = vpop.permute.xlu0 %237
    %v241 = vadd.f32 %v224, %v236
    %v242 = vadd.f32 %v225, %v238
    %s243 = sld [smem:[#allocation2 + $0x41]]
    %v244 = vstv %s243
    %v245 = vmul.f32 %v244, %v46
    %v246 = vmul.f32 %v244, %v47
    %v249 = vrot.slane %v245, 2
    %v250 = vrot.slane %v246, 2
    %v251 = vsel %vm201, %v249, %v250
    %252 = vrot.lane.b32.xlu0 %v251, 125
    %v253 = vpop.permute.xlu0 %252
    %254 = vrot.lane.b32.xlu0 %v250, 125
    %v255 = vpop.permute.xlu0 %254
    %v258 = vadd.f32 %v241, %v253
    %v259 = vadd.f32 %v242, %v255
    %s260 = sld [smem:[#allocation2 + $0x46]]
    %v261 = vstv %s260
    %v262 = vmul.f32 %v261, %v46
    %v263 = vmul.f32 %v261, %v47
    %v266 = vrot.slane %v262, 2
    %v267 = vrot.slane %v263, 2
    %v268 = vsel %vm201, %v266, %v267
    %269 = vrot.lane.b32.xlu0 %v268, 124
    %v270 = vpop.permute.xlu0 %269
    %271 = vrot.lane.b32.xlu0 %v267, 124
    %v272 = vpop.permute.xlu0 %271
    %v275 = vadd.f32 %v258, %v270
    %v276 = vadd.f32 %v259, %v272
    %s277 = sld [smem:[#allocation2 + $0x4b]]
    %v278 = vstv %s277
    %v279 = vmul.f32 %v278, %v46
    %v280 = vmul.f32 %v278, %v47
    %vm283 = vcmask 1044480
    %v284 = vrot.slane %v279, 3
    %v285 = vrot.slane %v280, 3
    %v286 = vsel %vm283, %v284, %v285
    %v289 = vadd.f32 %v275, %v286
    %v290 = vadd.f32 %v276, %v285
    %s291 = sld [smem:[#allocation2 + $0x50]]
    %v292 = vstv %s291
    %v293 = vmul.f32 %v292, %v46
    %v294 = vmul.f32 %v292, %v47
    %v297 = vrot.slane %v293, 3
    %v298 = vrot.slane %v294, 3
    %v299 = vsel %vm283, %v297, %v298
    %300 = vrot.lane.b32.xlu0 %v299, 127
    %v301 = vpop.permute.xlu0 %300
    %302 = vrot.lane.b32.xlu0 %v298, 127
    %v303 = vpop.permute.xlu0 %302
    %v306 = vadd.f32 %v289, %v301
    %v307 = vadd.f32 %v290, %v303
    %s308 = sld [smem:[#allocation2 + $0x55]]
    %v309 = vstv %s308
    %v310 = vmul.f32 %v309, %v46
    %v311 = vmul.f32 %v309, %v47
    %v314 = vrot.slane %v310, 3
    %v315 = vrot.slane %v311, 3
    %v316 = vsel %vm283, %v314, %v315
    %317 = vrot.lane.b32.xlu0 %v316, 126
    %v318 = vpop.permute.xlu0 %317
    %319 = vrot.lane.b32.xlu0 %v315, 126
    %v320 = vpop.permute.xlu0 %319
    %v323 = vadd.f32 %v306, %v318
    %v324 = vadd.f32 %v307, %v320
    %s325 = sld [smem:[#allocation2 + $0x5a]]
    %v326 = vstv %s325
    %v327 = vmul.f32 %v326, %v46
    %v328 = vmul.f32 %v326, %v47
    %v331 = vrot.slane %v327, 3
    %v332 = vrot.slane %v328, 3
    %v333 = vsel %vm283, %v331, %v332
    %334 = vrot.lane.b32.xlu0 %v333, 125
    %v335 = vpop.permute.xlu0 %334
    %336 = vrot.lane.b32.xlu0 %v332, 125
    %v337 = vpop.permute.xlu0 %336
    %v340 = vadd.f32 %v323, %v335
    %v341 = vadd.f32 %v324, %v337
    %s342 = sld [smem:[#allocation2 + $0x5f]]
    %v343 = vstv %s342
    %v344 = vmul.f32 %v343, %v46
    %v345 = vmul.f32 %v343, %v47
    %v348 = vrot.slane %v344, 3
    %v349 = vrot.slane %v345, 3
    %v350 = vsel %vm283, %v348, %v349
    %351 = vrot.lane.b32.xlu0 %v350, 124
    %v352 = vpop.permute.xlu0 %351
    %353 = vrot.lane.b32.xlu0 %v349, 124
    %v354 = vpop.permute.xlu0 %353
    %v357 = vadd.f32 %v340, %v352
    %v358 = vadd.f32 %v341, %v354
    %s359 = sld [smem:[#allocation2 + $0x64]]
    %v360 = vstv %s359
    %v361 = vmul.f32 %v360, %v46
    %v362 = vmul.f32 %v360, %v47
    %vm365 = vcmask 1043456
    %v366 = vrot.slane %v361, 4
    %v367 = vrot.slane %v362, 4
    %v368 = vsel %vm365, %v366, %v367
    %v371 = vadd.f32 %v357, %v368
    %v372 = vadd.f32 %v358, %v367
    %s373 = sld [smem:[#allocation2 + $0x69]]
    %v374 = vstv %s373
    %v375 = vmul.f32 %v374, %v46
    %v376 = vmul.f32 %v374, %v47
    %v379 = vrot.slane %v375, 4
    %v380 = vrot.slane %v376, 4
    %v381 = vsel %vm365, %v379, %v380
    %382 = vrot.lane.b32.xlu0 %v381, 127
    %v383 = vpop.permute.xlu0 %382
    %384 = vrot.lane.b32.xlu0 %v380, 127
    %v385 = vpop.permute.xlu0 %384
    %v388 = vadd.f32 %v371, %v383
    %v389 = vadd.f32 %v372, %v385
    %s390 = sld [smem:[#allocation2 + $0x6e]]
    %v391 = vstv %s390
    %v392 = vmul.f32 %v391, %v46
    %v393 = vmul.f32 %v391, %v47
    %v396 = vrot.slane %v392, 4
    %v397 = vrot.slane %v393, 4
    %v398 = vsel %vm365, %v396, %v397
    %399 = vrot.lane.b32.xlu0 %v398, 126
    %v400 = vpop.permute.xlu0 %399
    %401 = vrot.lane.b32.xlu0 %v397, 126
    %v402 = vpop.permute.xlu0 %401
    %v405 = vadd.f32 %v388, %v400
    %v406 = vadd.f32 %v389, %v402
    %s407 = sld [smem:[#allocation2 + $0x73]]
    %v408 = vstv %s407
    %v409 = vmul.f32 %v408, %v46
    %v410 = vmul.f32 %v408, %v47
    %v413 = vrot.slane %v409, 4
    %v414 = vrot.slane %v410, 4
    %v415 = vsel %vm365, %v413, %v414
    %416 = vrot.lane.b32.xlu0 %v415, 125
    %v417 = vpop.permute.xlu0 %416
    %418 = vrot.lane.b32.xlu0 %v414, 125
    %v419 = vpop.permute.xlu0 %418
    %v422 = vadd.f32 %v405, %v417
    %v423 = vadd.f32 %v406, %v419
    %s424 = sld [smem:[#allocation2 + $0x78]]
    %v425 = vstv %s424
    %v426 = vmul.f32 %v425, %v46
    %v427 = vmul.f32 %v425, %v47
    %v430 = vrot.slane %v426, 4
    %v431 = vrot.slane %v427, 4
    %v432 = vsel %vm365, %v430, %v431
    %433 = vrot.lane.b32.xlu0 %v432, 124
    %v434 = vpop.permute.xlu0 %433
    %435 = vrot.lane.b32.xlu0 %v431, 124
    %v436 = vpop.permute.xlu0 %435
    %v439 = vadd.f32 %v422, %v434
    %v440 = vadd.f32 %v423, %v436
    %v441 = vmax.f32 %v439, 0.0
    %v442 = vmax.f32 %v440, 0.0
    %s443 = sld [smem:[#allocation5 + $0x1]]
    %v444 = vstv %s443
    %v445 = vadd.f32 %v444, 0.0
    %s446 = sld [smem:[#allocation2 + $0x1]]
    %v447 = vstv %s446
    %v448 = vmul.f32 %v447, %v46
    %v449 = vmul.f32 %v447, %v47
    %v450 = vadd.f32 %v445, %v448
    %v451 = vadd.f32 %v445, %v449
    %s452 = sld [smem:[#allocation2 + $0x6]]
    %v453 = vstv %s452
    %v454 = vmul.f32 %v453, %v46
    %v455 = vmul.f32 %v453, %v47
    %458 = vrot.lane.b32.xlu0 %v454, 127
    %v459 = vpop.permute.xlu0 %458
    %460 = vrot.lane.b32.xlu0 %v455, 127
    %v461 = vpop.permute.xlu0 %460
    %v464 = vadd.f32 %v450, %v459
    %v465 = vadd.f32 %v451, %v461
    %s466 = sld [smem:[#allocation2 + $0xb]]
    %v467 = vstv %s466
    %v468 = vmul.f32 %v467, %v46
    %v469 = vmul.f32 %v467, %v47
    %472 = vrot.lane.b32.xlu0 %v468, 126
    %v473 = vpop.permute.xlu0 %472
    %474 = vrot.lane.b32.xlu0 %v469, 126
    %v475 = vpop.permute.xlu0 %474
    %v478 = vadd.f32 %v464, %v473
    %v479 = vadd.f32 %v465, %v475
    %s480 = sld [smem:[#allocation2 + $0x10]]
    %v481 = vstv %s480
    %v482 = vmul.f32 %v481, %v46
    %v483 = vmul.f32 %v481, %v47
    %486 = vrot.lane.b32.xlu0 %v482, 125
    %v487 = vpop.permute.xlu0 %486
    %488 = vrot.lane.b32.xlu0 %v483, 125
    %v489 = vpop.permute.xlu0 %488
    %v492 = vadd.f32 %v478, %v487
    %v493 = vadd.f32 %v479, %v489
    %s494 = sld [smem:[#allocation2 + $0x15]]
    %v495 = vstv %s494
    %v496 = vmul.f32 %v495, %v46
    %v497 = vmul.f32 %v495, %v47
    %500 = vrot.lane.b32.xlu0 %v496, 124
    %v501 = vpop.permute.xlu0 %500
    %502 = vrot.lane.b32.xlu0 %v497, 124
    %v503 = vpop.permute.xlu0 %502
    %v506 = vadd.f32 %v492, %v501
    %v507 = vadd.f32 %v493, %v503
    %s508 = sld [smem:[#allocation2 + $0x1a]]
    %v509 = vstv %s508
    %v510 = vmul.f32 %v509, %v46
    %v511 = vmul.f32 %v509, %v47
    %v514 = vrot.slane %v510, 1
    %v515 = vrot.slane %v511, 1
    %v516 = vsel %vm119, %v514, %v515
    %v519 = vadd.f32 %v506, %v516
    %v520 = vadd.f32 %v507, %v515
    %s521 = sld [smem:[#allocation2 + $0x1f]]
    %v522 = vstv %s521
    %v523 = vmul.f32 %v522, %v46
    %v524 = vmul.f32 %v522, %v47
    %v527 = vrot.slane %v523, 1
    %v528 = vrot.slane %v524, 1
    %v529 = vsel %vm119, %v527, %v528
    %530 = vrot.lane.b32.xlu0 %v529, 127
    %v531 = vpop.permute.xlu0 %530
    %532 = vrot.lane.b32.xlu0 %v528, 127
    %v533 = vpop.permute.xlu0 %532
    %v536 = vadd.f32 %v519, %v531
    %v537 = vadd.f32 %v520, %v533
    %s538 = sld [smem:[#allocation2 + $0x24]]
    %v539 = vstv %s538
    %v540 = vmul.f32 %v539, %v46
    %v541 = vmul.f32 %v539, %v47
    %v544 = vrot.slane %v540, 1
    %v545 = vrot.slane %v541, 1
    %v546 = vsel %vm119, %v544, %v545
    %547 = vrot.lane.b32.xlu0 %v546, 126
    %v548 = vpop.permute.xlu0 %547
    %549 = vrot.lane.b32.xlu0 %v545, 126
    %v550 = vpop.permute.xlu0 %549
    %v553 = vadd.f32 %v536, %v548
    %v554 = vadd.f32 %v537, %v550
    %s555 = sld [smem:[#allocation2 + $0x29]]
    %v556 = vstv %s555
    %v557 = vmul.f32 %v556, %v46
    %v558 = vmul.f32 %v556, %v47
    %v561 = vrot.slane %v557, 1
    %v562 = vrot.slane %v558, 1
    %v563 = vsel %vm119, %v561, %v562
    %564 = vrot.lane.b32.xlu0 %v563, 125
    %v565 = vpop.permute.xlu0 %564
    %566 = vrot.lane.b32.xlu0 %v562, 125
    %v567 = vpop.permute.xlu0 %566
    %v570 = vadd.f32 %v553, %v565
    %v571 = vadd.f32 %v554, %v567
    %s572 = sld [smem:[#allocation2 + $0x2e]]
    %v573 = vstv %s572
    %v574 = vmul.f32 %v573, %v46
    %v575 = vmul.f32 %v573, %v47
    %v578 = vrot.slane %v574, 1
    %v579 = vrot.slane %v575, 1
    %v580 = vsel %vm119, %v578, %v579
    %581 = vrot.lane.b32.xlu0 %v580, 124
    %v582 = vpop.permute.xlu0 %581
    %583 = vrot.lane.b32.xlu0 %v579, 124
    %v584 = vpop.permute.xlu0 %583
    %v587 = vadd.f32 %v570, %v582
    %v588 = vadd.f32 %v571, %v584
    %s589 = sld [smem:[#allocation2 + $0x33]]
    %v590 = vstv %s589
    %v591 = vmul.f32 %v590, %v46
    %v592 = vmul.f32 %v590, %v47
    %v595 = vrot.slane %v591, 2
    %v596 = vrot.slane %v592, 2
    %v597 = vsel %vm201, %v595, %v596
    %v600 = vadd.f32 %v587, %v597
    %v601 = vadd.f32 %v588, %v596
    %s602 = sld [smem:[#allocation2 + $0x38]]
    %v603 = vstv %s602
    %v604 = vmul.f32 %v603, %v46
    %v605 = vmul.f32 %v603, %v47
    %v608 = vrot.slane %v604, 2
    %v609 = vrot.slane %v605, 2
    %v610 = vsel %vm201, %v608, %v609
    %611 = vrot.lane.b32.xlu0 %v610, 127
    %v612 = vpop.permute.xlu0 %611
    %613 = vrot.lane.b32.xlu0 %v609, 127
    %v614 = vpop.permute.xlu0 %613
    %v617 = vadd.f32 %v600, %v612
    %v618 = vadd.f32 %v601, %v614
    %s619 = sld [smem:[#allocation2 + $0x3d]]
    %v620 = vstv %s619
    %v621 = vmul.f32 %v620, %v46
    %v622 = vmul.f32 %v620, %v47
    %v625 = vrot.slane %v621, 2
    %v626 = vrot.slane %v622, 2
    %v627 = vsel %vm201, %v625, %v626
    %628 = vrot.lane.b32.xlu0 %v627, 126
    %v629 = vpop.permute.xlu0 %628
    %630 = vrot.lane.b32.xlu0 %v626, 126
    %v631 = vpop.permute.xlu0 %630
    %v634 = vadd.f32 %v617, %v629
    %v635 = vadd.f32 %v618, %v631
    %s636 = sld [smem:[#allocation2 + $0x42]]
    %v637 = vstv %s636
    %v638 = vmul.f32 %v637, %v46
    %v639 = vmul.f32 %v637, %v47
    %v642 = vrot.slane %v638, 2
    %v643 = vrot.slane %v639, 2
    %v644 = vsel %vm201, %v642, %v643
    %645 = vrot.lane.b32.xlu0 %v644, 125
    %v646 = vpop.permute.xlu0 %645
    %647 = vrot.lane.b32.xlu0 %v643, 125
    %v648 = vpop.permute.xlu0 %647
    %v651 = vadd.f32 %v634, %v646
    %v652 = vadd.f32 %v635, %v648
    %s653 = sld [smem:[#allocation2 + $0x47]]
    %v654 = vstv %s653
    %v655 = vmul.f32 %v654, %v46
    %v656 = vmul.f32 %v654, %v47
    %v659 = vrot.slane %v655, 2
    %v660 = vrot.slane %v656, 2
    %v661 = vsel %vm201, %v659, %v660
    %662 = vrot.lane.b32.xlu0 %v661, 124
    %v663 = vpop.permute.xlu0 %662
    %664 = vrot.lane.b32.xlu0 %v660, 124
    %v665 = vpop.permute.xlu0 %664
    %v668 = vadd.f32 %v651, %v663
    %v669 = vadd.f32 %v652, %v665
    %s670 = sld [smem:[#allocation2 + $0x4c]]
    %v671 = vstv %s670
    %v672 = vmul.f32 %v671, %v46
    %v673 = vmul.f32 %v671, %v47
    %v676 = vrot.slane %v672, 3
    %v677 = vrot.slane %v673, 3
    %v678 = vsel %vm283, %v676, %v677
    %v681 = vadd.f32 %v668, %v678
    %v682 = vadd.f32 %v669, %v677
    %s683 = sld [smem:[#allocation2 + $0x51]]
    %v684 = vstv %s683
    %v685 = vmul.f32 %v684, %v46
    %v686 = vmul.f32 %v684, %v47
    %v689 = vrot.slane %v685, 3
    %v690 = vrot.slane %v686, 3
    %v691 = vsel %vm283, %v689, %v690
    %692 = vrot.lane.b32.xlu0 %v691, 127
    %v693 = vpop.permute.xlu0 %692
    %694 = vrot.lane.b32.xlu0 %v690, 127
    %v695 = vpop.permute.xlu0 %694
    %v698 = vadd.f32 %v681, %v693
    %v699 = vadd.f32 %v682, %v695
    %s700 = sld [smem:[#allocation2 + $0x56]]
    %v701 = vstv %s700
    %v702 = vmul.f32 %v701, %v46
    %v703 = vmul.f32 %v701, %v47
    %v706 = vrot.slane %v702, 3
    %v707 = vrot.slane %v703, 3
    %v708 = vsel %vm283, %v706, %v707
    %709 = vrot.lane.b32.xlu0 %v708, 126
    %v710 = vpop.permute.xlu0 %709
    %711 = vrot.lane.b32.xlu0 %v707, 126
    %v712 = vpop.permute.xlu0 %711
    %v715 = vadd.f32 %v698, %v710
    %v716 = vadd.f32 %v699, %v712
    %s717 = sld [smem:[#allocation2 + $0x5b]]
    %v718 = vstv %s717
    %v719 = vmul.f32 %v718, %v46
    %v720 = vmul.f32 %v718, %v47
    %v723 = vrot.slane %v719, 3
    %v724 = vrot.slane %v720, 3
    %v725 = vsel %vm283, %v723, %v724
    %726 = vrot.lane.b32.xlu0 %v725, 125
    %v727 = vpop.permute.xlu0 %726
    %728 = vrot.lane.b32.xlu0 %v724, 125
    %v729 = vpop.permute.xlu0 %728
    %v732 = vadd.f32 %v715, %v727
    %v733 = vadd.f32 %v716, %v729
    %s734 = sld [smem:[#allocation2 + $0x60]]
    %v735 = vstv %s734
    %v736 = vmul.f32 %v735, %v46
    %v737 = vmul.f32 %v735, %v47
    %v740 = vrot.slane %v736, 3
    %v741 = vrot.slane %v737, 3
    %v742 = vsel %vm283, %v740, %v741
    %743 = vrot.lane.b32.xlu0 %v742, 124
    %v744 = vpop.permute.xlu0 %743
    %745 = vrot.lane.b32.xlu0 %v741, 124
    %v746 = vpop.permute.xlu0 %745
    %v749 = vadd.f32 %v732, %v744
    %v750 = vadd.f32 %v733, %v746
    %s751 = sld [smem:[#allocation2 + $0x65]]
    %v752 = vstv %s751
    %v753 = vmul.f32 %v752, %v46
    %v754 = vmul.f32 %v752, %v47
    %v757 = vrot.slane %v753, 4
    %v758 = vrot.slane %v754, 4
    %v759 = vsel %vm365, %v757, %v758
    %v762 = vadd.f32 %v749, %v759
    %v763 = vadd.f32 %v750, %v758
    %s764 = sld [smem:[#allocation2 + $0x6a]]
    %v765 = vstv %s764
    %v766 = vmul.f32 %v765, %v46
    %v767 = vmul.f32 %v765, %v47
    %v770 = vrot.slane %v766, 4
    %v771 = vrot.slane %v767, 4
    %v772 = vsel %vm365, %v770, %v771
    %773 = vrot.lane.b32.xlu0 %v772, 127
    %v774 = vpop.permute.xlu0 %773
    %775 = vrot.lane.b32.xlu0 %v771, 127
    %v776 = vpop.permute.xlu0 %775
    %v779 = vadd.f32 %v762, %v774
    %v780 = vadd.f32 %v763, %v776
    %s781 = sld [smem:[#allocation2 + $0x6f]]
    %v782 = vstv %s781
    %v783 = vmul.f32 %v782, %v46
    %v784 = vmul.f32 %v782, %v47
    %v787 = vrot.slane %v783, 4
    %v788 = vrot.slane %v784, 4
    %v789 = vsel %vm365, %v787, %v788
    %790 = vrot.lane.b32.xlu0 %v789, 126
    %v791 = vpop.permute.xlu0 %790
    %792 = vrot.lane.b32.xlu0 %v788, 126
    %v793 = vpop.permute.xlu0 %792
    %v796 = vadd.f32 %v779, %v791
    %v797 = vadd.f32 %v780, %v793
    %s798 = sld [smem:[#allocation2 + $0x74]]
    %v799 = vstv %s798
    %v800 = vmul.f32 %v799, %v46
    %v801 = vmul.f32 %v799, %v47
    %v804 = vrot.slane %v800, 4
    %v805 = vrot.slane %v801, 4
    %v806 = vsel %vm365, %v804, %v805
    %807 = vrot.lane.b32.xlu0 %v806, 125
    %v808 = vpop.permute.xlu0 %807
    %809 = vrot.lane.b32.xlu0 %v805, 125
    %v810 = vpop.permute.xlu0 %809
    %v813 = vadd.f32 %v796, %v808
    %v814 = vadd.f32 %v797, %v810
    %s815 = sld [smem:[#allocation2 + $0x79]]
    %v816 = vstv %s815
    %v817 = vmul.f32 %v816, %v46
    %v818 = vmul.f32 %v816, %v47
    %v821 = vrot.slane %v817, 4
    %v822 = vrot.slane %v818, 4
    %v823 = vsel %vm365, %v821, %v822
    %824 = vrot.lane.b32.xlu0 %v823, 124
    %v825 = vpop.permute.xlu0 %824
    %826 = vrot.lane.b32.xlu0 %v822, 124
    %v827 = vpop.permute.xlu0 %826
    %v830 = vadd.f32 %v813, %v825
    %v831 = vadd.f32 %v814, %v827
    %v832 = vmax.f32 %v830, 0.0
    %v833 = vmax.f32 %v831, 0.0
    %s834 = sld [smem:[#allocation5 + $0x2]]
    %v835 = vstv %s834
    %v836 = vadd.f32 %v835, 0.0
    %s837 = sld [smem:[#allocation2 + $0x2]]
    %v838 = vstv %s837
    %v839 = vmul.f32 %v838, %v46
    %v840 = vmul.f32 %v838, %v47
    %v841 = vadd.f32 %v836, %v839
    %v842 = vadd.f32 %v836, %v840
    %s843 = sld [smem:[#allocation2 + $0x7]]
    %v844 = vstv %s843
    %v845 = vmul.f32 %v844, %v46
    %v846 = vmul.f32 %v844, %v47
    %849 = vrot.lane.b32.xlu0 %v845, 127
    %v850 = vpop.permute.xlu0 %849
    %851 = vrot.lane.b32.xlu0 %v846, 127
    %v852 = vpop.permute.xlu0 %851
    %v855 = vadd.f32 %v841, %v850
    %v856 = vadd.f32 %v842, %v852
    %s857 = sld [smem:[#allocation2 + $0xc]]
    %v858 = vstv %s857
    %v859 = vmul.f32 %v858, %v46
    %v860 = vmul.f32 %v858, %v47
    %863 = vrot.lane.b32.xlu0 %v859, 126
    %v864 = vpop.permute.xlu0 %863
    %865 = vrot.lane.b32.xlu0 %v860, 126
    %v866 = vpop.permute.xlu0 %865
    %v869 = vadd.f32 %v855, %v864
    %v870 = vadd.f32 %v856, %v866
    %s871 = sld [smem:[#allocation2 + $0x11]]
    %v872 = vstv %s871
    %v873 = vmul.f32 %v872, %v46
    %v874 = vmul.f32 %v872, %v47
    %877 = vrot.lane.b32.xlu0 %v873, 125
    %v878 = vpop.permute.xlu0 %877
    %879 = vrot.lane.b32.xlu0 %v874, 125
    %v880 = vpop.permute.xlu0 %879
    %v883 = vadd.f32 %v869, %v878
    %v884 = vadd.f32 %v870, %v880
    %s885 = sld [smem:[#allocation2 + $0x16]]
    %v886 = vstv %s885
    %v887 = vmul.f32 %v886, %v46
    %v888 = vmul.f32 %v886, %v47
    %891 = vrot.lane.b32.xlu0 %v887, 124
    %v892 = vpop.permute.xlu0 %891
    %893 = vrot.lane.b32.xlu0 %v888, 124
    %v894 = vpop.permute.xlu0 %893
    %v897 = vadd.f32 %v883, %v892
    %v898 = vadd.f32 %v884, %v894
    %s899 = sld [smem:[#allocation2 + $0x1b]]
    %v900 = vstv %s899
    %v901 = vmul.f32 %v900, %v46
    %v902 = vmul.f32 %v900, %v47
    %v905 = vrot.slane %v901, 1
    %v906 = vrot.slane %v902, 1
    %v907 = vsel %vm119, %v905, %v906
    %v910 = vadd.f32 %v897, %v907
    %v911 = vadd.f32 %v898, %v906
    %s912 = sld [smem:[#allocation2 + $0x20]]
    %v913 = vstv %s912
    %v914 = vmul.f32 %v913, %v46
    %v915 = vmul.f32 %v913, %v47
    %v918 = vrot.slane %v914, 1
    %v919 = vrot.slane %v915, 1
    %v920 = vsel %vm119, %v918, %v919
    %921 = vrot.lane.b32.xlu0 %v920, 127
    %v922 = vpop.permute.xlu0 %921
    %923 = vrot.lane.b32.xlu0 %v919, 127
    %v924 = vpop.permute.xlu0 %923
    %v927 = vadd.f32 %v910, %v922
    %v928 = vadd.f32 %v911, %v924
    %s929 = sld [smem:[#allocation2 + $0x25]]
    %v930 = vstv %s929
    %v931 = vmul.f32 %v930, %v46
    %v932 = vmul.f32 %v930, %v47
    %v935 = vrot.slane %v931, 1
    %v936 = vrot.slane %v932, 1
    %v937 = vsel %vm119, %v935, %v936
    %938 = vrot.lane.b32.xlu0 %v937, 126
    %v939 = vpop.permute.xlu0 %938
    %940 = vrot.lane.b32.xlu0 %v936, 126
    %v941 = vpop.permute.xlu0 %940
    %v944 = vadd.f32 %v927, %v939
    %v945 = vadd.f32 %v928, %v941
    %s946 = sld [smem:[#allocation2 + $0x2a]]
    %v947 = vstv %s946
    %v948 = vmul.f32 %v947, %v46
    %v949 = vmul.f32 %v947, %v47
    %v952 = vrot.slane %v948, 1
    %v953 = vrot.slane %v949, 1
    %v954 = vsel %vm119, %v952, %v953
    %955 = vrot.lane.b32.xlu0 %v954, 125
    %v956 = vpop.permute.xlu0 %955
    %957 = vrot.lane.b32.xlu0 %v953, 125
    %v958 = vpop.permute.xlu0 %957
    %v961 = vadd.f32 %v944, %v956
    %v962 = vadd.f32 %v945, %v958
    %s963 = sld [smem:[#allocation2 + $0x2f]]
    %v964 = vstv %s963
    %v965 = vmul.f32 %v964, %v46
    %v966 = vmul.f32 %v964, %v47
    %v969 = vrot.slane %v965, 1
    %v970 = vrot.slane %v966, 1
    %v971 = vsel %vm119, %v969, %v970
    %972 = vrot.lane.b32.xlu0 %v971, 124
    %v973 = vpop.permute.xlu0 %972
    %974 = vrot.lane.b32.xlu0 %v970, 124
    %v975 = vpop.permute.xlu0 %974
    %v978 = vadd.f32 %v961, %v973
    %v979 = vadd.f32 %v962, %v975
    %s980 = sld [smem:[#allocation2 + $0x34]]
    %v981 = vstv %s980
    %v982 = vmul.f32 %v981, %v46
    %v983 = vmul.f32 %v981, %v47
    %v986 = vrot.slane %v982, 2
    %v987 = vrot.slane %v983, 2
    %v988 = vsel %vm201, %v986, %v987
    %v991 = vadd.f32 %v978, %v988
    %v992 = vadd.f32 %v979, %v987
    %s993 = sld [smem:[#allocation2 + $0x39]]
    %v994 = vstv %s993
    %v995 = vmul.f32 %v994, %v46
    %v996 = vmul.f32 %v994, %v47
    %v999 = vrot.slane %v995, 2
    %v1000 = vrot.slane %v996, 2
    %v1001 = vsel %vm201, %v999, %v1000
    %1002 = vrot.lane.b32.xlu0 %v1001, 127
    %v1003 = vpop.permute.xlu0 %1002
    %1004 = vrot.lane.b32.xlu0 %v1000, 127
    %v1005 = vpop.permute.xlu0 %1004
    %v1008 = vadd.f32 %v991, %v1003
    %v1009 = vadd.f32 %v992, %v1005
    %s1010 = sld [smem:[#allocation2 + $0x3e]]
    %v1011 = vstv %s1010
    %v1012 = vmul.f32 %v1011, %v46
    %v1013 = vmul.f32 %v1011, %v47
    %v1016 = vrot.slane %v1012, 2
    %v1017 = vrot.slane %v1013, 2
    %v1018 = vsel %vm201, %v1016, %v1017
    %1019 = vrot.lane.b32.xlu0 %v1018, 126
    %v1020 = vpop.permute.xlu0 %1019
    %1021 = vrot.lane.b32.xlu0 %v1017, 126
    %v1022 = vpop.permute.xlu0 %1021
    %v1025 = vadd.f32 %v1008, %v1020
    %v1026 = vadd.f32 %v1009, %v1022
    %s1027 = sld [smem:[#allocation2 + $0x43]]
    %v1028 = vstv %s1027
    %v1029 = vmul.f32 %v1028, %v46
    %v1030 = vmul.f32 %v1028, %v47
    %v1033 = vrot.slane %v1029, 2
    %v1034 = vrot.slane %v1030, 2
    %v1035 = vsel %vm201, %v1033, %v1034
    %1036 = vrot.lane.b32.xlu0 %v1035, 125
    %v1037 = vpop.permute.xlu0 %1036
    %1038 = vrot.lane.b32.xlu0 %v1034, 125
    %v1039 = vpop.permute.xlu0 %1038
    %v1042 = vadd.f32 %v1025, %v1037
    %v1043 = vadd.f32 %v1026, %v1039
    %s1044 = sld [smem:[#allocation2 + $0x48]]
    %v1045 = vstv %s1044
    %v1046 = vmul.f32 %v1045, %v46
    %v1047 = vmul.f32 %v1045, %v47
    %v1050 = vrot.slane %v1046, 2
    %v1051 = vrot.slane %v1047, 2
    %v1052 = vsel %vm201, %v1050, %v1051
    %1053 = vrot.lane.b32.xlu0 %v1052, 124
    %v1054 = vpop.permute.xlu0 %1053
    %1055 = vrot.lane.b32.xlu0 %v1051, 124
    %v1056 = vpop.permute.xlu0 %1055
    %v1059 = vadd.f32 %v1042, %v1054
    %v1060 = vadd.f32 %v1043, %v1056
    %s1061 = sld [smem:[#allocation2 + $0x4d]]
    %v1062 = vstv %s1061
    %v1063 = vmul.f32 %v1062, %v46
    %v1064 = vmul.f32 %v1062, %v47
    %v1067 = vrot.slane %v1063, 3
    %v1068 = vrot.slane %v1064, 3
    %v1069 = vsel %vm283, %v1067, %v1068
    %v1072 = vadd.f32 %v1059, %v1069
    %v1073 = vadd.f32 %v1060, %v1068
    %s1074 = sld [smem:[#allocation2 + $0x52]]
    %v1075 = vstv %s1074
    %v1076 = vmul.f32 %v1075, %v46
    %v1077 = vmul.f32 %v1075, %v47
    %v1080 = vrot.slane %v1076, 3
    %v1081 = vrot.slane %v1077, 3
    %v1082 = vsel %vm283, %v1080, %v1081
    %1083 = vrot.lane.b32.xlu0 %v1082, 127
    %v1084 = vpop.permute.xlu0 %1083
    %1085 = vrot.lane.b32.xlu0 %v1081, 127
    %v1086 = vpop.permute.xlu0 %1085
    %v1089 = vadd.f32 %v1072, %v1084
    %v1090 = vadd.f32 %v1073, %v1086
    %s1091 = sld [smem:[#allocation2 + $0x57]]
    %v1092 = vstv %s1091
    %v1093 = vmul.f32 %v1092, %v46
    %v1094 = vmul.f32 %v1092, %v47
    %v1097 = vrot.slane %v1093, 3
    %v1098 = vrot.slane %v1094, 3
    %v1099 = vsel %vm283, %v1097, %v1098
    %1100 = vrot.lane.b32.xlu0 %v1099, 126
    %v1101 = vpop.permute.xlu0 %1100
    %1102 = vrot.lane.b32.xlu0 %v1098, 126
    %v1103 = vpop.permute.xlu0 %1102
    %v1106 = vadd.f32 %v1089, %v1101
    %v1107 = vadd.f32 %v1090, %v1103
    %s1108 = sld [smem:[#allocation2 + $0x5c]]
    %v1109 = vstv %s1108
    %v1110 = vmul.f32 %v1109, %v46
    %v1111 = vmul.f32 %v1109, %v47
    %v1114 = vrot.slane %v1110, 3
    %v1115 = vrot.slane %v1111, 3
    %v1116 = vsel %vm283, %v1114, %v1115
    %1117 = vrot.lane.b32.xlu0 %v1116, 125
    %v1118 = vpop.permute.xlu0 %1117
    %1119 = vrot.lane.b32.xlu0 %v1115, 125
    %v1120 = vpop.permute.xlu0 %1119
    %v1123 = vadd.f32 %v1106, %v1118
    %v1124 = vadd.f32 %v1107, %v1120
    %s1125 = sld [smem:[#allocation2 + $0x61]]
    %v1126 = vstv %s1125
    %v1127 = vmul.f32 %v1126, %v46
    %v1128 = vmul.f32 %v1126, %v47
    %v1131 = vrot.slane %v1127, 3
    %v1132 = vrot.slane %v1128, 3
    %v1133 = vsel %vm283, %v1131, %v1132
    %1134 = vrot.lane.b32.xlu0 %v1133, 124
    %v1135 = vpop.permute.xlu0 %1134
    %1136 = vrot.lane.b32.xlu0 %v1132, 124
    %v1137 = vpop.permute.xlu0 %1136
    %v1140 = vadd.f32 %v1123, %v1135
    %v1141 = vadd.f32 %v1124, %v1137
    %s1142 = sld [smem:[#allocation2 + $0x66]]
    %v1143 = vstv %s1142
    %v1144 = vmul.f32 %v1143, %v46
    %v1145 = vmul.f32 %v1143, %v47
    %v1148 = vrot.slane %v1144, 4
    %v1149 = vrot.slane %v1145, 4
    %v1150 = vsel %vm365, %v1148, %v1149
    %v1153 = vadd.f32 %v1140, %v1150
    %v1154 = vadd.f32 %v1141, %v1149
    %s1155 = sld [smem:[#allocation2 + $0x6b]]
    %v1156 = vstv %s1155
    %v1157 = vmul.f32 %v1156, %v46
    %v1158 = vmul.f32 %v1156, %v47
    %v1161 = vrot.slane %v1157, 4
    %v1162 = vrot.slane %v1158, 4
    %v1163 = vsel %vm365, %v1161, %v1162
    %1164 = vrot.lane.b32.xlu0 %v1163, 127
    %v1165 = vpop.permute.xlu0 %1164
    %1166 = vrot.lane.b32.xlu0 %v1162, 127
    %v1167 = vpop.permute.xlu0 %1166
    %v1170 = vadd.f32 %v1153, %v1165
    %v1171 = vadd.f32 %v1154, %v1167
    %s1172 = sld [smem:[#allocation2 + $0x70]]
    %v1173 = vstv %s1172
    %v1174 = vmul.f32 %v1173, %v46
    %v1175 = vmul.f32 %v1173, %v47
    %v1178 = vrot.slane %v1174, 4
    %v1179 = vrot.slane %v1175, 4
    %v1180 = vsel %vm365, %v1178, %v1179
    %1181 = vrot.lane.b32.xlu0 %v1180, 126
    %v1182 = vpop.permute.xlu0 %1181
    %1183 = vrot.lane.b32.xlu0 %v1179, 126
    %v1184 = vpop.permute.xlu0 %1183
    %v1187 = vadd.f32 %v1170, %v1182
    %v1188 = vadd.f32 %v1171, %v1184
    %s1189 = sld [smem:[#allocation2 + $0x75]]
    %v1190 = vstv %s1189
    %v1191 = vmul.f32 %v1190, %v46
    %v1192 = vmul.f32 %v1190, %v47
    %v1195 = vrot.slane %v1191, 4
    %v1196 = vrot.slane %v1192, 4
    %v1197 = vsel %vm365, %v1195, %v1196
    %1198 = vrot.lane.b32.xlu0 %v1197, 125
    %v1199 = vpop.permute.xlu0 %1198
    %1200 = vrot.lane.b32.xlu0 %v1196, 125
    %v1201 = vpop.permute.xlu0 %1200
    %v1204 = vadd.f32 %v1187, %v1199
    %v1205 = vadd.f32 %v1188, %v1201
    %s1206 = sld [smem:[#allocation2 + $0x7a]]
    %v1207 = vstv %s1206
    %v1208 = vmul.f32 %v1207, %v46
    %v1209 = vmul.f32 %v1207, %v47
    %v1212 = vrot.slane %v1208, 4
    %v1213 = vrot.slane %v1209, 4
    %v1214 = vsel %vm365, %v1212, %v1213
    %1215 = vrot.lane.b32.xlu0 %v1214, 124
    %v1216 = vpop.permute.xlu0 %1215
    %1217 = vrot.lane.b32.xlu0 %v1213, 124
    %v1218 = vpop.permute.xlu0 %1217
    %v1221 = vadd.f32 %v1204, %v1216
    %v1222 = vadd.f32 %v1205, %v1218
    %v1223 = vmax.f32 %v1221, 0.0
    %v1224 = vmax.f32 %v1222, 0.0
    %s1225 = sld [smem:[#allocation5 + $0x3]]
    %v1226 = vstv %s1225
    %v1227 = vadd.f32 %v1226, 0.0
    %s1228 = sld [smem:[#allocation2 + $0x3]]
    %v1229 = vstv %s1228
    %v1230 = vmul.f32 %v1229, %v46
    %v1231 = vmul.f32 %v1229, %v47
    %v1232 = vadd.f32 %v1227, %v1230
    %v1233 = vadd.f32 %v1227, %v1231
    %s1234 = sld [smem:[#allocation2 + $0x8]]
    %v1235 = vstv %s1234
    %v1236 = vmul.f32 %v1235, %v46
    %v1237 = vmul.f32 %v1235, %v47
    %1240 = vrot.lane.b32.xlu0 %v1236, 127
    %v1241 = vpop.permute.xlu0 %1240
    %1242 = vrot.lane.b32.xlu0 %v1237, 127
    %v1243 = vpop.permute.xlu0 %1242
    %v1246 = vadd.f32 %v1232, %v1241
    %v1247 = vadd.f32 %v1233, %v1243
    %s1248 = sld [smem:[#allocation2 + $0xd]]
    %v1249 = vstv %s1248
    %v1250 = vmul.f32 %v1249, %v46
    %v1251 = vmul.f32 %v1249, %v47
    %1254 = vrot.lane.b32.xlu0 %v1250, 126
    %v1255 = vpop.permute.xlu0 %1254
    %1256 = vrot.lane.b32.xlu0 %v1251, 126
    %v1257 = vpop.permute.xlu0 %1256
    %v1260 = vadd.f32 %v1246, %v1255
    %v1261 = vadd.f32 %v1247, %v1257
    %s1262 = sld [smem:[#allocation2 + $0x12]]
    %v1263 = vstv %s1262
    %v1264 = vmul.f32 %v1263, %v46
    %v1265 = vmul.f32 %v1263, %v47
    %1268 = vrot.lane.b32.xlu0 %v1264, 125
    %v1269 = vpop.permute.xlu0 %1268
    %1270 = vrot.lane.b32.xlu0 %v1265, 125
    %v1271 = vpop.permute.xlu0 %1270
    %v1274 = vadd.f32 %v1260, %v1269
    %v1275 = vadd.f32 %v1261, %v1271
    %s1276 = sld [smem:[#allocation2 + $0x17]]
    %v1277 = vstv %s1276
    %v1278 = vmul.f32 %v1277, %v46
    %v1279 = vmul.f32 %v1277, %v47
    %1282 = vrot.lane.b32.xlu0 %v1278, 124
    %v1283 = vpop.permute.xlu0 %1282
    %1284 = vrot.lane.b32.xlu0 %v1279, 124
    %v1285 = vpop.permute.xlu0 %1284
    %v1288 = vadd.f32 %v1274, %v1283
    %v1289 = vadd.f32 %v1275, %v1285
    %s1290 = sld [smem:[#allocation2 + $0x1c]]
    %v1291 = vstv %s1290
    %v1292 = vmul.f32 %v1291, %v46
    %v1293 = vmul.f32 %v1291, %v47
    %v1296 = vrot.slane %v1292, 1
    %v1297 = vrot.slane %v1293, 1
    %v1298 = vsel %vm119, %v1296, %v1297
    %v1301 = vadd.f32 %v1288, %v1298
    %v1302 = vadd.f32 %v1289, %v1297
    %s1303 = sld [smem:[#allocation2 + $0x21]]
    %v1304 = vstv %s1303
    %v1305 = vmul.f32 %v1304, %v46
    %v1306 = vmul.f32 %v1304, %v47
    %v1309 = vrot.slane %v1305, 1
    %v1310 = vrot.slane %v1306, 1
    %v1311 = vsel %vm119, %v1309, %v1310
    %1312 = vrot.lane.b32.xlu0 %v1311, 127
    %v1313 = vpop.permute.xlu0 %1312
    %1314 = vrot.lane.b32.xlu0 %v1310, 127
    %v1315 = vpop.permute.xlu0 %1314
    %v1318 = vadd.f32 %v1301, %v1313
    %v1319 = vadd.f32 %v1302, %v1315
    %s1320 = sld [smem:[#allocation2 + $0x26]]
    %v1321 = vstv %s1320
    %v1322 = vmul.f32 %v1321, %v46
    %v1323 = vmul.f32 %v1321, %v47
    %v1326 = vrot.slane %v1322, 1
    %v1327 = vrot.slane %v1323, 1
    %v1328 = vsel %vm119, %v1326, %v1327
    %1329 = vrot.lane.b32.xlu0 %v1328, 126
    %v1330 = vpop.permute.xlu0 %1329
    %1331 = vrot.lane.b32.xlu0 %v1327, 126
    %v1332 = vpop.permute.xlu0 %1331
    %v1335 = vadd.f32 %v1318, %v1330
    %v1336 = vadd.f32 %v1319, %v1332
    %s1337 = sld [smem:[#allocation2 + $0x2b]]
    %v1338 = vstv %s1337
    %v1339 = vmul.f32 %v1338, %v46
    %v1340 = vmul.f32 %v1338, %v47
    %v1343 = vrot.slane %v1339, 1
    %v1344 = vrot.slane %v1340, 1
    %v1345 = vsel %vm119, %v1343, %v1344
    %1346 = vrot.lane.b32.xlu0 %v1345, 125
    %v1347 = vpop.permute.xlu0 %1346
    %1348 = vrot.lane.b32.xlu0 %v1344, 125
    %v1349 = vpop.permute.xlu0 %1348
    %v1352 = vadd.f32 %v1335, %v1347
    %v1353 = vadd.f32 %v1336, %v1349
    %s1354 = sld [smem:[#allocation2 + $0x30]]
    %v1355 = vstv %s1354
    %v1356 = vmul.f32 %v1355, %v46
    %v1357 = vmul.f32 %v1355, %v47
    %v1360 = vrot.slane %v1356, 1
    %v1361 = vrot.slane %v1357, 1
    %v1362 = vsel %vm119, %v1360, %v1361
    %1363 = vrot.lane.b32.xlu0 %v1362, 124
    %v1364 = vpop.permute.xlu0 %1363
    %1365 = vrot.lane.b32.xlu0 %v1361, 124
    %v1366 = vpop.permute.xlu0 %1365
    %v1369 = vadd.f32 %v1352, %v1364
    %v1370 = vadd.f32 %v1353, %v1366
    %s1371 = sld [smem:[#allocation2 + $0x35]]
    %v1372 = vstv %s1371
    %v1373 = vmul.f32 %v1372, %v46
    %v1374 = vmul.f32 %v1372, %v47
    %v1377 = vrot.slane %v1373, 2
    %v1378 = vrot.slane %v1374, 2
    %v1379 = vsel %vm201, %v1377, %v1378
    %v1382 = vadd.f32 %v1369, %v1379
    %v1383 = vadd.f32 %v1370, %v1378
    %s1384 = sld [smem:[#allocation2 + $0x3a]]
    %v1385 = vstv %s1384
    %v1386 = vmul.f32 %v1385, %v46
    %v1387 = vmul.f32 %v1385, %v47
    %v1390 = vrot.slane %v1386, 2
    %v1391 = vrot.slane %v1387, 2
    %v1392 = vsel %vm201, %v1390, %v1391
    %1393 = vrot.lane.b32.xlu0 %v1392, 127
    %v1394 = vpop.permute.xlu0 %1393
    %1395 = vrot.lane.b32.xlu0 %v1391, 127
    %v1396 = vpop.permute.xlu0 %1395
    %v1399 = vadd.f32 %v1382, %v1394
    %v1400 = vadd.f32 %v1383, %v1396
    %s1401 = sld [smem:[#allocation2 + $0x3f]]
    %v1402 = vstv %s1401
    %v1403 = vmul.f32 %v1402, %v46
    %v1404 = vmul.f32 %v1402, %v47
    %v1407 = vrot.slane %v1403, 2
    %v1408 = vrot.slane %v1404, 2
    %v1409 = vsel %vm201, %v1407, %v1408
    %1410 = vrot.lane.b32.xlu0 %v1409, 126
    %v1411 = vpop.permute.xlu0 %1410
    %1412 = vrot.lane.b32.xlu0 %v1408, 126
    %v1413 = vpop.permute.xlu0 %1412
    %v1416 = vadd.f32 %v1399, %v1411
    %v1417 = vadd.f32 %v1400, %v1413
    %s1418 = sld [smem:[#allocation2 + $0x44]]
    %v1419 = vstv %s1418
    %v1420 = vmul.f32 %v1419, %v46
    %v1421 = vmul.f32 %v1419, %v47
    %v1424 = vrot.slane %v1420, 2
    %v1425 = vrot.slane %v1421, 2
    %v1426 = vsel %vm201, %v1424, %v1425
    %1427 = vrot.lane.b32.xlu0 %v1426, 125
    %v1428 = vpop.permute.xlu0 %1427
    %1429 = vrot.lane.b32.xlu0 %v1425, 125
    %v1430 = vpop.permute.xlu0 %1429
    %v1433 = vadd.f32 %v1416, %v1428
    %v1434 = vadd.f32 %v1417, %v1430
    %s1435 = sld [smem:[#allocation2 + $0x49]]
    %v1436 = vstv %s1435
    %v1437 = vmul.f32 %v1436, %v46
    %v1438 = vmul.f32 %v1436, %v47
    %v1441 = vrot.slane %v1437, 2
    %v1442 = vrot.slane %v1438, 2
    %v1443 = vsel %vm201, %v1441, %v1442
    %1444 = vrot.lane.b32.xlu0 %v1443, 124
    %v1445 = vpop.permute.xlu0 %1444
    %1446 = vrot.lane.b32.xlu0 %v1442, 124
    %v1447 = vpop.permute.xlu0 %1446
    %v1450 = vadd.f32 %v1433, %v1445
    %v1451 = vadd.f32 %v1434, %v1447
    %s1452 = sld [smem:[#allocation2 + $0x4e]]
    %v1453 = vstv %s1452
    %v1454 = vmul.f32 %v1453, %v46
    %v1455 = vmul.f32 %v1453, %v47
    %v1458 = vrot.slane %v1454, 3
    %v1459 = vrot.slane %v1455, 3
    %v1460 = vsel %vm283, %v1458, %v1459
    %v1463 = vadd.f32 %v1450, %v1460
    %v1464 = vadd.f32 %v1451, %v1459
    %s1465 = sld [smem:[#allocation2 + $0x53]]
    %v1466 = vstv %s1465
    %v1467 = vmul.f32 %v1466, %v46
    %v1468 = vmul.f32 %v1466, %v47
    %v1471 = vrot.slane %v1467, 3
    %v1472 = vrot.slane %v1468, 3
    %v1473 = vsel %vm283, %v1471, %v1472
    %1474 = vrot.lane.b32.xlu0 %v1473, 127
    %v1475 = vpop.permute.xlu0 %1474
    %1476 = vrot.lane.b32.xlu0 %v1472, 127
    %v1477 = vpop.permute.xlu0 %1476
    %v1480 = vadd.f32 %v1463, %v1475
    %v1481 = vadd.f32 %v1464, %v1477
    %s1482 = sld [smem:[#allocation2 + $0x58]]
    %v1483 = vstv %s1482
    %v1484 = vmul.f32 %v1483, %v46
    %v1485 = vmul.f32 %v1483, %v47
    %v1488 = vrot.slane %v1484, 3
    %v1489 = vrot.slane %v1485, 3
    %v1490 = vsel %vm283, %v1488, %v1489
    %1491 = vrot.lane.b32.xlu0 %v1490, 126
    %v1492 = vpop.permute.xlu0 %1491
    %1493 = vrot.lane.b32.xlu0 %v1489, 126
    %v1494 = vpop.permute.xlu0 %1493
    %v1497 = vadd.f32 %v1480, %v1492
    %v1498 = vadd.f32 %v1481, %v1494
    %s1499 = sld [smem:[#allocation2 + $0x5d]]
    %v1500 = vstv %s1499
    %v1501 = vmul.f32 %v1500, %v46
    %v1502 = vmul.f32 %v1500, %v47
    %v1505 = vrot.slane %v1501, 3
    %v1506 = vrot.slane %v1502, 3
    %v1507 = vsel %vm283, %v1505, %v1506
    %1508 = vrot.lane.b32.xlu0 %v1507, 125
    %v1509 = vpop.permute.xlu0 %1508
    %1510 = vrot.lane.b32.xlu0 %v1506, 125
    %v1511 = vpop.permute.xlu0 %1510
    %v1514 = vadd.f32 %v1497, %v1509
    %v1515 = vadd.f32 %v1498, %v1511
    %s1516 = sld [smem:[#allocation2 + $0x62]]
    %v1517 = vstv %s1516
    %v1518 = vmul.f32 %v1517, %v46
    %v1519 = vmul.f32 %v1517, %v47
    %v1522 = vrot.slane %v1518, 3
    %v1523 = vrot.slane %v1519, 3
    %v1524 = vsel %vm283, %v1522, %v1523
    %1525 = vrot.lane.b32.xlu0 %v1524, 124
    %v1526 = vpop.permute.xlu0 %1525
    %1527 = vrot.lane.b32.xlu0 %v1523, 124
    %v1528 = vpop.permute.xlu0 %1527
    %v1531 = vadd.f32 %v1514, %v1526
    %v1532 = vadd.f32 %v1515, %v1528
    %s1533 = sld [smem:[#allocation2 + $0x67]]
    %v1534 = vstv %s1533
    %v1535 = vmul.f32 %v1534, %v46
    %v1536 = vmul.f32 %v1534, %v47
    %v1539 = vrot.slane %v1535, 4
    %v1540 = vrot.slane %v1536, 4
    %v1541 = vsel %vm365, %v1539, %v1540
    %v1544 = vadd.f32 %v1531, %v1541
    %v1545 = vadd.f32 %v1532, %v1540
    %s1546 = sld [smem:[#allocation2 + $0x6c]]
    %v1547 = vstv %s1546
    %v1548 = vmul.f32 %v1547, %v46
    %v1549 = vmul.f32 %v1547, %v47
    %v1552 = vrot.slane %v1548, 4
    %v1553 = vrot.slane %v1549, 4
    %v1554 = vsel %vm365, %v1552, %v1553
    %1555 = vrot.lane.b32.xlu0 %v1554, 127
    %v1556 = vpop.permute.xlu0 %1555
    %1557 = vrot.lane.b32.xlu0 %v1553, 127
    %v1558 = vpop.permute.xlu0 %1557
    %v1561 = vadd.f32 %v1544, %v1556
    %v1562 = vadd.f32 %v1545, %v1558
    %s1563 = sld [smem:[#allocation2 + $0x71]]
    %v1564 = vstv %s1563
    %v1565 = vmul.f32 %v1564, %v46
    %v1566 = vmul.f32 %v1564, %v47
    %v1569 = vrot.slane %v1565, 4
    %v1570 = vrot.slane %v1566, 4
    %v1571 = vsel %vm365, %v1569, %v1570
    %1572 = vrot.lane.b32.xlu0 %v1571, 126
    %v1573 = vpop.permute.xlu0 %1572
    %1574 = vrot.lane.b32.xlu0 %v1570, 126
    %v1575 = vpop.permute.xlu0 %1574
    %v1578 = vadd.f32 %v1561, %v1573
    %v1579 = vadd.f32 %v1562, %v1575
    %s1580 = sld [smem:[#allocation2 + $0x76]]
    %v1581 = vstv %s1580
    %v1582 = vmul.f32 %v1581, %v46
    %v1583 = vmul.f32 %v1581, %v47
    %v1586 = vrot.slane %v1582, 4
    %v1587 = vrot.slane %v1583, 4
    %v1588 = vsel %vm365, %v1586, %v1587
    %1589 = vrot.lane.b32.xlu0 %v1588, 125
    %v1590 = vpop.permute.xlu0 %1589
    %1591 = vrot.lane.b32.xlu0 %v1587, 125
    %v1592 = vpop.permute.xlu0 %1591
    %v1595 = vadd.f32 %v1578, %v1590
    %v1596 = vadd.f32 %v1579, %v1592
    %s1597 = sld [smem:[#allocation2 + $0x7b]]
    %v1598 = vstv %s1597
    %v1599 = vmul.f32 %v1598, %v46
    %v1600 = vmul.f32 %v1598, %v47
    %v1603 = vrot.slane %v1599, 4
    %v1604 = vrot.slane %v1600, 4
    %v1605 = vsel %vm365, %v1603, %v1604
    %1606 = vrot.lane.b32.xlu0 %v1605, 124
    %v1607 = vpop.permute.xlu0 %1606
    %1608 = vrot.lane.b32.xlu0 %v1604, 124
    %v1609 = vpop.permute.xlu0 %1608
    %v1612 = vadd.f32 %v1595, %v1607
    %v1613 = vadd.f32 %v1596, %v1609
    %v1614 = vmax.f32 %v1612, 0.0
    %v1615 = vmax.f32 %v1613, 0.0
    %s1616 = sld [smem:[#allocation5 + $0x4]]
    %v1617 = vstv %s1616
    %v1618 = vadd.f32 %v1617, 0.0
    %s1619 = sld [smem:[#allocation2 + $0x4]]
    %v1620 = vstv %s1619
    %v1621 = vmul.f32 %v1620, %v46
    %v1622 = vmul.f32 %v1620, %v47
    %v1623 = vadd.f32 %v1618, %v1621
    %v1624 = vadd.f32 %v1618, %v1622
    %s1625 = sld [smem:[#allocation2 + $0x9]]
    %v1626 = vstv %s1625
    %v1627 = vmul.f32 %v1626, %v46
    %v1628 = vmul.f32 %v1626, %v47
    %1631 = vrot.lane.b32.xlu0 %v1627, 127
    %v1632 = vpop.permute.xlu0 %1631
    %1633 = vrot.lane.b32.xlu0 %v1628, 127
    %v1634 = vpop.permute.xlu0 %1633
    %v1637 = vadd.f32 %v1623, %v1632
    %v1638 = vadd.f32 %v1624, %v1634
    %s1639 = sld [smem:[#allocation2 + $0xe]]
    %v1640 = vstv %s1639
    %v1641 = vmul.f32 %v1640, %v46
    %v1642 = vmul.f32 %v1640, %v47
    %1645 = vrot.lane.b32.xlu0 %v1641, 126
    %v1646 = vpop.permute.xlu0 %1645
    %1647 = vrot.lane.b32.xlu0 %v1642, 126
    %v1648 = vpop.permute.xlu0 %1647
    %v1651 = vadd.f32 %v1637, %v1646
    %v1652 = vadd.f32 %v1638, %v1648
    %s1653 = sld [smem:[#allocation2 + $0x13]]
    %v1654 = vstv %s1653
    %v1655 = vmul.f32 %v1654, %v46
    %v1656 = vmul.f32 %v1654, %v47
    %1659 = vrot.lane.b32.xlu0 %v1655, 125
    %v1660 = vpop.permute.xlu0 %1659
    %1661 = vrot.lane.b32.xlu0 %v1656, 125
    %v1662 = vpop.permute.xlu0 %1661
    %v1665 = vadd.f32 %v1651, %v1660
    %v1666 = vadd.f32 %v1652, %v1662
    %s1667 = sld [smem:[#allocation2 + $0x18]]
    %v1668 = vstv %s1667
    %v1669 = vmul.f32 %v1668, %v46
    %v1670 = vmul.f32 %v1668, %v47
    %1673 = vrot.lane.b32.xlu0 %v1669, 124
    %v1674 = vpop.permute.xlu0 %1673
    %1675 = vrot.lane.b32.xlu0 %v1670, 124
    %v1676 = vpop.permute.xlu0 %1675
    %v1679 = vadd.f32 %v1665, %v1674
    %v1680 = vadd.f32 %v1666, %v1676
    %s1681 = sld [smem:[#allocation2 + $0x1d]]
    %v1682 = vstv %s1681
    %v1683 = vmul.f32 %v1682, %v46
    %v1684 = vmul.f32 %v1682, %v47
    %v1687 = vrot.slane %v1683, 1
    %v1688 = vrot.slane %v1684, 1
    %v1689 = vsel %vm119, %v1687, %v1688
    %v1692 = vadd.f32 %v1679, %v1689
    %v1693 = vadd.f32 %v1680, %v1688
    %s1694 = sld [smem:[#allocation2 + $0x22]]
    %v1695 = vstv %s1694
    %v1696 = vmul.f32 %v1695, %v46
    %v1697 = vmul.f32 %v1695, %v47
    %v1700 = vrot.slane %v1696, 1
    %v1701 = vrot.slane %v1697, 1
    %v1702 = vsel %vm119, %v1700, %v1701
    %1703 = vrot.lane.b32.xlu0 %v1702, 127
    %v1704 = vpop.permute.xlu0 %1703
    %1705 = vrot.lane.b32.xlu0 %v1701, 127
    %v1706 = vpop.permute.xlu0 %1705
    %v1709 = vadd.f32 %v1692, %v1704
    %v1710 = vadd.f32 %v1693, %v1706
    %s1711 = sld [smem:[#allocation2 + $0x27]]
    %v1712 = vstv %s1711
    %v1713 = vmul.f32 %v1712, %v46
    %v1714 = vmul.f32 %v1712, %v47
    %v1717 = vrot.slane %v1713, 1
    %v1718 = vrot.slane %v1714, 1
    %v1719 = vsel %vm119, %v1717, %v1718
    %1720 = vrot.lane.b32.xlu0 %v1719, 126
    %v1721 = vpop.permute.xlu0 %1720
    %1722 = vrot.lane.b32.xlu0 %v1718, 126
    %v1723 = vpop.permute.xlu0 %1722
    %v1726 = vadd.f32 %v1709, %v1721
    %v1727 = vadd.f32 %v1710, %v1723
    %s1728 = sld [smem:[#allocation2 + $0x2c]]
    %v1729 = vstv %s1728
    %v1730 = vmul.f32 %v1729, %v46
    %v1731 = vmul.f32 %v1729, %v47
    %v1734 = vrot.slane %v1730, 1
    %v1735 = vrot.slane %v1731, 1
    %v1736 = vsel %vm119, %v1734, %v1735
    %1737 = vrot.lane.b32.xlu0 %v1736, 125
    %v1738 = vpop.permute.xlu0 %1737
    %1739 = vrot.lane.b32.xlu0 %v1735, 125
    %v1740 = vpop.permute.xlu0 %1739
    %v1743 = vadd.f32 %v1726, %v1738
    %v1744 = vadd.f32 %v1727, %v1740
    %s1745 = sld [smem:[#allocation2 + $0x31]]
    %v1746 = vstv %s1745
    %v1747 = vmul.f32 %v1746, %v46
    %v1748 = vmul.f32 %v1746, %v47
    %v1751 = vrot.slane %v1747, 1
    %v1752 = vrot.slane %v1748, 1
    %v1753 = vsel %vm119, %v1751, %v1752
    %1754 = vrot.lane.b32.xlu0 %v1753, 124
    %v1755 = vpop.permute.xlu0 %1754
    %1756 = vrot.lane.b32.xlu0 %v1752, 124
    %v1757 = vpop.permute.xlu0 %1756
    %v1760 = vadd.f32 %v1743, %v1755
    %v1761 = vadd.f32 %v1744, %v1757
    %s1762 = sld [smem:[#allocation2 + $0x36]]
    %v1763 = vstv %s1762
    %v1764 = vmul.f32 %v1763, %v46
    %v1765 = vmul.f32 %v1763, %v47
    %v1768 = vrot.slane %v1764, 2
    %v1769 = vrot.slane %v1765, 2
    %v1770 = vsel %vm201, %v1768, %v1769
    %v1773 = vadd.f32 %v1760, %v1770
    %v1774 = vadd.f32 %v1761, %v1769
    %s1775 = sld [smem:[#allocation2 + $0x3b]]
    %v1776 = vstv %s1775
    %v1777 = vmul.f32 %v1776, %v46
    %v1778 = vmul.f32 %v1776, %v47
    %v1781 = vrot.slane %v1777, 2
    %v1782 = vrot.slane %v1778, 2
    %v1783 = vsel %vm201, %v1781, %v1782
    %1784 = vrot.lane.b32.xlu0 %v1783, 127
    %v1785 = vpop.permute.xlu0 %1784
    %1786 = vrot.lane.b32.xlu0 %v1782, 127
    %v1787 = vpop.permute.xlu0 %1786
    %v1790 = vadd.f32 %v1773, %v1785
    %v1791 = vadd.f32 %v1774, %v1787
    %s1792 = sld [smem:[#allocation2 + $0x40]]
    %v1793 = vstv %s1792
    %v1794 = vmul.f32 %v1793, %v46
    %v1795 = vmul.f32 %v1793, %v47
    %v1798 = vrot.slane %v1794, 2
    %v1799 = vrot.slane %v1795, 2
    %v1800 = vsel %vm201, %v1798, %v1799
    %1801 = vrot.lane.b32.xlu0 %v1800, 126
    %v1802 = vpop.permute.xlu0 %1801
    %1803 = vrot.lane.b32.xlu0 %v1799, 126
    %v1804 = vpop.permute.xlu0 %1803
    %v1807 = vadd.f32 %v1790, %v1802
    %v1808 = vadd.f32 %v1791, %v1804
    %s1809 = sld [smem:[#allocation2 + $0x45]]
    %v1810 = vstv %s1809
    %v1811 = vmul.f32 %v1810, %v46
    %v1812 = vmul.f32 %v1810, %v47
    %v1815 = vrot.slane %v1811, 2
    %v1816 = vrot.slane %v1812, 2
    %v1817 = vsel %vm201, %v1815, %v1816
    %1818 = vrot.lane.b32.xlu0 %v1817, 125
    %v1819 = vpop.permute.xlu0 %1818
    %1820 = vrot.lane.b32.xlu0 %v1816, 125
    %v1821 = vpop.permute.xlu0 %1820
    %v1824 = vadd.f32 %v1807, %v1819
    %v1825 = vadd.f32 %v1808, %v1821
    %s1826 = sld [smem:[#allocation2 + $0x4a]]
    %v1827 = vstv %s1826
    %v1828 = vmul.f32 %v1827, %v46
    %v1829 = vmul.f32 %v1827, %v47
    %v1832 = vrot.slane %v1828, 2
    %v1833 = vrot.slane %v1829, 2
    %v1834 = vsel %vm201, %v1832, %v1833
    %1835 = vrot.lane.b32.xlu0 %v1834, 124
    %v1836 = vpop.permute.xlu0 %1835
    %1837 = vrot.lane.b32.xlu0 %v1833, 124
    %v1838 = vpop.permute.xlu0 %1837
    %v1841 = vadd.f32 %v1824, %v1836
    %v1842 = vadd.f32 %v1825, %v1838
    %s1843 = sld [smem:[#allocation2 + $0x4f]]
    %v1844 = vstv %s1843
    %v1845 = vmul.f32 %v1844, %v46
    %v1846 = vmul.f32 %v1844, %v47
    %v1849 = vrot.slane %v1845, 3
    %v1850 = vrot.slane %v1846, 3
    %v1851 = vsel %vm283, %v1849, %v1850
    %v1854 = vadd.f32 %v1841, %v1851
    %v1855 = vadd.f32 %v1842, %v1850
    %s1856 = sld [smem:[#allocation2 + $0x54]]
    %v1857 = vstv %s1856
    %v1858 = vmul.f32 %v1857, %v46
    %v1859 = vmul.f32 %v1857, %v47
    %v1862 = vrot.slane %v1858, 3
    %v1863 = vrot.slane %v1859, 3
    %v1864 = vsel %vm283, %v1862, %v1863
    %1865 = vrot.lane.b32.xlu0 %v1864, 127
    %v1866 = vpop.permute.xlu0 %1865
    %1867 = vrot.lane.b32.xlu0 %v1863, 127
    %v1868 = vpop.permute.xlu0 %1867
    %v1871 = vadd.f32 %v1854, %v1866
    %v1872 = vadd.f32 %v1855, %v1868
    %s1873 = sld [smem:[#allocation2 + $0x59]]
    %v1874 = vstv %s1873
    %v1875 = vmul.f32 %v1874, %v46
    %v1876 = vmul.f32 %v1874, %v47
    %v1879 = vrot.slane %v1875, 3
    %v1880 = vrot.slane %v1876, 3
    %v1881 = vsel %vm283, %v1879, %v1880
    %1882 = vrot.lane.b32.xlu0 %v1881, 126
    %v1883 = vpop.permute.xlu0 %1882
    %1884 = vrot.lane.b32.xlu0 %v1880, 126
    %v1885 = vpop.permute.xlu0 %1884
    %v1888 = vadd.f32 %v1871, %v1883
    %v1889 = vadd.f32 %v1872, %v1885
    %s1890 = sld [smem:[#allocation2 + $0x5e]]
    %v1891 = vstv %s1890
    %v1892 = vmul.f32 %v1891, %v46
    %v1893 = vmul.f32 %v1891, %v47
    %v1896 = vrot.slane %v1892, 3
    %v1897 = vrot.slane %v1893, 3
    %v1898 = vsel %vm283, %v1896, %v1897
    %1899 = vrot.lane.b32.xlu0 %v1898, 125
    %v1900 = vpop.permute.xlu0 %1899
    %1901 = vrot.lane.b32.xlu0 %v1897, 125
    %v1902 = vpop.permute.xlu0 %1901
    %v1905 = vadd.f32 %v1888, %v1900
    %v1906 = vadd.f32 %v1889, %v1902
    %s1907 = sld [smem:[#allocation2 + $0x63]]
    %v1908 = vstv %s1907
    %v1909 = vmul.f32 %v1908, %v46
    %v1910 = vmul.f32 %v1908, %v47
    %v1913 = vrot.slane %v1909, 3
    %v1914 = vrot.slane %v1910, 3
    %v1915 = vsel %vm283, %v1913, %v1914
    %1916 = vrot.lane.b32.xlu0 %v1915, 124
    %v1917 = vpop.permute.xlu0 %1916
    %1918 = vrot.lane.b32.xlu0 %v1914, 124
    %v1919 = vpop.permute.xlu0 %1918
    %v1922 = vadd.f32 %v1905, %v1917
    %v1923 = vadd.f32 %v1906, %v1919
    %s1924 = sld [smem:[#allocation2 + $0x68]]
    %v1925 = vstv %s1924
    %v1926 = vmul.f32 %v1925, %v46
    %v1927 = vmul.f32 %v1925, %v47
    %v1930 = vrot.slane %v1926, 4
    %v1931 = vrot.slane %v1927, 4
    %v1932 = vsel %vm365, %v1930, %v1931
    %v1935 = vadd.f32 %v1922, %v1932
    %v1936 = vadd.f32 %v1923, %v1931
    %s1937 = sld [smem:[#allocation2 + $0x6d]]
    %v1938 = vstv %s1937
    %v1939 = vmul.f32 %v1938, %v46
    %v1940 = vmul.f32 %v1938, %v47
    %v1943 = vrot.slane %v1939, 4
    %v1944 = vrot.slane %v1940, 4
    %v1945 = vsel %vm365, %v1943, %v1944
    %1946 = vrot.lane.b32.xlu0 %v1945, 127
    %v1947 = vpop.permute.xlu0 %1946
    %1948 = vrot.lane.b32.xlu0 %v1944, 127
    %v1949 = vpop.permute.xlu0 %1948
    %v1952 = vadd.f32 %v1935, %v1947
    %v1953 = vadd.f32 %v1936, %v1949
    %s1954 = sld [smem:[#allocation2 + $0x72]]
    %v1955 = vstv %s1954
    %v1956 = vmul.f32 %v1955, %v46
    %v1957 = vmul.f32 %v1955, %v47
    %v1960 = vrot.slane %v1956, 4
    %v1961 = vrot.slane %v1957, 4
    %v1962 = vsel %vm365, %v1960, %v1961
    %1963 = vrot.lane.b32.xlu0 %v1962, 126
    %v1964 = vpop.permute.xlu0 %1963
    %1965 = vrot.lane.b32.xlu0 %v1961, 126
    %v1966 = vpop.permute.xlu0 %1965
    %v1969 = vadd.f32 %v1952, %v1964
    %v1970 = vadd.f32 %v1953, %v1966
    %s1971 = sld [smem:[#allocation2 + $0x77]]
    %v1972 = vstv %s1971
    %v1973 = vmul.f32 %v1972, %v46
    %v1974 = vmul.f32 %v1972, %v47
    %v1977 = vrot.slane %v1973, 4
    %v1978 = vrot.slane %v1974, 4
    %v1979 = vsel %vm365, %v1977, %v1978
    %1980 = vrot.lane.b32.xlu0 %v1979, 125
    %v1981 = vpop.permute.xlu0 %1980
    %1982 = vrot.lane.b32.xlu0 %v1978, 125
    %v1983 = vpop.permute.xlu0 %1982
    %v1986 = vadd.f32 %v1969, %v1981
    %v1987 = vadd.f32 %v1970, %v1983
    %s1988 = sld [smem:[#allocation2 + $0x7c]]
    %v1989 = vstv %s1988
    %v1990 = vmul.f32 %v1989, %v46
    %v1991 = vmul.f32 %v1989, %v47
    %v1994 = vrot.slane %v1990, 4
    %v1995 = vrot.slane %v1991, 4
    %v1996 = vsel %vm365, %v1994, %v1995
    %1997 = vrot.lane.b32.xlu0 %v1996, 124
    %v1998 = vpop.permute.xlu0 %1997
    %1999 = vrot.lane.b32.xlu0 %v1995, 124
    %v2000 = vpop.permute.xlu0 %1999
    %v2003 = vadd.f32 %v1986, %v1998
    %v2004 = vadd.f32 %v1987, %v2000
    %v2005 = vmax.f32 %v2003, 0.0
    %v2006 = vmax.f32 %v2004, 0.0
    %vm2007 = vcmask 92160
    %v2008 = vsel %vm2007, %v441, -inf
    %v2009 = vrot.slane %v2008, 4
    %v2010 = vmax.f32 %v2008, %v2009
    %v2011 = vrot.slane %v2010, 2
    %v2012 = vmax.f32 %v2010, %v2011
    %v2013 = vrot.slane %v2012, 1
    %v2014 = vmax.f32 %v2012, %v2013
    %vm2015 = vcmask 23552
    %v2016 = vsel %vm2015, %v2014, -inf
    %2017 = vmax.xlane.f32.xlu0 %v2016
    %v2018 = vpop.xlane.xlu0 %2017
    %vm2019 = vcmask 48152
    %v2020 = vsel %vm2019, %v2014, -inf
    %2021 = vmax.xlane.f32.xlu0 %v2020
    %v2022 = vpop.xlane.xlu0 %2021
    %vm2023 = vcmask 72752
    %v2024 = vsel %vm2023, %v2014, -inf
    %2025 = vmax.xlane.f32.xlu0 %v2024
    %v2026 = vpop.xlane.xlu0 %2025
    %vm2027 = vcmask 97352
    %v2028 = vsel %vm2027, %v2014, -inf
    %2029 = vmax.xlane.f32.xlu0 %v2028
    %v2030 = vpop.xlane.xlu0 %2029
    %vm2031 = vcmask 95235
    %v2032 = vsel %vm2031, %v441, -inf
    %v2033 = vrot.slane %v2032, 4
    %v2034 = vmax.f32 %v2032, %v2033
    %v2035 = vrot.slane %v2034, 2
    %v2036 = vmax.f32 %v2034, %v2035
    %v2037 = vrot.slane %v2036, 1
    %v2038 = vmax.f32 %v2036, %v2037
    %v2039 = vsel %vm2015, %v2038, -inf
    %2040 = vmax.xlane.f32.xlu0 %v2039
    %v2041 = vpop.xlane.xlu0 %2040
    %v2042 = vsel %vm2019, %v2038, -inf
    %2043 = vmax.xlane.f32.xlu0 %v2042
    %v2044 = vpop.xlane.xlu0 %2043
    %v2045 = vsel %vm2023, %v2038, -inf
    %2046 = vmax.xlane.f32.xlu0 %v2045
    %v2047 = vpop.xlane.xlu0 %2046
    %v2048 = vsel %vm2027, %v2038, -inf
    %2049 = vmax.xlane.f32.xlu0 %v2048
    %v2050 = vpop.xlane.xlu0 %2049
    %vm2051 = vcmask 97286
    %v2052 = vsel %vm2051, %v441, -inf
    %vm2053 = vcmask 90112
    %v2054 = vsel %vm2053, %v442, -inf
    %v2055 = vmax.f32 %v2052, %v2054
    %v2056 = vrot.slane %v2055, 4
    %v2057 = vmax.f32 %v2055, %v2056
    %v2058 = vrot.slane %v2057, 2
    %v2059 = vmax.f32 %v2057, %v2058
    %v2060 = vrot.slane %v2059, 1
    %v2061 = vmax.f32 %v2059, %v2060
    %v2062 = vsel %vm2015, %v2061, -inf
    %2063 = vmax.xlane.f32.xlu0 %v2062
    %v2064 = vpop.xlane.xlu0 %2063
    %v2065 = vsel %vm2019, %v2061, -inf
    %2066 = vmax.xlane.f32.xlu0 %v2065
    %v2067 = vpop.xlane.xlu0 %2066
    %v2068 = vsel %vm2023, %v2061, -inf
    %2069 = vmax.xlane.f32.xlu0 %v2068
    %v2070 = vpop.xlane.xlu0 %2069
    %v2071 = vsel %vm2027, %v2061, -inf
    %2072 = vmax.xlane.f32.xlu0 %v2071
    %v2073 = vpop.xlane.xlu0 %2072
    %vm2074 = vcmask 93185
    %v2075 = vsel %vm2074, %v442, -inf
    %v2076 = vrot.slane %v2075, 4
    %v2077 = vmax.f32 %v2075, %v2076
    %v2078 = vrot.slane %v2077, 2
    %v2079 = vmax.f32 %v2077, %v2078
    %v2080 = vrot.slane %v2079, 1
    %v2081 = vmax.f32 %v2079, %v2080
    %v2082 = vsel %vm2015, %v2081, -inf
    %2083 = vmax.xlane.f32.xlu0 %v2082
    %v2084 = vpop.xlane.xlu0 %2083
    %v2085 = vsel %vm2019, %v2081, -inf
    %2086 = vmax.xlane.f32.xlu0 %v2085
    %v2087 = vpop.xlane.xlu0 %2086
    %v2088 = vsel %vm2023, %v2081, -inf
    %2089 = vmax.xlane.f32.xlu0 %v2088
    %v2090 = vpop.xlane.xlu0 %2089
    %v2091 = vsel %vm2027, %v2081, -inf
    %2092 = vmax.xlane.f32.xlu0 %v2091
    %v2093 = vpop.xlane.xlu0 %2092
    %vm2094 = vcmask 7168
    %v2095 = vsel %vm2094, %v2018, %v2022
    %vm2096 = vcmask 15360
    %v2097 = vsel %vm2096, %v2095, %v2026
    %v2098 = vsel %vm2015, %v2097, %v2030
    %vm2099 = vcmask 31744
    %v2100 = vsel %vm2099, %v2098, %v2041
    %vm2101 = vcmask 39936
    %v2102 = vsel %vm2101, %v2100, %v2044
    %vm2103 = vcmask 48128
    %v2104 = vsel %vm2103, %v2102, %v2047
    %vm2105 = vcmask 56320
    %v2106 = vsel %vm2105, %v2104, %v2050
    %vm2107 = vcmask 64512
    %v2108 = vsel %vm2107, %v2106, %v2064
    %vm2109 = vcmask 72704
    %v2110 = vsel %vm2109, %v2108, %v2067
    %vm2111 = vcmask 80896
    %v2112 = vsel %vm2111, %v2110, %v2070
    %vm2113 = vcmask 89088
    %v2114 = vsel %vm2113, %v2112, %v2073
    %vm2115 = vcmask 97280
    %v2116 = vsel %vm2115, %v2114, %v2084
    %vm2117 = vcmask 105472
    %v2118 = vsel %vm2117, %v2116, %v2087
    %vm2119 = vcmask 113664
    %v2120 = vsel %vm2119, %v2118, %v2090
    %vm2121 = vcmask 121856
    %v2122 = vsel %vm2121, %v2120, %v2093
    %v2123 = vsel %vm2007, %v832, -inf
    %v2124 = vrot.slane %v2123, 4
    %v2125 = vmax.f32 %v2123, %v2124
    %v2126 = vrot.slane %v2125, 2
    %v2127 = vmax.f32 %v2125, %v2126
    %v2128 = vrot.slane %v2127, 1
    %v2129 = vmax.f32 %v2127, %v2128
    %v2130 = vsel %vm2015, %v2129, -inf
    %2131 = vmax.xlane.f32.xlu0 %v2130
    %v2132 = vpop.xlane.xlu0 %2131
    %v2133 = vsel %vm2019, %v2129, -inf
    %2134 = vmax.xlane.f32.xlu0 %v2133
    %v2135 = vpop.xlane.xlu0 %2134
    %v2136 = vsel %vm2023, %v2129, -inf
    %2137 = vmax.xlane.f32.xlu0 %v2136
    %v2138 = vpop.xlane.xlu0 %2137
    %v2139 = vsel %vm2027, %v2129, -inf
    %2140 = vmax.xlane.f32.xlu0 %v2139
    %v2141 = vpop.xlane.xlu0 %2140
    %v2142 = vsel %vm2031, %v832, -inf
    %v2143 = vrot.slane %v2142, 4
    %v2144 = vmax.f32 %v2142, %v2143
    %v2145 = vrot.slane %v2144, 2
    %v2146 = vmax.f32 %v2144, %v2145
    %v2147 = vrot.slane %v2146, 1
    %v2148 = vmax.f32 %v2146, %v2147
    %v2149 = vsel %vm2015, %v2148, -inf
    %2150 = vmax.xlane.f32.xlu0 %v2149
    %v2151 = vpop.xlane.xlu0 %2150
    %v2152 = vsel %vm2019, %v2148, -inf
    %2153 = vmax.xlane.f32.xlu0 %v2152
    %v2154 = vpop.xlane.xlu0 %2153
    %v2155 = vsel %vm2023, %v2148, -inf
    %2156 = vmax.xlane.f32.xlu0 %v2155
    %v2157 = vpop.xlane.xlu0 %2156
    %v2158 = vsel %vm2027, %v2148, -inf
    %2159 = vmax.xlane.f32.xlu0 %v2158
    %v2160 = vpop.xlane.xlu0 %2159
    %v2161 = vsel %vm2051, %v832, -inf
    %v2162 = vsel %vm2053, %v833, -inf
    %v2163 = vmax.f32 %v2161, %v2162
    %v2164 = vrot.slane %v2163, 4
    %v2165 = vmax.f32 %v2163, %v2164
    %v2166 = vrot.slane %v2165, 2
    %v2167 = vmax.f32 %v2165, %v2166
    %v2168 = vrot.slane %v2167, 1
    %v2169 = vmax.f32 %v2167, %v2168
    %v2170 = vsel %vm2015, %v2169, -inf
    %2171 = vmax.xlane.f32.xlu0 %v2170
    %v2172 = vpop.xlane.xlu0 %2171
    %v2173 = vsel %vm2019, %v2169, -inf
    %2174 = vmax.xlane.f32.xlu0 %v2173
    %v2175 = vpop.xlane.xlu0 %2174
    %v2176 = vsel %vm2023, %v2169, -inf
    %2177 = vmax.xlane.f32.xlu0 %v2176
    %v2178 = vpop.xlane.xlu0 %2177
    %v2179 = vsel %vm2027, %v2169, -inf
    %2180 = vmax.xlane.f32.xlu0 %v2179
    %v2181 = vpop.xlane.xlu0 %2180
    %v2182 = vsel %vm2074, %v833, -inf
    %v2183 = vrot.slane %v2182, 4
    %v2184 = vmax.f32 %v2182, %v2183
    %v2185 = vrot.slane %v2184, 2
    %v2186 = vmax.f32 %v2184, %v2185
    %v2187 = vrot.slane %v2186, 1
    %v2188 = vmax.f32 %v2186, %v2187
    %v2189 = vsel %vm2015, %v2188, -inf
    %2190 = vmax.xlane.f32.xlu0 %v2189
    %v2191 = vpop.xlane.xlu0 %2190
    %v2192 = vsel %vm2019, %v2188, -inf
    %2193 = vmax.xlane.f32.xlu0 %v2192
    %v2194 = vpop.xlane.xlu0 %2193
    %v2195 = vsel %vm2023, %v2188, -inf
    %2196 = vmax.xlane.f32.xlu0 %v2195
    %v2197 = vpop.xlane.xlu0 %2196
    %v2198 = vsel %vm2027, %v2188, -inf
    %2199 = vmax.xlane.f32.xlu0 %v2198
    %v2200 = vpop.xlane.xlu0 %2199
    %v2201 = vsel %vm2094, %v2132, %v2135
    %v2202 = vsel %vm2096, %v2201, %v2138
    %v2203 = vsel %vm2015, %v2202, %v2141
    %v2204 = vsel %vm2099, %v2203, %v2151
    %v2205 = vsel %vm2101, %v2204, %v2154
    %v2206 = vsel %vm2103, %v2205, %v2157
    %v2207 = vsel %vm2105, %v2206, %v2160
    %v2208 = vsel %vm2107, %v2207, %v2172
    %v2209 = vsel %vm2109, %v2208, %v2175
    %v2210 = vsel %vm2111, %v2209, %v2178
    %v2211 = vsel %vm2113, %v2210, %v2181
    %v2212 = vsel %vm2115, %v2211, %v2191
    %v2213 = vsel %vm2117, %v2212, %v2194
    %v2214 = vsel %vm2119, %v2213, %v2197
    %v2215 = vsel %vm2121, %v2214, %v2200
    %v2216 = vsel %vm2007, %v1223, -inf
    %v2217 = vrot.slane %v2216, 4
    %v2218 = vmax.f32 %v2216, %v2217
    %v2219 = vrot.slane %v2218, 2
    %v2220 = vmax.f32 %v2218, %v2219
    %v2221 = vrot.slane %v2220, 1
    %v2222 = vmax.f32 %v2220, %v2221
    %v2223 = vsel %vm2015, %v2222, -inf
    %2224 = vmax.xlane.f32.xlu0 %v2223
    %v2225 = vpop.xlane.xlu0 %2224
    %v2226 = vsel %vm2019, %v2222, -inf
    %2227 = vmax.xlane.f32.xlu0 %v2226
    %v2228 = vpop.xlane.xlu0 %2227
    %v2229 = vsel %vm2023, %v2222, -inf
    %2230 = vmax.xlane.f32.xlu0 %v2229
    %v2231 = vpop.xlane.xlu0 %2230
    %v2232 = vsel %vm2027, %v2222, -inf
    %2233 = vmax.xlane.f32.xlu0 %v2232
    %v2234 = vpop.xlane.xlu0 %2233
    %v2235 = vsel %vm2031, %v1223, -inf
    %v2236 = vrot.slane %v2235, 4
    %v2237 = vmax.f32 %v2235, %v2236
    %v2238 = vrot.slane %v2237, 2
    %v2239 = vmax.f32 %v2237, %v2238
    %v2240 = vrot.slane %v2239, 1
    %v2241 = vmax.f32 %v2239, %v2240
    %v2242 = vsel %vm2015, %v2241, -inf
    %2243 = vmax.xlane.f32.xlu0 %v2242
    %v2244 = vpop.xlane.xlu0 %2243
    %v2245 = vsel %vm2019, %v2241, -inf
    %2246 = vmax.xlane.f32.xlu0 %v2245
    %v2247 = vpop.xlane.xlu0 %2246
    %v2248 = vsel %vm2023, %v2241, -inf
    %2249 = vmax.xlane.f32.xlu0 %v2248
    %v2250 = vpop.xlane.xlu0 %2249
    %v2251 = vsel %vm2027, %v2241, -inf
    %2252 = vmax.xlane.f32.xlu0 %v2251
    %v2253 = vpop.xlane.xlu0 %2252
    %v2254 = vsel %vm2051, %v1223, -inf
    %v2255 = vsel %vm2053, %v1224, -inf
    %v2256 = vmax.f32 %v2254, %v2255
    %v2257 = vrot.slane %v2256, 4
    %v2258 = vmax.f32 %v2256, %v2257
    %v2259 = vrot.slane %v2258, 2
    %v2260 = vmax.f32 %v2258, %v2259
    %v2261 = vrot.slane %v2260, 1
    %v2262 = vmax.f32 %v2260, %v2261
    %v2263 = vsel %vm2015, %v2262, -inf
    %2264 = vmax.xlane.f32.xlu0 %v2263
    %v2265 = vpop.xlane.xlu0 %2264
    %v2266 = vsel %vm2019, %v2262, -inf
    %2267 = vmax.xlane.f32.xlu0 %v2266
    %v2268 = vpop.xlane.xlu0 %2267
    %v2269 = vsel %vm2023, %v2262, -inf
    %2270 = vmax.xlane.f32.xlu0 %v2269
    %v2271 = vpop.xlane.xlu0 %2270
    %v2272 = vsel %vm2027, %v2262, -inf
    %2273 = vmax.xlane.f32.xlu0 %v2272
    %v2274 = vpop.xlane.xlu0 %2273
    %v2275 = vsel %vm2074, %v1224, -inf
    %v2276 = vrot.slane %v2275, 4
    %v2277 = vmax.f32 %v2275, %v2276
    %v2278 = vrot.slane %v2277, 2
    %v2279 = vmax.f32 %v2277, %v2278
    %v2280 = vrot.slane %v2279, 1
    %v2281 = vmax.f32 %v2279, %v2280
    %v2282 = vsel %vm2015, %v2281, -inf
    %2283 = vmax.xlane.f32.xlu0 %v2282
    %v2284 = vpop.xlane.xlu0 %2283
    %v2285 = vsel %vm2019, %v2281, -inf
    %2286 = vmax.xlane.f32.xlu0 %v2285
    %v2287 = vpop.xlane.xlu0 %2286
    %v2288 = vsel %vm2023, %v2281, -inf
    %2289 = vmax.xlane.f32.xlu0 %v2288
    %v2290 = vpop.xlane.xlu0 %2289
    %v2291 = vsel %vm2027, %v2281, -inf
    %2292 = vmax.xlane.f32.xlu0 %v2291
    %v2293 = vpop.xlane.xlu0 %2292
    %v2294 = vsel %vm2094, %v2225, %v2228
    %v2295 = vsel %vm2096, %v2294, %v2231
    %v2296 = vsel %vm2015, %v2295, %v2234
    %v2297 = vsel %vm2099, %v2296, %v2244
    %v2298 = vsel %vm2101, %v2297, %v2247
    %v2299 = vsel %vm2103, %v2298, %v2250
    %v2300 = vsel %vm2105, %v2299, %v2253
    %v2301 = vsel %vm2107, %v2300, %v2265
    %v2302 = vsel %vm2109, %v2301, %v2268
    %v2303 = vsel %vm2111, %v2302, %v2271
    %v2304 = vsel %vm2113, %v2303, %v2274
    %v2305 = vsel %vm2115, %v2304, %v2284
    %v2306 = vsel %vm2117, %v2305, %v2287
    %v2307 = vsel %vm2119, %v2306, %v2290
    %v2308 = vsel %vm2121, %v2307, %v2293
    %v2309 = vsel %vm2007, %v1614, -inf
    %v2310 = vrot.slane %v2309, 4
    %v2311 = vmax.f32 %v2309, %v2310
    %v2312 = vrot.slane %v2311, 2
    %v2313 = vmax.f32 %v2311, %v2312
    %v2314 = vrot.slane %v2313, 1
    %v2315 = vmax.f32 %v2313, %v2314
    %v2316 = vsel %vm2015, %v2315, -inf
    %2317 = vmax.xlane.f32.xlu0 %v2316
    %v2318 = vpop.xlane.xlu0 %2317
    %v2319 = vsel %vm2019, %v2315, -inf
    %2320 = vmax.xlane.f32.xlu0 %v2319
    %v2321 = vpop.xlane.xlu0 %2320
    %v2322 = vsel %vm2023, %v2315, -inf
    %2323 = vmax.xlane.f32.xlu0 %v2322
    %v2324 = vpop.xlane.xlu0 %2323
    %v2325 = vsel %vm2027, %v2315, -inf
    %2326 = vmax.xlane.f32.xlu0 %v2325
    %v2327 = vpop.xlane.xlu0 %2326
    %v2328 = vsel %vm2031, %v1614, -inf
    %v2329 = vrot.slane %v2328, 4
    %v2330 = vmax.f32 %v2328, %v2329
    %v2331 = vrot.slane %v2330, 2
    %v2332 = vmax.f32 %v2330, %v2331
    %v2333 = vrot.slane %v2332, 1
    %v2334 = vmax.f32 %v2332, %v2333
    %v2335 = vsel %vm2015, %v2334, -inf
    %2336 = vmax.xlane.f32.xlu0 %v2335
    %v2337 = vpop.xlane.xlu0 %2336
    %v2338 = vsel %vm2019, %v2334, -inf
    %2339 = vmax.xlane.f32.xlu0 %v2338
    %v2340 = vpop.xlane.xlu0 %2339
    %v2341 = vsel %vm2023, %v2334, -inf
    %2342 = vmax.xlane.f32.xlu0 %v2341
    %v2343 = vpop.xlane.xlu0 %2342
    %v2344 = vsel %vm2027, %v2334, -inf
    %2345 = vmax.xlane.f32.xlu0 %v2344
    %v2346 = vpop.xlane.xlu0 %2345
    %v2347 = vsel %vm2051, %v1614, -inf
    %v2348 = vsel %vm2053, %v1615, -inf
    %v2349 = vmax.f32 %v2347, %v2348
    %v2350 = vrot.slane %v2349, 4
    %v2351 = vmax.f32 %v2349, %v2350
    %v2352 = vrot.slane %v2351, 2
    %v2353 = vmax.f32 %v2351, %v2352
    %v2354 = vrot.slane %v2353, 1
    %v2355 = vmax.f32 %v2353, %v2354
    %v2356 = vsel %vm2015, %v2355, -inf
    %2357 = vmax.xlane.f32.xlu0 %v2356
    %v2358 = vpop.xlane.xlu0 %2357
    %v2359 = vsel %vm2019, %v2355, -inf
    %2360 = vmax.xlane.f32.xlu0 %v2359
    %v2361 = vpop.xlane.xlu0 %2360
    %v2362 = vsel %vm2023, %v2355, -inf
    %2363 = vmax.xlane.f32.xlu0 %v2362
    %v2364 = vpop.xlane.xlu0 %2363
    %v2365 = vsel %vm2027, %v2355, -inf
    %2366 = vmax.xlane.f32.xlu0 %v2365
    %v2367 = vpop.xlane.xlu0 %2366
    %v2368 = vsel %vm2074, %v1615, -inf
    %v2369 = vrot.slane %v2368, 4
    %v2370 = vmax.f32 %v2368, %v2369
    %v2371 = vrot.slane %v2370, 2
    %v2372 = vmax.f32 %v2370, %v2371
    %v2373 = vrot.slane %v2372, 1
    %v2374 = vmax.f32 %v2372, %v2373
    %v2375 = vsel %vm2015, %v2374, -inf
    %2376 = vmax.xlane.f32.xlu0 %v2375
    %v2377 = vpop.xlane.xlu0 %2376
    %v2378 = vsel %vm2019, %v2374, -inf
    %2379 = vmax.xlane.f32.xlu0 %v2378
    %v2380 = vpop.xlane.xlu0 %2379
    %v2381 = vsel %vm2023, %v2374, -inf
    %2382 = vmax.xlane.f32.xlu0 %v2381
    %v2383 = vpop.xlane.xlu0 %2382
    %v2384 = vsel %vm2027, %v2374, -inf
    %2385 = vmax.xlane.f32.xlu0 %v2384
    %v2386 = vpop.xlane.xlu0 %2385
    %v2387 = vsel %vm2094, %v2318, %v2321
    %v2388 = vsel %vm2096, %v2387, %v2324
    %v2389 = vsel %vm2015, %v2388, %v2327
    %v2390 = vsel %vm2099, %v2389, %v2337
    %v2391 = vsel %vm2101, %v2390, %v2340
    %v2392 = vsel %vm2103, %v2391, %v2343
    %v2393 = vsel %vm2105, %v2392, %v2346
    %v2394 = vsel %vm2107, %v2393, %v2358
    %v2395 = vsel %vm2109, %v2394, %v2361
    %v2396 = vsel %vm2111, %v2395, %v2364
    %v2397 = vsel %vm2113, %v2396, %v2367
    %v2398 = vsel %vm2115, %v2397, %v2377
    %v2399 = vsel %vm2117, %v2398, %v2380
    %v2400 = vsel %vm2119, %v2399, %v2383
    %v2401 = vsel %vm2121, %v2400, %v2386
    %v2402 = vsel %vm2007, %v2005, -inf
    %v2403 = vrot.slane %v2402, 4
    %v2404 = vmax.f32 %v2402, %v2403
    %v2405 = vrot.slane %v2404, 2
    %v2406 = vmax.f32 %v2404, %v2405
    %v2407 = vrot.slane %v2406, 1
    %v2408 = vmax.f32 %v2406, %v2407
    %v2409 = vsel %vm2015, %v2408, -inf
    %2410 = vmax.xlane.f32.xlu0 %v2409
    %v2411 = vpop.xlane.xlu0 %2410
    %v2412 = vsel %vm2019, %v2408, -inf
    %2413 = vmax.xlane.f32.xlu0 %v2412
    %v2414 = vpop.xlane.xlu0 %2413
    %v2415 = vsel %vm2023, %v2408, -inf
    %2416 = vmax.xlane.f32.xlu0 %v2415
    %v2417 = vpop.xlane.xlu0 %2416
    %v2418 = vsel %vm2027, %v2408, -inf
    %2419 = vmax.xlane.f32.xlu0 %v2418
    %v2420 = vpop.xlane.xlu0 %2419
    %v2421 = vsel %vm2031, %v2005, -inf
    %v2422 = vrot.slane %v2421, 4
    %v2423 = vmax.f32 %v2421, %v2422
    %v2424 = vrot.slane %v2423, 2
    %v2425 = vmax.f32 %v2423, %v2424
    %v2426 = vrot.slane %v2425, 1
    %v2427 = vmax.f32 %v2425, %v2426
    %v2428 = vsel %vm2015, %v2427, -inf
    %2429 = vmax.xlane.f32.xlu0 %v2428
    %v2430 = vpop.xlane.xlu0 %2429
    %v2431 = vsel %vm2019, %v2427, -inf
    %2432 = vmax.xlane.f32.xlu0 %v2431
    %v2433 = vpop.xlane.xlu0 %2432
    %v2434 = vsel %vm2023, %v2427, -inf
    %2435 = vmax.xlane.f32.xlu0 %v2434
    %v2436 = vpop.xlane.xlu0 %2435
    %v2437 = vsel %vm2027, %v2427, -inf
    %2438 = vmax.xlane.f32.xlu0 %v2437
    %v2439 = vpop.xlane.xlu0 %2438
    %v2440 = vsel %vm2051, %v2005, -inf
    %v2441 = vsel %vm2053, %v2006, -inf
    %v2442 = vmax.f32 %v2440, %v2441
    %v2443 = vrot.slane %v2442, 4
    %v2444 = vmax.f32 %v2442, %v2443
    %v2445 = vrot.slane %v2444, 2
    %v2446 = vmax.f32 %v2444, %v2445
    %v2447 = vrot.slane %v2446, 1
    %v2448 = vmax.f32 %v2446, %v2447
    %v2449 = vsel %vm2015, %v2448, -inf
    %2450 = vmax.xlane.f32.xlu0 %v2449
    %v2451 = vpop.xlane.xlu0 %2450
    %v2452 = vsel %vm2019, %v2448, -inf
    %2453 = vmax.xlane.f32.xlu0 %v2452
    %v2454 = vpop.xlane.xlu0 %2453
    %v2455 = vsel %vm2023, %v2448, -inf
    %2456 = vmax.xlane.f32.xlu0 %v2455
    %v2457 = vpop.xlane.xlu0 %2456
    %v2458 = vsel %vm2027, %v2448, -inf
    %2459 = vmax.xlane.f32.xlu0 %v2458
    %v2460 = vpop.xlane.xlu0 %2459
    %v2461 = vsel %vm2074, %v2006, -inf
    %v2462 = vrot.slane %v2461, 4
    %v2463 = vmax.f32 %v2461, %v2462
    %v2464 = vrot.slane %v2463, 2
    %v2465 = vmax.f32 %v2463, %v2464
    %v2466 = vrot.slane %v2465, 1
    %v2467 = vmax.f32 %v2465, %v2466
    %v2468 = vsel %vm2015, %v2467, -inf
    %2469 = vmax.xlane.f32.xlu0 %v2468
    %v2470 = vpop.xlane.xlu0 %2469
    %v2471 = vsel %vm2019, %v2467, -inf
    %2472 = vmax.xlane.f32.xlu0 %v2471
    %v2473 = vpop.xlane.xlu0 %2472
    %v2474 = vsel %vm2023, %v2467, -inf
    %2475 = vmax.xlane.f32.xlu0 %v2474
    %v2476 = vpop.xlane.xlu0 %2475
    %v2477 = vsel %vm2027, %v2467, -inf
    %2478 = vmax.xlane.f32.xlu0 %v2477
    %v2479 = vpop.xlane.xlu0 %2478
    %v2480 = vsel %vm2094, %v2411, %v2414
    %v2481 = vsel %vm2096, %v2480, %v2417
    %v2482 = vsel %vm2015, %v2481, %v2420
    %v2483 = vsel %vm2099, %v2482, %v2430
    %v2484 = vsel %vm2101, %v2483, %v2433
    %v2485 = vsel %vm2103, %v2484, %v2436
    %v2486 = vsel %vm2105, %v2485, %v2439
    %v2487 = vsel %vm2107, %v2486, %v2451
    %v2488 = vsel %vm2109, %v2487, %v2454
    %v2489 = vsel %vm2111, %v2488, %v2457
    %v2490 = vsel %vm2113, %v2489, %v2460
    %v2491 = vsel %vm2115, %v2490, %v2470
    %v2492 = vsel %vm2117, %v2491, %v2473
    %v2493 = vsel %vm2119, %v2492, %v2476
    %v2494 = vsel %vm2121, %v2493, %v2479
    %v2496 = vrot.slane %v2215, 7
    %v2499 = vrot.slane %v2308, 6
    %v2502 = vrot.slane %v2401, 5
    %v2505 = vrot.slane %v2494, 4
    %vm2507 = vcmask 1040384
    %v2508 = vsel %vm2507, %v2122, %v2496
    %vm2509 = vcmask 1041408
    %v2510 = vsel %vm2509, %v2508, %v2499
    %vm2511 = vcmask 1042432
    %v2512 = vsel %vm2511, %v2510, %v2502
    %v2513 = vsel %vm365, %v2512, %v2505
    %v2514 = vld [vmem:[%s3] sm:$0xff]
    %v2515 = vld [vmem:[%s3 + $0x8] sm:$0xff]
    %v2516 = vld [vmem:[%s3 + $0x10] sm:$0xf]
    %v2517 = vmul.f32 %v2513, %v2514
    %vm2518 = vcmask 126976
    %v2519 = vsel %vm2518, %v2517, 0.0
    %2520 = vadd.xlane.f32.xlu0 %v2519
    %v2521 = vpop.xlane.xlu0 %2520
    %v2522 = vsel %vm283, %v2521, 0.0
    %v2523 = vrot.slane %v2522, 4
    %v2524 = vadd.f32 %v2522, %v2523
    %v2525 = vrot.slane %v2524, 2
    %v2526 = vadd.f32 %v2524, %v2525
    %v2527 = vrot.slane %v2526, 1
    %v2528 = vadd.f32 %v2526, %v2527
    %v2531 = vrot.slane %v2514, 5
    %v2532 = vrot.slane %v2515, 5
    %v2533 = vsel %vm2511, %v2531, %v2532
    %v2535 = vmul.f32 %v2513, %v2533
    %v2536 = vsel %vm2518, %v2535, 0.0
    %2537 = vadd.xlane.f32.xlu0 %v2536
    %v2538 = vpop.xlane.xlu0 %2537
    %v2539 = vsel %vm283, %v2538, 0.0
    %v2540 = vrot.slane %v2539, 4
    %v2541 = vadd.f32 %v2539, %v2540
    %v2542 = vrot.slane %v2541, 2
    %v2543 = vadd.f32 %v2541, %v2542
    %v2544 = vrot.slane %v2543, 1
    %v2545 = vadd.f32 %v2543, %v2544
    %v2546 = vrot.slane %v2515, 2
    %v2548 = vmul.f32 %v2513, %v2546
    %v2549 = vsel %vm2518, %v2548, 0.0
    %2550 = vadd.xlane.f32.xlu0 %v2549
    %v2551 = vpop.xlane.xlu0 %2550
    %v2552 = vsel %vm283, %v2551, 0.0
    %v2553 = vrot.slane %v2552, 4
    %v2554 = vadd.f32 %v2552, %v2553
    %v2555 = vrot.slane %v2554, 2
    %v2556 = vadd.f32 %v2554, %v2555
    %v2557 = vrot.slane %v2556, 1
    %v2558 = vadd.f32 %v2556, %v2557
    %v2560 = vrot.slane %v2515, 7
    %v2561 = vrot.slane %v2516, 7
    %v2562 = vsel %vm2507, %v2560, %v2561
    %v2564 = vmul.f32 %v2513, %v2562
    %v2565 = vsel %vm2518, %v2564, 0.0
    %2566 = vadd.xlane.f32.xlu0 %v2565
    %v2567 = vpop.xlane.xlu0 %2566
    %v2568 = vsel %vm283, %v2567, 0.0
    %v2569 = vrot.slane %v2568, 4
    %v2570 = vadd.f32 %v2568, %v2569
    %v2571 = vrot.slane %v2570, 2
    %v2572 = vadd.f32 %v2570, %v2571
    %v2573 = vrot.slane %v2572, 1
    %v2574 = vadd.f32 %v2572, %v2573
    %v2575 = vsel %vm2094, %v2528, %v2545
    %v2576 = vsel %vm2096, %v2575, %v2558
    %v2577 = vsel %vm2015, %v2576, %v2574
    %v2578 = vld [vmem:[%s4] sm:$0x1]
    %v2579 = vadd.f32 %v2577, %v2578
    %vm2580 = vcmask 24576
    %v2581 = vsel %vm2580, %v2579, -inf
    %2582 = vmax.xlane.f32.xlu0 %v2581
    %v2583 = vpop.xlane.xlu0 %2582
    %v2584 = vsub.f32 %v2579, %v2583
    %v2585 = vmul.f32 %v2584, 1.442695
    %v2586 = vpow.pop %v2585
    %v2587 = vsel %vm2580, %v2586, 0.0
    %2588 = vadd.xlane.f32.xlu0 %v2587
    %v2589 = vpop.xlane.xlu0 %2588
    %v2590 = vrcp.pop %v2589
    %v2591 = vmul.f32 %v2586, %v2590
    %2592 = vst.msk [vmem:[#allocation7] sm:$0x1] %vm2580, %v2591
    // Predicated region
    $region30: #{forward.1} parent=1 // pred_check
      _
    $region31: #{forward.1} parent=1 // pred_check_branch
      %2594 = sbr.rel (0) target = $region33
    $region32: #{forward.1} parent=1 // pred_region
      %s2596 = ssub.s32 16, 16
      %2597 = vsyncadd [#allocation3], %s2596
      %s2599 = sshll.u32 [#allocation7], 4
      %s2600 = int_to_ptr.vmem [resolvable:$true] %s2599
      %2602 = dma.vmem_to_hbm [thread:$0]  %s2600, 16, %s5, [#allocation3]
    $region33: #{forward.1} parent=1 // pred_fallthru
      _
    // Predicated region
    $region34: #{forward.1} parent=1 // pred_check
      _
    $region35: #{forward.1} parent=1 // pred_check_branch
      %2604 = sbr.rel (0) target = $region37
    $region36: #{forward.1} parent=1 // pred_region
      %2605 = dma.done [#allocation3], 16
    $region37: #{forward.1} parent=1 // pred_fallthru
      _
    %2606 = vsyncpa [#allocation3], 1
    %2607 = vsyncpa [#allocation4], 1
    %2608 = vsyncpa [#allocation6], 1

</llo_original>
